<compile_context>
chip_gen: v7x
topology: tpu7x:2x2x1
jax: 0.10.0
libtpu: 0.0.40
codegen_flags: <defaults>
</compile_context>

<pallas_src>
import jax
import jax.numpy as jnp
from jax.experimental import pallas as pl
from jax.experimental.pallas import tpu as pltpu

EPS = 1e-5  # PyTorch BatchNorm2d default


def _make_kernel(has_proj):
    def kernel(x_ref, w1_ref, w2_ref, w3_ref, bn_ref, out_ref, pad_ref):
        N, H, W, Cin = x_ref.shape
        GW = pad_ref.shape[-1]
        Cout = out_ref.shape[-1]
        M = N * H * W

        def bn(x2d, off, c, relu):
            # Training-mode BatchNorm (biased batch variance), stats in f32,
            # scale/shift folded into one FMA per element.
            gamma = bn_ref[0:1, off:off + c]
            beta = bn_ref[1:2, off:off + c]
            inv_m = 1.0 / x2d.shape[0]
            mean = jnp.sum(x2d, axis=0, keepdims=True) * inv_m
            ex2 = jnp.sum(x2d * x2d, axis=0, keepdims=True) * inv_m
            var = ex2 - mean * mean
            scale = gamma * jax.lax.rsqrt(var + EPS)
            shift = beta - mean * scale
            y = x2d * scale + shift
            return jnp.maximum(y, 0.0) if relu else y

        # ---- conv1 (1x1) fused with the shortcut 1x1 conv: one matmul ----
        xf = x_ref[...].reshape(M, Cin).astype(jnp.bfloat16)
        y1 = jnp.dot(xf, w1_ref[...], preferred_element_type=jnp.float32)
        t1 = bn(y1[:, :GW], 0, GW, relu=True)                 # bn1 + relu

        # ---- conv2: grouped 3x3, stride 1, pad 1, as im2col + ONE matmul ----
        # Zero only the 4 halo strips of the padded scratch, then write the
        # interior once (no full zero + overwrite).
        pad_ref[:, 0:1, :, :] = jnp.zeros((N, 1, W + 2, GW), jnp.float32)
        pad_ref[:, H + 1:H + 2, :, :] = jnp.zeros((N, 1, W + 2, GW), jnp.float32)
        pad_ref[:, :, 0:1, :] = jnp.zeros((N, H + 2, 1, GW), jnp.float32)
        pad_ref[:, :, W + 1:W + 2, :] = jnp.zeros((N, H + 2, 1, GW), jnp.float32)
        pad_ref[:, 1:H + 1, 1:W + 1, :] = t1.reshape(N, H, W, GW)

        # im2col: (M, 9*GW), tap-major then input-channel (matches w2 rows).
        col = jnp.concatenate(
            [pad_ref[:, kh:kh + H, kw:kw + W, :].reshape(M, GW)
             for kh in range(3) for kw in range(3)],
            axis=-1).astype(jnp.bfloat16)
        y2 = jnp.dot(col, w2_ref[...], preferred_element_type=jnp.float32)
        t2 = bn(y2, GW, GW, relu=True)                        # bn2 + relu

        # ---- conv3 (1x1) + bn3 (no relu) ----
        y3 = jnp.dot(t2.astype(jnp.bfloat16), w3_ref[...],
                     preferred_element_type=jnp.float32)
        t3 = bn(y3, 2 * GW, Cout, relu=False)

        # ---- shortcut ----
        if has_proj:
            sc = bn(y1[:, GW:GW + Cout], 2 * GW + Cout, Cout, relu=False)
        else:
            sc = x_ref[...].reshape(M, Cin).astype(jnp.float32)  # identity

        out = jnp.maximum(t3 + sc, 0.0)
        out_ref[...] = out.reshape(N, H, W, Cout).astype(out_ref.dtype)

    return kernel


def _full_spec(shape):
    shape = tuple(shape)
    return pl.BlockSpec(shape, lambda i: (0,) * len(shape))


def prepare_block_params(params, *, cardinality, bottleneck_width, in_planes,
                         stride=1):
    """One-time weight prep (hoisted out of the per-call path)."""
    bw = bottleneck_width
    GW = cardinality * bw
    Cout = 2 * GW
    has_proj = (stride != 1) or (in_planes != Cout)

    w1 = jnp.transpose(params["w1"][:, :, 0, 0], (1, 0))      # (Cin, GW)
    if has_proj:
        wsc = jnp.transpose(params["wsc"][:, :, 0, 0], (1, 0))  # (Cin, Cout)
        w1 = jnp.concatenate([w1, wsc], axis=1)                # (Cin, GW+Cout)

    # Grouped 3x3 weight (GW, bw, 3, 3) -> block-diagonal dense laid out as
    # (9*GW, GW): rows = (tap, in-channel), cols = out-channel.
    wg = jnp.transpose(params["w2"].reshape(cardinality, bw, bw, 3, 3),
                       (3, 4, 0, 2, 1))                        # (3,3,G,ci,co)
    eye = jnp.eye(cardinality, dtype=wg.dtype)
    w2 = jnp.einsum("hwgic,gk->hwgikc", wg, eye).reshape(9 * GW, GW)

    w3 = jnp.transpose(params["w3"][:, :, 0, 0], (1, 0))       # (GW, Cout)

    g_list = [params["g1"], params["g2"], params["g3"]]
    b_list = [params["b1"], params["b2"], params["b3"]]
    if has_proj:
        g_list.append(params["gsc"])
        b_list.append(params["bsc"])
    bn = jnp.stack([jnp.concatenate(g_list), jnp.concatenate(b_list)], axis=0)

    return {
        "w1": w1.astype(jnp.bfloat16),
        "w2": w2.astype(jnp.bfloat16),
        "w3": w3.astype(jnp.bfloat16),
        "bn": bn.astype(jnp.float32),
    }


def block_forward(x_nchw, prep, *, cardinality, bottleneck_width, stride=1):
    """Pallas implementation of Block.forward. Input/output are NCHW."""
    if stride != 1:
        # TODO(synk): strided grouped conv + strided shortcut not implemented.
        raise NotImplementedError("stride != 1 not supported by this kernel")

    N, Cin, H, W = x_nchw.shape
    GW = cardinality * bottleneck_width
    Cout = 2 * GW                       # expansion = 2
    has_proj = (stride != 1) or (Cin != Cout)
    if not has_proj:
        assert Cin == Cout, "identity shortcut requires Cin == Cout"
    assert prep["w1"].shape[1] == (GW + Cout if has_proj else GW)

    x_nhwc = jnp.transpose(x_nchw, (0, 2, 3, 1))               # NCHW -> NHWC

    in_arrays = [x_nhwc, prep["w1"], prep["w2"], prep["w3"], prep["bn"]]
    in_specs = [_full_spec(a.shape) for a in in_arrays]

    out_nhwc = pl.pallas_call(
        _make_kernel(has_proj),
        out_shape=jax.ShapeDtypeStruct((N, H, W, Cout), jnp.float32),
        grid=(1,),
        in_specs=in_specs,
        out_specs=_full_spec((N, H, W, Cout)),
        scratch_shapes=[pltpu.VMEM((N, H + 2, W + 2, GW), jnp.float32)],
        compiler_params=pltpu.CompilerParams(
            dimension_semantics=("arbitrary",)),
    )(*in_arrays)

    return jnp.transpose(out_nhwc, (0, 3, 1, 2))               # NHWC -> NCHW


# ----------------------------- pure-JAX reference -----------------------------
def _bn_ref(x, gamma, beta):
    mean = jnp.mean(x, axis=(0, 2, 3), keepdims=True)
    var = jnp.mean((x - mean) ** 2, axis=(0, 2, 3), keepdims=True)
    return (x - mean) * jax.lax.rsqrt(var + EPS) * gamma.reshape(1, -1, 1, 1) \
        + beta.reshape(1, -1, 1, 1)


def _conv_bf16(x, w, *, stride=1, padding="VALID", groups=1):
    # bf16 operands + f32 accumulation, mirroring the kernel's MXU precision.
    return jax.lax.conv_general_dilated(
        x.astype(jnp.bfloat16), w.astype(jnp.bfloat16),
        (stride, stride), padding,
        dimension_numbers=("NCHW", "OIHW", "NCHW"),
        feature_group_count=groups,
        preferred_element_type=jnp.float32)


def block_reference(x, params, *, cardinality, stride=1):
    out = _conv_bf16(x, params["w1"])
    out = jnp.maximum(_bn_ref(out, params["g1"], params["b1"]), 0.0)
    out = _conv_bf16(out, params["w2"], stride=stride,
                     padding=((1, 1), (1, 1)), groups=cardinality)
    out = jnp.maximum(_bn_ref(out, params["g2"], params["b2"]), 0.0)
    out = _conv_bf16(out, params["w3"])
    out = _bn_ref(out, params["g3"], params["b3"])
    Cout = params["w3"].shape[0]
    if stride != 1 or x.shape[1] != Cout:
        sc = _bn_ref(_conv_bf16(x, params["wsc"], stride=stride),
                     params["gsc"], params["bsc"])
    else:
        sc = x
    return jnp.maximum(out + sc, 0.0)


if __name__ == "__main__":
    key = jax.random.PRNGKey(0)
    # Small shapes consistent with Block(in_planes=64) at its default
    # cardinality=32, bottleneck_width=4, stride=1 -> GW=128, out channels=256.
    N, Cin, H, W = 2, 64, 8, 8
    cardinality, bottleneck_width, stride = 32, 4, 1
    GW = cardinality * bottleneck_width
    Cout = 2 * GW

    ks = jax.random.split(key, 13)
    params = {
        "w1": jax.random.normal(ks[0], (GW, Cin, 1, 1), jnp.float32) / (Cin ** 0.5),
        "w2": jax.random.normal(ks[1], (GW, bottleneck_width, 3, 3), jnp.float32)
              / ((9 * bottleneck_width) ** 0.5),
        "w3": jax.random.normal(ks[2], (Cout, GW, 1, 1), jnp.float32) / (GW ** 0.5),
        "wsc": jax.random.normal(ks[3], (Cout, Cin, 1, 1), jnp.float32) / (Cin ** 0.5),
        "g1": 1.0 + 0.1 * jax.random.normal(ks[4], (GW,), jnp.float32),
        "b1": 0.1 * jax.random.normal(ks[5], (GW,), jnp.float32),
        "g2": 1.0 + 0.1 * jax.random.normal(ks[6], (GW,), jnp.float32),
        "b2": 0.1 * jax.random.normal(ks[7], (GW,), jnp.float32),
        "g3": 1.0 + 0.1 * jax.random.normal(ks[8], (Cout,), jnp.float32),
        "b3": 0.1 * jax.random.normal(ks[9], (Cout,), jnp.float32),
        "gsc": 1.0 + 0.1 * jax.random.normal(ks[10], (Cout,), jnp.float32),
        "bsc": 0.1 * jax.random.normal(ks[11], (Cout,), jnp.float32),
    }
    x = jax.random.normal(ks[12], (N, Cin, H, W), jnp.float32)

    # One-time weight prep (hoisted out of the forward path).
    prep = prepare_block_params(params, cardinality=cardinality,
                                bottleneck_width=bottleneck_width,
                                in_planes=Cin, stride=stride)
    prep = jax.tree_util.tree_map(jax.block_until_ready, prep)

    out = block_forward(x, prep, cardinality=cardinality,
                        bottleneck_width=bottleneck_width, stride=stride)
    out = jax.block_until_ready(out)

    ref = block_reference(x, params, cardinality=cardinality, stride=stride)
    assert out.shape == (N, Cout, H, W)
    err = jnp.max(jnp.abs(out - ref))
    # bf16 matmul operands (both kernel and reference) -> modest tolerance.
    assert jnp.allclose(out, ref, atol=2e-2, rtol=2e-2), f"max err {err}"

    print("KERNEL_OK")
</pallas_src>

<mosaic_0001>
module attributes {stable_mosaic.version = 11 : i64} {
  func.func @kernel(%arg0: i32, %arg1: memref<2x8x8x64xf32, #tpu.memory_space<vmem>>, %arg2: memref<64x384xbf16, #tpu.memory_space<vmem>>, %arg3: memref<1152x128xbf16, #tpu.memory_space<vmem>>, %arg4: memref<128x256xbf16, #tpu.memory_space<vmem>>, %arg5: memref<2x768xf32, #tpu.memory_space<vmem>>, %arg6: memref<2x8x8x256xf32, #tpu.memory_space<vmem>>, %arg7: memref<2x10x10x128xf32, #tpu.memory_space<vmem>>) attributes {dimension_semantics = [#tpu.dimension_semantics<arbitrary>], iteration_bounds = array<i64: 1>, scalar_prefetch = 0 : i64, scratch_operands = 1 : i64, tpu.core_type = #tpu.core_type<tc>, window_params = [{pipeline_mode = #tpu.pipeline_mode<synchronous>, transform_indices = @transform_0, window_bounds = array<i64: 2, 8, 8, 64>}, {pipeline_mode = #tpu.pipeline_mode<synchronous>, transform_indices = @transform_1, window_bounds = array<i64: 64, 384>}, {pipeline_mode = #tpu.pipeline_mode<synchronous>, transform_indices = @transform_2, window_bounds = array<i64: 1152, 128>}, {pipeline_mode = #tpu.pipeline_mode<synchronous>, transform_indices = @transform_3, window_bounds = array<i64: 128, 256>}, {pipeline_mode = #tpu.pipeline_mode<synchronous>, transform_indices = @transform_4, window_bounds = array<i64: 2, 768>}, {pipeline_mode = #tpu.pipeline_mode<synchronous>, transform_indices = @transform_5, window_bounds = array<i64: 2, 8, 8, 256>}]} {
    %c0 = arith.constant 0 : index
    %c0_0 = arith.constant 0 : index
    %c0_1 = arith.constant 0 : index
    %c0_2 = arith.constant 0 : index
    %0 = vector.load %arg1[%c0, %c0_0, %c0_1, %c0_2] : memref<2x8x8x64xf32, #tpu.memory_space<vmem>>, vector<2x8x8x64xf32>
    %1 = vector.shape_cast %0 : vector<2x8x8x64xf32> to vector<128x64xf32>
    %2 = arith.truncf %1 : vector<128x64xf32> to vector<128x64xbf16>
    %c0_3 = arith.constant 0 : index
    %c0_4 = arith.constant 0 : index
    %3 = vector.load %arg2[%c0_3, %c0_4] : memref<64x384xbf16, #tpu.memory_space<vmem>>, vector<64x384xbf16>
    %cst = arith.constant dense<0.000000e+00> : vector<128x384xf32>
    %4 = tpu.matmul %2, %3, %cst {dimension_numbers = #tpu.dot_dimension_numbers<[1], [0], [0], [1], [0, 0, 1, 1], [], []>} : vector<128x64xbf16>, vector<64x384xbf16>, vector<128x384xf32> -> vector<128x384xf32>
    %5 = vector.extract_strided_slice %4 {offsets = [0, 0], sizes = [128, 128], strides = [1, 1]} : vector<128x384xf32> to vector<128x128xf32>
    %c0_5 = arith.constant 0 : index
    %c0_6 = arith.constant 0 : index
    %6 = vector.load %arg5[%c0_5, %c0_6] : memref<2x768xf32, #tpu.memory_space<vmem>>, vector<1x128xf32>
    %c1 = arith.constant 1 : index
    %c0_7 = arith.constant 0 : index
    %7 = vector.load %arg5[%c1, %c0_7] : memref<2x768xf32, #tpu.memory_space<vmem>>, vector<1x128xf32>
    %cst_8 = arith.constant dense<0.000000e+00> : vector<128xf32>
    %8 = vector.multi_reduction <add>, %5, %cst_8 [0] : vector<128x128xf32> to vector<128xf32>
    %9 = vector.shape_cast %8 : vector<128xf32> to vector<1x128xf32>
    %cst_9 = arith.constant 7.812500e-03 : f32
    %10 = vector.broadcast %cst_9 : f32 to vector<1x128xf32>
    %11 = arith.mulf %9, %10 : vector<1x128xf32>
    %12 = arith.mulf %5, %5 : vector<128x128xf32>
    %cst_10 = arith.constant dense<0.000000e+00> : vector<128xf32>
    %13 = vector.multi_reduction <add>, %12, %cst_10 [0] : vector<128x128xf32> to vector<128xf32>
    %14 = vector.shape_cast %13 : vector<128xf32> to vector<1x128xf32>
    %cst_11 = arith.constant 7.812500e-03 : f32
    %15 = vector.broadcast %cst_11 : f32 to vector<1x128xf32>
    %16 = arith.mulf %14, %15 : vector<1x128xf32>
    %17 = arith.mulf %11, %11 : vector<1x128xf32>
    %18 = arith.subf %16, %17 : vector<1x128xf32>
    %cst_12 = arith.constant 9.99999974E-6 : f32
    %19 = vector.broadcast %cst_12 : f32 to vector<1x128xf32>
    %20 = arith.addf %18, %19 : vector<1x128xf32>
    %21 = math.rsqrt %20 : vector<1x128xf32>
    %22 = arith.mulf %6, %21 : vector<1x128xf32>
    %23 = arith.mulf %11, %22 : vector<1x128xf32>
    %24 = arith.subf %7, %23 : vector<1x128xf32>
    %25 = vector.broadcast %22 : vector<1x128xf32> to vector<128x128xf32>
    %26 = arith.mulf %5, %25 : vector<128x128xf32>
    %27 = vector.broadcast %24 : vector<1x128xf32> to vector<128x128xf32>
    %28 = arith.addf %26, %27 : vector<128x128xf32>
    %cst_13 = arith.constant 0.000000e+00 : f32
    %29 = vector.broadcast %cst_13 : f32 to vector<128x128xf32>
    %30 = arith.maximumf %28, %29 : vector<128x128xf32>
    %cst_14 = arith.constant 0.000000e+00 : f32
    %31 = vector.broadcast %cst_14 : f32 to vector<2x1x10x128xf32>
    %c0_15 = arith.constant 0 : index
    %c0_16 = arith.constant 0 : index
    %c0_17 = arith.constant 0 : index
    %c0_18 = arith.constant 0 : index
    %32 = vector.load %arg7[%c0_15, %c0_16, %c0_17, %c0_18] : memref<2x10x10x128xf32, #tpu.memory_space<vmem>>, vector<2x1x10x128xf32>
    tpu.vector_store %arg7[%c0_15, %c0_16, %c0_17, %c0_18], %31 {strides = array<i32>} : memref<2x10x10x128xf32, #tpu.memory_space<vmem>>, vector<2x1x10x128xf32>,
    %cst_19 = arith.constant 0.000000e+00 : f32
    %33 = vector.broadcast %cst_19 : f32 to vector<2x1x10x128xf32>
    %c0_20 = arith.constant 0 : index
    %c9 = arith.constant 9 : index
    %c0_21 = arith.constant 0 : index
    %c0_22 = arith.constant 0 : index
    %34 = vector.load %arg7[%c0_20, %c9, %c0_21, %c0_22] : memref<2x10x10x128xf32, #tpu.memory_space<vmem>>, vector<2x1x10x128xf32>
    tpu.vector_store %arg7[%c0_20, %c9, %c0_21, %c0_22], %33 {strides = array<i32>} : memref<2x10x10x128xf32, #tpu.memory_space<vmem>>, vector<2x1x10x128xf32>,
    %cst_23 = arith.constant 0.000000e+00 : f32
    %35 = vector.broadcast %cst_23 : f32 to vector<2x10x1x128xf32>
    %c0_24 = arith.constant 0 : index
    %c0_25 = arith.constant 0 : index
    %c0_26 = arith.constant 0 : index
    %c0_27 = arith.constant 0 : index
    %36 = vector.load %arg7[%c0_24, %c0_25, %c0_26, %c0_27] : memref<2x10x10x128xf32, #tpu.memory_space<vmem>>, vector<2x10x1x128xf32>
    tpu.vector_store %arg7[%c0_24, %c0_25, %c0_26, %c0_27], %35 {strides = array<i32>} : memref<2x10x10x128xf32, #tpu.memory_space<vmem>>, vector<2x10x1x128xf32>,
    %cst_28 = arith.constant 0.000000e+00 : f32
    %37 = vector.broadcast %cst_28 : f32 to vector<2x10x1x128xf32>
    %c0_29 = arith.constant 0 : index
    %c0_30 = arith.constant 0 : index
    %c9_31 = arith.constant 9 : index
    %c0_32 = arith.constant 0 : index
    %38 = vector.load %arg7[%c0_29, %c0_30, %c9_31, %c0_32] : memref<2x10x10x128xf32, #tpu.memory_space<vmem>>, vector<2x10x1x128xf32>
    tpu.vector_store %arg7[%c0_29, %c0_30, %c9_31, %c0_32], %37 {strides = array<i32>} : memref<2x10x10x128xf32, #tpu.memory_space<vmem>>, vector<2x10x1x128xf32>,
    %39 = vector.shape_cast %30 : vector<128x128xf32> to vector<2x8x8x128xf32>
    %c0_33 = arith.constant 0 : index
    %c1_34 = arith.constant 1 : index
    %c1_35 = arith.constant 1 : index
    %c0_36 = arith.constant 0 : index
    %40 = vector.load %arg7[%c0_33, %c1_34, %c1_35, %c0_36] : memref<2x10x10x128xf32, #tpu.memory_space<vmem>>, vector<2x8x8x128xf32>
    tpu.vector_store %arg7[%c0_33, %c1_34, %c1_35, %c0_36], %39 {strides = array<i32>} : memref<2x10x10x128xf32, #tpu.memory_space<vmem>>, vector<2x8x8x128xf32>,
    %c0_37 = arith.constant 0 : index
    %c0_38 = arith.constant 0 : index
    %c0_39 = arith.constant 0 : index
    %c0_40 = arith.constant 0 : index
    %41 = vector.load %arg7[%c0_37, %c0_38, %c0_39, %c0_40] : memref<2x10x10x128xf32, #tpu.memory_space<vmem>>, vector<2x8x8x128xf32>
    %42 = vector.shape_cast %41 : vector<2x8x8x128xf32> to vector<128x128xf32>
    %c0_41 = arith.constant 0 : index
    %c0_42 = arith.constant 0 : index
    %c1_43 = arith.constant 1 : index
    %c0_44 = arith.constant 0 : index
    %43 = vector.load %arg7[%c0_41, %c0_42, %c1_43, %c0_44] : memref<2x10x10x128xf32, #tpu.memory_space<vmem>>, vector<2x8x8x128xf32>
    %44 = vector.shape_cast %43 : vector<2x8x8x128xf32> to vector<128x128xf32>
    %c0_45 = arith.constant 0 : index
    %c0_46 = arith.constant 0 : index
    %c2 = arith.constant 2 : index
    %c0_47 = arith.constant 0 : index
    %45 = vector.load %arg7[%c0_45, %c0_46, %c2, %c0_47] : memref<2x10x10x128xf32, #tpu.memory_space<vmem>>, vector<2x8x8x128xf32>
    %46 = vector.shape_cast %45 : vector<2x8x8x128xf32> to vector<128x128xf32>
    %c0_48 = arith.constant 0 : index
    %c1_49 = arith.constant 1 : index
    %c0_50 = arith.constant 0 : index
    %c0_51 = arith.constant 0 : index
    %47 = vector.load %arg7[%c0_48, %c1_49, %c0_50, %c0_51] : memref<2x10x10x128xf32, #tpu.memory_space<vmem>>, vector<2x8x8x128xf32>
    %48 = vector.shape_cast %47 : vector<2x8x8x128xf32> to vector<128x128xf32>
    %c0_52 = arith.constant 0 : index
    %c1_53 = arith.constant 1 : index
    %c1_54 = arith.constant 1 : index
    %c0_55 = arith.constant 0 : index
    %49 = vector.load %arg7[%c0_52, %c1_53, %c1_54, %c0_55] : memref<2x10x10x128xf32, #tpu.memory_space<vmem>>, vector<2x8x8x128xf32>
    %50 = vector.shape_cast %49 : vector<2x8x8x128xf32> to vector<128x128xf32>
    %c0_56 = arith.constant 0 : index
    %c1_57 = arith.constant 1 : index
    %c2_58 = arith.constant 2 : index
    %c0_59 = arith.constant 0 : index
    %51 = vector.load %arg7[%c0_56, %c1_57, %c2_58, %c0_59] : memref<2x10x10x128xf32, #tpu.memory_space<vmem>>, vector<2x8x8x128xf32>
    %52 = vector.shape_cast %51 : vector<2x8x8x128xf32> to vector<128x128xf32>
    %c0_60 = arith.constant 0 : index
    %c2_61 = arith.constant 2 : index
    %c0_62 = arith.constant 0 : index
    %c0_63 = arith.constant 0 : index
    %53 = vector.load %arg7[%c0_60, %c2_61, %c0_62, %c0_63] : memref<2x10x10x128xf32, #tpu.memory_space<vmem>>, vector<2x8x8x128xf32>
    %54 = vector.shape_cast %53 : vector<2x8x8x128xf32> to vector<128x128xf32>
    %c0_64 = arith.constant 0 : index
    %c2_65 = arith.constant 2 : index
    %c1_66 = arith.constant 1 : index
    %c0_67 = arith.constant 0 : index
    %55 = vector.load %arg7[%c0_64, %c2_65, %c1_66, %c0_67] : memref<2x10x10x128xf32, #tpu.memory_space<vmem>>, vector<2x8x8x128xf32>
    %56 = vector.shape_cast %55 : vector<2x8x8x128xf32> to vector<128x128xf32>
    %c0_68 = arith.constant 0 : index
    %c2_69 = arith.constant 2 : index
    %c2_70 = arith.constant 2 : index
    %c0_71 = arith.constant 0 : index
    %57 = vector.load %arg7[%c0_68, %c2_69, %c2_70, %c0_71] : memref<2x10x10x128xf32, #tpu.memory_space<vmem>>, vector<2x8x8x128xf32>
    %58 = vector.shape_cast %57 : vector<2x8x8x128xf32> to vector<128x128xf32>
    %59 = tpu.concatenate %42, %44, %46, %48, %50, %52, %54, %56, %58 in 1 : vector<128x128xf32>, vector<128x128xf32>, vector<128x128xf32>, vector<128x128xf32>, vector<128x128xf32>, vector<128x128xf32>, vector<128x128xf32>, vector<128x128xf32>, vector<128x128xf32> -> vector<128x1152xf32>
    %60 = arith.truncf %59 : vector<128x1152xf32> to vector<128x1152xbf16>
    %c0_72 = arith.constant 0 : index
    %c0_73 = arith.constant 0 : index
    %61 = vector.load %arg3[%c0_72, %c0_73] : memref<1152x128xbf16, #tpu.memory_space<vmem>>, vector<1152x128xbf16>
    %cst_74 = arith.constant dense<0.000000e+00> : vector<128x128xf32>
    %62 = tpu.matmul %60, %61, %cst_74 {dimension_numbers = #tpu.dot_dimension_numbers<[1], [0], [0], [1], [0, 0, 1, 1], [], []>} : vector<128x1152xbf16>, vector<1152x128xbf16>, vector<128x128xf32> -> vector<128x128xf32>
    %c0_75 = arith.constant 0 : index
    %c128 = arith.constant 128 : index
    %63 = vector.load %arg5[%c0_75, %c128] : memref<2x768xf32, #tpu.memory_space<vmem>>, vector<1x128xf32>
    %c1_76 = arith.constant 1 : index
    %c128_77 = arith.constant 128 : index
    %64 = vector.load %arg5[%c1_76, %c128_77] : memref<2x768xf32, #tpu.memory_space<vmem>>, vector<1x128xf32>
    %cst_78 = arith.constant dense<0.000000e+00> : vector<128xf32>
    %65 = vector.multi_reduction <add>, %62, %cst_78 [0] : vector<128x128xf32> to vector<128xf32>
    %66 = vector.shape_cast %65 : vector<128xf32> to vector<1x128xf32>
    %cst_79 = arith.constant 7.812500e-03 : f32
    %67 = vector.broadcast %cst_79 : f32 to vector<1x128xf32>
    %68 = arith.mulf %66, %67 : vector<1x128xf32>
    %69 = arith.mulf %62, %62 : vector<128x128xf32>
    %cst_80 = arith.constant dense<0.000000e+00> : vector<128xf32>
    %70 = vector.multi_reduction <add>, %69, %cst_80 [0] : vector<128x128xf32> to vector<128xf32>
    %71 = vector.shape_cast %70 : vector<128xf32> to vector<1x128xf32>
    %cst_81 = arith.constant 7.812500e-03 : f32
    %72 = vector.broadcast %cst_81 : f32 to vector<1x128xf32>
    %73 = arith.mulf %71, %72 : vector<1x128xf32>
    %74 = arith.mulf %68, %68 : vector<1x128xf32>
    %75 = arith.subf %73, %74 : vector<1x128xf32>
    %cst_82 = arith.constant 9.99999974E-6 : f32
    %76 = vector.broadcast %cst_82 : f32 to vector<1x128xf32>
    %77 = arith.addf %75, %76 : vector<1x128xf32>
    %78 = math.rsqrt %77 : vector<1x128xf32>
    %79 = arith.mulf %63, %78 : vector<1x128xf32>
    %80 = arith.mulf %68, %79 : vector<1x128xf32>
    %81 = arith.subf %64, %80 : vector<1x128xf32>
    %82 = vector.broadcast %79 : vector<1x128xf32> to vector<128x128xf32>
    %83 = arith.mulf %62, %82 : vector<128x128xf32>
    %84 = vector.broadcast %81 : vector<1x128xf32> to vector<128x128xf32>
    %85 = arith.addf %83, %84 : vector<128x128xf32>
    %cst_83 = arith.constant 0.000000e+00 : f32
    %86 = vector.broadcast %cst_83 : f32 to vector<128x128xf32>
    %87 = arith.maximumf %85, %86 : vector<128x128xf32>
    %88 = arith.truncf %87 : vector<128x128xf32> to vector<128x128xbf16>
    %c0_84 = arith.constant 0 : index
    %c0_85 = arith.constant 0 : index
    %89 = vector.load %arg4[%c0_84, %c0_85] : memref<128x256xbf16, #tpu.memory_space<vmem>>, vector<128x256xbf16>
    %cst_86 = arith.constant dense<0.000000e+00> : vector<128x256xf32>
    %90 = tpu.matmul %88, %89, %cst_86 {dimension_numbers = #tpu.dot_dimension_numbers<[1], [0], [0], [1], [0, 0, 1, 1], [], []>} : vector<128x128xbf16>, vector<128x256xbf16>, vector<128x256xf32> -> vector<128x256xf32>
    %c0_87 = arith.constant 0 : index
    %c256 = arith.constant 256 : index
    %91 = vector.load %arg5[%c0_87, %c256] : memref<2x768xf32, #tpu.memory_space<vmem>>, vector<1x256xf32>
    %c1_88 = arith.constant 1 : index
    %c256_89 = arith.constant 256 : index
    %92 = vector.load %arg5[%c1_88, %c256_89] : memref<2x768xf32, #tpu.memory_space<vmem>>, vector<1x256xf32>
    %cst_90 = arith.constant dense<0.000000e+00> : vector<256xf32>
    %93 = vector.multi_reduction <add>, %90, %cst_90 [0] : vector<128x256xf32> to vector<256xf32>
    %94 = vector.shape_cast %93 : vector<256xf32> to vector<1x256xf32>
    %cst_91 = arith.constant 7.812500e-03 : f32
    %95 = vector.broadcast %cst_91 : f32 to vector<1x256xf32>
    %96 = arith.mulf %94, %95 : vector<1x256xf32>
    %97 = arith.mulf %90, %90 : vector<128x256xf32>
    %cst_92 = arith.constant dense<0.000000e+00> : vector<256xf32>
    %98 = vector.multi_reduction <add>, %97, %cst_92 [0] : vector<128x256xf32> to vector<256xf32>
    %99 = vector.shape_cast %98 : vector<256xf32> to vector<1x256xf32>
    %cst_93 = arith.constant 7.812500e-03 : f32
    %100 = vector.broadcast %cst_93 : f32 to vector<1x256xf32>
    %101 = arith.mulf %99, %100 : vector<1x256xf32>
    %102 = arith.mulf %96, %96 : vector<1x256xf32>
    %103 = arith.subf %101, %102 : vector<1x256xf32>
    %cst_94 = arith.constant 9.99999974E-6 : f32
    %104 = vector.broadcast %cst_94 : f32 to vector<1x256xf32>
    %105 = arith.addf %103, %104 : vector<1x256xf32>
    %106 = math.rsqrt %105 : vector<1x256xf32>
    %107 = arith.mulf %91, %106 : vector<1x256xf32>
    %108 = arith.mulf %96, %107 : vector<1x256xf32>
    %109 = arith.subf %92, %108 : vector<1x256xf32>
    %110 = vector.broadcast %107 : vector<1x256xf32> to vector<128x256xf32>
    %111 = arith.mulf %90, %110 : vector<128x256xf32>
    %112 = vector.broadcast %109 : vector<1x256xf32> to vector<128x256xf32>
    %113 = arith.addf %111, %112 : vector<128x256xf32>
    %114 = vector.extract_strided_slice %4 {offsets = [0, 128], sizes = [128, 256], strides = [1, 1]} : vector<128x384xf32> to vector<128x256xf32>
    %c0_95 = arith.constant 0 : index
    %c512 = arith.constant 512 : index
    %115 = vector.load %arg5[%c0_95, %c512] : memref<2x768xf32, #tpu.memory_space<vmem>>, vector<1x256xf32>
    %c1_96 = arith.constant 1 : index
    %c512_97 = arith.constant 512 : index
    %116 = vector.load %arg5[%c1_96, %c512_97] : memref<2x768xf32, #tpu.memory_space<vmem>>, vector<1x256xf32>
    %cst_98 = arith.constant dense<0.000000e+00> : vector<256xf32>
    %117 = vector.multi_reduction <add>, %114, %cst_98 [0] : vector<128x256xf32> to vector<256xf32>
    %118 = vector.shape_cast %117 : vector<256xf32> to vector<1x256xf32>
    %cst_99 = arith.constant 7.812500e-03 : f32
    %119 = vector.broadcast %cst_99 : f32 to vector<1x256xf32>
    %120 = arith.mulf %118, %119 : vector<1x256xf32>
    %121 = arith.mulf %114, %114 : vector<128x256xf32>
    %cst_100 = arith.constant dense<0.000000e+00> : vector<256xf32>
    %122 = vector.multi_reduction <add>, %121, %cst_100 [0] : vector<128x256xf32> to vector<256xf32>
    %123 = vector.shape_cast %122 : vector<256xf32> to vector<1x256xf32>
    %cst_101 = arith.constant 7.812500e-03 : f32
    %124 = vector.broadcast %cst_101 : f32 to vector<1x256xf32>
    %125 = arith.mulf %123, %124 : vector<1x256xf32>
    %126 = arith.mulf %120, %120 : vector<1x256xf32>
    %127 = arith.subf %125, %126 : vector<1x256xf32>
    %cst_102 = arith.constant 9.99999974E-6 : f32
    %128 = vector.broadcast %cst_102 : f32 to vector<1x256xf32>
    %129 = arith.addf %127, %128 : vector<1x256xf32>
    %130 = math.rsqrt %129 : vector<1x256xf32>
    %131 = arith.mulf %115, %130 : vector<1x256xf32>
    %132 = arith.mulf %120, %131 : vector<1x256xf32>
    %133 = arith.subf %116, %132 : vector<1x256xf32>
    %134 = vector.broadcast %131 : vector<1x256xf32> to vector<128x256xf32>
    %135 = arith.mulf %114, %134 : vector<128x256xf32>
    %136 = vector.broadcast %133 : vector<1x256xf32> to vector<128x256xf32>
    %137 = arith.addf %135, %136 : vector<128x256xf32>
    %138 = arith.addf %113, %137 : vector<128x256xf32>
    %cst_103 = arith.constant 0.000000e+00 : f32
    %139 = vector.broadcast %cst_103 : f32 to vector<128x256xf32>
    %140 = arith.maximumf %138, %139 : vector<128x256xf32>
    %141 = vector.shape_cast %140 : vector<128x256xf32> to vector<2x8x8x256xf32>
    %c0_104 = arith.constant 0 : index
    %c0_105 = arith.constant 0 : index
    %c0_106 = arith.constant 0 : index
    %c0_107 = arith.constant 0 : index
    %142 = vector.load %arg6[%c0_104, %c0_105, %c0_106, %c0_107] : memref<2x8x8x256xf32, #tpu.memory_space<vmem>>, vector<2x8x8x256xf32>
    tpu.vector_store %arg6[%c0_104, %c0_105, %c0_106, %c0_107], %141 {strides = array<i32>} : memref<2x8x8x256xf32, #tpu.memory_space<vmem>>, vector<2x8x8x256xf32>,
    return
  }
  func.func @transform_0(%arg0: i32) -> (i32, i32, i32, i32) {
    %c0_i32 = arith.constant 0 : i32
    %c0_i32_0 = arith.constant 0 : i32
    %c0_i32_1 = arith.constant 0 : i32
    %c0_i32_2 = arith.constant 0 : i32
    %c0_i32_3 = arith.constant 0 : i32
    return %c0_i32, %c0_i32_0, %c0_i32_1, %c0_i32_2 : i32, i32, i32, i32
  }
  func.func @transform_1(%arg0: i32) -> (i32, i32) {
    %c0_i32 = arith.constant 0 : i32
    %c0_i32_0 = arith.constant 0 : i32
    %c0_i32_1 = arith.constant 0 : i32
    return %c0_i32, %c0_i32_0 : i32, i32
  }
  func.func @transform_2(%arg0: i32) -> (i32, i32) {
    %c0_i32 = arith.constant 0 : i32
    %c0_i32_0 = arith.constant 0 : i32
    %c0_i32_1 = arith.constant 0 : i32
    return %c0_i32, %c0_i32_0 : i32, i32
  }
  func.func @transform_3(%arg0: i32) -> (i32, i32) {
    %c0_i32 = arith.constant 0 : i32
    %c0_i32_0 = arith.constant 0 : i32
    %c0_i32_1 = arith.constant 0 : i32
    return %c0_i32, %c0_i32_0 : i32, i32
  }
  func.func @transform_4(%arg0: i32) -> (i32, i32) {
    %c0_i32 = arith.constant 0 : i32
    %c0_i32_0 = arith.constant 0 : i32
    %c0_i32_1 = arith.constant 0 : i32
    return %c0_i32, %c0_i32_0 : i32, i32
  }
  func.func @transform_5(%arg0: i32) -> (i32, i32, i32, i32) {
    %c0_i32 = arith.constant 0 : i32
    %c0_i32_0 = arith.constant 0 : i32
    %c0_i32_1 = arith.constant 0 : i32
    %c0_i32_2 = arith.constant 0 : i32
    %c0_i32_3 = arith.constant 0 : i32
    return %c0_i32, %c0_i32_0, %c0_i32_1, %c0_i32_2 : i32, i32, i32, i32
  }
}

</mosaic_0001>

<llo_original>
// kernel: tpu_custom_call.1
$region0: #{tpu_custom_call.1}
  #allocation0 [shape = 'u32[]', space=smem, size = 0x4, offset = 0x4, fixed_abs, tag = 'smem constant byte address 0x4 - core index']
  #allocation1 [shape = 'u32[144,128]{1,0:T(1,128)}', space=vmem, size = 0x12000, scoped, tag = 'internal scratch']
  #allocation2 [shape = 'f32[2,10,10,128]{3,2,1,0:T(8,128)}', space=vmem, size = 0x28000, scoped, tag = 'scratch operand']
  %s0 = inlined_call_operand.hbm [shape: f32[2,8,8,64], index: 0, kind: input, shape index: {}]
  %s1 = inlined_call_operand.hbm [shape: bf16[64,384], index: 1, kind: input, shape index: {}]
  %s2 = inlined_call_operand.hbm [shape: bf16[1152,128], index: 2, kind: input, shape index: {}]
  %s3 = inlined_call_operand.hbm [shape: bf16[128,256], index: 3, kind: input, shape index: {}]
  %s4 = inlined_call_operand.vmem [shape: f32[2,768], index: 4, kind: input, shape index: {}]
  %s5 = inlined_call_operand.hbm [shape: f32[2,8,8,256], index: 5, kind: output, shape index: {}]
  %s6 = sld [smem:[#allocation0]]
  $region46: #{tpu_custom_call.1} parent=0
    _
  %s8 = ssub.s32 1, %s6
  %s9 = scalar_select 0, %s8, %s6
  $region1: #{tpu_custom_call.1} parent=0
    #allocation3 [shape = 'u8[65536]{0}', space=vmem, size = 0x10000, scoped, tag = 'input window, operand 0, single buffered']
    #allocation4 [shape = 's32[1]{0}', space=sflag, size = 0x4, scoped, tag = 'scoped memory for tpu_custom_call.1']
    #allocation5 [shape = 's32[1]{0}', space=sflag, size = 0x4, scoped, tag = 'scoped memory for tpu_custom_call.1']
    #allocation6 [shape = 'u8[49152]{0}', space=vmem, size = 0xc000, scoped, tag = 'input window, operand 1, single buffered']
    #allocation7 [shape = 's32[1]{0}', space=sflag, size = 0x4, scoped, tag = 'scoped memory for tpu_custom_call.1']
    #allocation8 [shape = 'u8[294912]{0}', space=vmem, size = 0x48000, scoped, tag = 'input window, operand 2, single buffered']
    #allocation9 [shape = 'u8[65536]{0}', space=vmem, size = 0x10000, scoped, tag = 'input window, operand 3, single buffered']
    #allocation10 [shape = 's32[1]{0}', space=sflag, size = 0x4, scoped, tag = 'scoped memory for tpu_custom_call.1']
    #allocation11 [shape = 'u8[131072]{0}', space=vmem, size = 0x20000, scoped, tag = 'output window, operand 0, single buffered']
    %10 = vsyncpa [#allocation4], 0
    %11 = vsyncpa [#allocation7], 0
    %12 = vsyncpa [#allocation10], 0
    %13 = vsyncpa [#allocation5], 0
    // Predicated region
    $region2: #{tpu_custom_call.1} parent=1 // pred_check
      _
    $region3: #{tpu_custom_call.1} parent=1 // pred_check_branch
      %15 = sbr.rel (0) target = $region5
    $region4: #{tpu_custom_call.1} parent=1 // pred_region
      %s17 = ssub.s32 2048, 2048
      %18 = vsyncadd [#allocation4], %s17
      %s19 = sshll.u32 [#allocation3], 4
      %s20 = int_to_ptr.vmem [resolvable:$true] %s19
      %25 = dma.hbm_to_vmem [thread:$0]  %s0, 2048, %s20, [#allocation4], 128, 128, 8
    $region5: #{tpu_custom_call.1} parent=1 // pred_fallthru
      _
    // Predicated region
    $region6: #{tpu_custom_call.1} parent=1 // pred_check
      _
    $region7: #{tpu_custom_call.1} parent=1 // pred_check_branch
      %27 = sbr.rel (0) target = $region9
    $region8: #{tpu_custom_call.1} parent=1 // pred_region
      %s29 = ssub.s32 1536, 1536
      %30 = vsyncadd [#allocation7], %s29
      %s31 = sshll.u32 [#allocation6], 4
      %s32 = int_to_ptr.vmem [resolvable:$true] %s31
      %37 = dma.hbm_to_vmem [thread:$0]  %s1, 1536, %s32, [#allocation7], 192, 192, 12
    $region9: #{tpu_custom_call.1} parent=1 // pred_fallthru
      _
    // Predicated region
    $region10: #{tpu_custom_call.1} parent=1 // pred_check
      _
    $region11: #{tpu_custom_call.1} parent=1 // pred_check_branch
      %39 = sbr.rel (0) target = $region13
    $region12: #{tpu_custom_call.1} parent=1 // pred_region
      %s41 = ssub.s32 9216, 9216
      %42 = vsyncadd [#allocation7], %s41
      %s43 = sshll.u32 [#allocation8], 4
      %s44 = int_to_ptr.vmem [resolvable:$true] %s43
      %49 = dma.hbm_to_vmem [thread:$0]  %s2, 9216, %s44, [#allocation7], 64, 64, 4
    $region13: #{tpu_custom_call.1} parent=1 // pred_fallthru
      _
    // Predicated region
    $region14: #{tpu_custom_call.1} parent=1 // pred_check
      _
    $region15: #{tpu_custom_call.1} parent=1 // pred_check_branch
      %51 = sbr.rel (0) target = $region17
    $region16: #{tpu_custom_call.1} parent=1 // pred_region
      %s53 = ssub.s32 2048, 2048
      %54 = vsyncadd [#allocation10], %s53
      %s55 = sshll.u32 [#allocation9], 4
      %s56 = int_to_ptr.vmem [resolvable:$true] %s55
      %61 = dma.hbm_to_vmem [thread:$0]  %s3, 2048, %s56, [#allocation10], 128, 128, 8
    $region17: #{tpu_custom_call.1} parent=1 // pred_fallthru
      _
    // Predicated region
    $region18: #{tpu_custom_call.1} parent=1 // pred_check
      _
    $region19: #{tpu_custom_call.1} parent=1 // pred_check_branch
      %63 = sbr.rel (0) target = $region21
    $region20: #{tpu_custom_call.1} parent=1 // pred_region
      _
    $region21: #{tpu_custom_call.1} parent=1 // pred_fallthru
      _
    // Predicated region
    $region22: #{tpu_custom_call.1} parent=1 // pred_check
      _
    $region23: #{tpu_custom_call.1} parent=1 // pred_check_branch
      %65 = sbr.rel (0) target = $region25
    $region24: #{tpu_custom_call.1} parent=1 // pred_region
      %66 = dma.done [#allocation4], 2048
    $region25: #{tpu_custom_call.1} parent=1 // pred_fallthru
      _
    // Predicated region
    $region26: #{tpu_custom_call.1} parent=1 // pred_check
      _
    $region27: #{tpu_custom_call.1} parent=1 // pred_check_branch
      %68 = sbr.rel (0) target = $region29
    $region28: #{tpu_custom_call.1} parent=1 // pred_region
      %69 = dma.done [#allocation7], 1536
    $region29: #{tpu_custom_call.1} parent=1 // pred_fallthru
      _
    // Predicated region
    $region30: #{tpu_custom_call.1} parent=1 // pred_check
      _
    $region31: #{tpu_custom_call.1} parent=1 // pred_check_branch
      %71 = sbr.rel (0) target = $region33
    $region32: #{tpu_custom_call.1} parent=1 // pred_region
      %72 = dma.done [#allocation7], 9216
    $region33: #{tpu_custom_call.1} parent=1 // pred_fallthru
      _
    // Predicated region
    $region34: #{tpu_custom_call.1} parent=1 // pred_check
      _
    $region35: #{tpu_custom_call.1} parent=1 // pred_check_branch
      %74 = sbr.rel (0) target = $region37
    $region36: #{tpu_custom_call.1} parent=1 // pred_region
      %75 = dma.done [#allocation10], 2048
    $region37: #{tpu_custom_call.1} parent=1 // pred_fallthru
      _
    %v77 = vld [vmem:[#allocation3] sm:$0xff]
    %v78 = vld [vmem:[#allocation3 + $0x8] sm:$0xff]
    %v79 = vld [vmem:[#allocation3 + $0x10] sm:$0xff]
    %v80 = vld [vmem:[#allocation3 + $0x18] sm:$0xff]
    %v81 = vld [vmem:[#allocation3 + $0x20] sm:$0xff]
    %v82 = vld [vmem:[#allocation3 + $0x28] sm:$0xff]
    %v83 = vld [vmem:[#allocation3 + $0x30] sm:$0xff]
    %v84 = vld [vmem:[#allocation3 + $0x38] sm:$0xff]
    %v85 = vld [vmem:[#allocation3 + $0x40] sm:$0xff]
    %v86 = vld [vmem:[#allocation3 + $0x48] sm:$0xff]
    %v87 = vld [vmem:[#allocation3 + $0x50] sm:$0xff]
    %v88 = vld [vmem:[#allocation3 + $0x58] sm:$0xff]
    %v89 = vld [vmem:[#allocation3 + $0x60] sm:$0xff]
    %v90 = vld [vmem:[#allocation3 + $0x68] sm:$0xff]
    %v91 = vld [vmem:[#allocation3 + $0x70] sm:$0xff]
    %v92 = vld [vmem:[#allocation3 + $0x78] sm:$0xff]
    %v93 = vpack.c.bf16 %v78, %v77
    %v94 = vpack.c.bf16 %v80, %v79
    %v95 = vpack.c.bf16 %v82, %v81
    %v96 = vpack.c.bf16 %v84, %v83
    %v97 = vpack.c.bf16 %v86, %v85
    %v98 = vpack.c.bf16 %v88, %v87
    %v99 = vpack.c.bf16 %v90, %v89
    %v100 = vpack.c.bf16 %v92, %v91
    %v101 = vld [vmem:[#allocation6] sm:$0xff]
    %v102 = vld [vmem:[#allocation6 + $0x8] sm:$0xf]
    %v103 = vld [vmem:[#allocation6 + $0xc] sm:$0xff]
    %v104 = vld [vmem:[#allocation6 + $0x14] sm:$0xf]
    %v105 = vld [vmem:[#allocation6 + $0x18] sm:$0xff]
    %v106 = vld [vmem:[#allocation6 + $0x20] sm:$0xf]
    %v107 = vld [vmem:[#allocation6 + $0x24] sm:$0xff]
    %v108 = vld [vmem:[#allocation6 + $0x2c] sm:$0xf]
    %v109 = vld [vmem:[#allocation6 + $0x30] sm:$0xff]
    %v110 = vld [vmem:[#allocation6 + $0x38] sm:$0xf]
    %v111 = vld [vmem:[#allocation6 + $0x3c] sm:$0xff]
    %v112 = vld [vmem:[#allocation6 + $0x44] sm:$0xf]
    %v113 = vld [vmem:[#allocation6 + $0x48] sm:$0xff]
    %v114 = vld [vmem:[#allocation6 + $0x50] sm:$0xf]
    %v115 = vld [vmem:[#allocation6 + $0x54] sm:$0xff]
    %v116 = vld [vmem:[#allocation6 + $0x5c] sm:$0xf]
    %v133 = vunpack.c.l.b16 %v101
    %v134 = vunpack.c.h.b16 %v101
    %v135 = vunpack.c.l.b16 %v102
    %v136 = vunpack.c.l.b16 %v103
    %v137 = vunpack.c.h.b16 %v103
    %v138 = vunpack.c.l.b16 %v104
    %v139 = vunpack.c.l.b16 %v105
    %v140 = vunpack.c.h.b16 %v105
    %v141 = vunpack.c.l.b16 %v106
    %v142 = vunpack.c.l.b16 %v107
    %v143 = vunpack.c.h.b16 %v107
    %v144 = vunpack.c.l.b16 %v108
    %v145 = vunpack.c.l.b16 %v109
    %v146 = vunpack.c.h.b16 %v109
    %v147 = vunpack.c.l.b16 %v110
    %v148 = vunpack.c.l.b16 %v111
    %v149 = vunpack.c.h.b16 %v111
    %v150 = vunpack.c.l.b16 %v112
    %v151 = vunpack.c.l.b16 %v113
    %v152 = vunpack.c.h.b16 %v113
    %v153 = vunpack.c.l.b16 %v114
    %v154 = vunpack.c.l.b16 %v115
    %v155 = vunpack.c.h.b16 %v115
    %v156 = vunpack.c.l.b16 %v116
    %v157 = vpack.c.b16 %v136, %v133
    %v158 = vpack.c.b16 %v137, %v134
    %v159 = vpack.c.b16 %v138, %v135
    %v160 = vpack.c.b16 %v142, %v139
    %v161 = vpack.c.b16 %v143, %v140
    %v162 = vpack.c.b16 %v144, %v141
    %v163 = vpack.c.b16 %v148, %v145
    %v164 = vpack.c.b16 %v149, %v146
    %v165 = vpack.c.b16 %v150, %v147
    %v166 = vpack.c.b16 %v154, %v151
    %v167 = vpack.c.b16 %v155, %v152
    %v168 = vpack.c.b16 %v156, %v153
    %vm181 = vcmask 523264
    %v183 = vsel %vm181, %v93, 0
    %v186 = vsel %vm181, %v94, 0
    %v189 = vsel %vm181, %v95, 0
    %v192 = vsel %vm181, %v96, 0
    %v195 = vsel %vm181, %v97, 0
    %v198 = vsel %vm181, %v98, 0
    %v201 = vsel %vm181, %v99, 0
    %v204 = vsel %vm181, %v100, 0
    %206 = vmatprep.subr.bf16.mxu0 %v158
    %207 = vmatpush1.bf16.msra.mxu0 %v157
    %208 = vmatprep.subr.bf16.mxu0 %v161
    %209 = vmatpush1.bf16.msra.mxu0 %v160
    %210 = vmatprep.subr.bf16.mxu0 %v164
    %211 = vmatpush1.bf16.msra.mxu0 %v163
    %212 = vmatprep.subr.bf16.mxu0 %v167
    %213 = vmatpush1.bf16.msra.mxu0 %v166
    %214 = vmatprep.subr.bf16.mxu0 0
    %215 = vmatpush1.bf16.msra.mxu0 0
    %216 = vmatprep.subr.bf16.mxu0 0
    %217 = vmatpush1.bf16.msra.mxu0 0
    %218 = vmatprep.subr.bf16.mxu0 0
    %219 = vmatpush1.bf16.msra.mxu0 0
    %220 = vmatprep.subr.bf16.mxu0 0
    %221 = vmatpush1.bf16.msra.mxu0 0
    %222 = vmatprep.subr.bf16.mxu0 0
    %223 = vmatpush1.bf16.msra.mxu0 0
    %224 = vmatprep.subr.bf16.mxu0 0
    %225 = vmatpush1.bf16.msra.mxu0 0
    %226 = vmatprep.subr.bf16.mxu0 0
    %227 = vmatpush1.bf16.msra.mxu0 0
    %228 = vmatprep.subr.bf16.mxu0 0
    %229 = vmatpush1.bf16.msra.mxu0 0
    %230 = vmatprep.subr.bf16.mxu0 0
    %231 = vmatpush1.bf16.msra.mxu0 0
    %232 = vmatprep.subr.bf16.mxu0 0
    %233 = vmatpush1.bf16.msra.mxu0 0
    %234 = vmatprep.subr.bf16.mxu0 0
    %235 = vmatpush1.bf16.msra.mxu0 0
    %236 = vmatprep.subr.bf16.mxu0 0
    %237 = vmatpush1.bf16.msra.mxu0 0
    %238 = vmatprep.mubr.bf16.mxu0 0
    %239 = vmatmul.mubr.bf16.gmra.mrb[0].mxu0 %v183
    %v240 = vpop.f32.mrb[0].mxu0
    %v241 = vadd.f32 0.0, %v240
    %v242 = vpop.f32.mrb[0].mxu0
    %v243 = vadd.f32 0.0, %v242
    %v244 = vpop.f32.mrb[0].mxu0
    %v245 = vadd.f32 0.0, %v244
    %v246 = vpop.f32.mrb[0].mxu0
    %v247 = vadd.f32 0.0, %v246
    %248 = vmatprep.mubr.bf16.mxu0 0
    %249 = vmatmul.mubr.bf16.gmra.mrb[0].mxu0 %v186
    %v250 = vpop.f32.mrb[0].mxu0
    %v251 = vadd.f32 0.0, %v250
    %v252 = vpop.f32.mrb[0].mxu0
    %v253 = vadd.f32 0.0, %v252
    %v254 = vpop.f32.mrb[0].mxu0
    %v255 = vadd.f32 0.0, %v254
    %v256 = vpop.f32.mrb[0].mxu0
    %v257 = vadd.f32 0.0, %v256
    %258 = vmatprep.mubr.bf16.mxu0 0
    %259 = vmatmul.mubr.bf16.gmra.mrb[0].mxu0 %v189
    %v260 = vpop.f32.mrb[0].mxu0
    %v261 = vadd.f32 0.0, %v260
    %v262 = vpop.f32.mrb[0].mxu0
    %v263 = vadd.f32 0.0, %v262
    %v264 = vpop.f32.mrb[0].mxu0
    %v265 = vadd.f32 0.0, %v264
    %v266 = vpop.f32.mrb[0].mxu0
    %v267 = vadd.f32 0.0, %v266
    %268 = vmatprep.mubr.bf16.mxu0 0
    %269 = vmatmul.mubr.bf16.gmra.mrb[0].mxu0 %v192
    %v270 = vpop.f32.mrb[0].mxu0
    %v271 = vadd.f32 0.0, %v270
    %v272 = vpop.f32.mrb[0].mxu0
    %v273 = vadd.f32 0.0, %v272
    %v274 = vpop.f32.mrb[0].mxu0
    %v275 = vadd.f32 0.0, %v274
    %v276 = vpop.f32.mrb[0].mxu0
    %v277 = vadd.f32 0.0, %v276
    %278 = vmatprep.mubr.bf16.mxu0 0
    %279 = vmatmul.mubr.bf16.gmra.mrb[0].mxu0 %v195
    %v280 = vpop.f32.mrb[0].mxu0
    %v281 = vadd.f32 0.0, %v280
    %v282 = vpop.f32.mrb[0].mxu0
    %v283 = vadd.f32 0.0, %v282
    %v284 = vpop.f32.mrb[0].mxu0
    %v285 = vadd.f32 0.0, %v284
    %v286 = vpop.f32.mrb[0].mxu0
    %v287 = vadd.f32 0.0, %v286
    %288 = vmatprep.mubr.bf16.mxu0 0
    %289 = vmatmul.mubr.bf16.gmra.mrb[0].mxu0 %v198
    %v290 = vpop.f32.mrb[0].mxu0
    %v291 = vadd.f32 0.0, %v290
    %v292 = vpop.f32.mrb[0].mxu0
    %v293 = vadd.f32 0.0, %v292
    %v294 = vpop.f32.mrb[0].mxu0
    %v295 = vadd.f32 0.0, %v294
    %v296 = vpop.f32.mrb[0].mxu0
    %v297 = vadd.f32 0.0, %v296
    %298 = vmatprep.mubr.bf16.mxu0 0
    %299 = vmatmul.mubr.bf16.gmra.mrb[0].mxu0 %v201
    %v300 = vpop.f32.mrb[0].mxu0
    %v301 = vadd.f32 0.0, %v300
    %v302 = vpop.f32.mrb[0].mxu0
    %v303 = vadd.f32 0.0, %v302
    %v304 = vpop.f32.mrb[0].mxu0
    %v305 = vadd.f32 0.0, %v304
    %v306 = vpop.f32.mrb[0].mxu0
    %v307 = vadd.f32 0.0, %v306
    %308 = vmatprep.mubr.bf16.mxu0 0
    %309 = vmatmul.mubr.bf16.gmra.mrb[0].mxu0 %v204
    %v310 = vpop.f32.mrb[0].mxu0
    %v311 = vadd.f32 0.0, %v310
    %v312 = vpop.f32.mrb[0].mxu0
    %v313 = vadd.f32 0.0, %v312
    %v314 = vpop.f32.mrb[0].mxu0
    %v315 = vadd.f32 0.0, %v314
    %v316 = vpop.f32.mrb[0].mxu0
    %v317 = vadd.f32 0.0, %v316
    %318 = vdwg.mxu0
    %319 = vmatprep.subr.bf16.mxu0 0
    %320 = vmatpush1.bf16.msra.mxu0 %v159
    %321 = vmatprep.subr.bf16.mxu0 0
    %322 = vmatpush1.bf16.msra.mxu0 %v162
    %323 = vmatprep.subr.bf16.mxu0 0
    %324 = vmatpush1.bf16.msra.mxu0 %v165
    %325 = vmatprep.subr.bf16.mxu0 0
    %326 = vmatpush1.bf16.msra.mxu0 %v168
    %327 = vmatprep.subr.bf16.mxu0 0
    %328 = vmatpush1.bf16.msra.mxu0 0
    %329 = vmatprep.subr.bf16.mxu0 0
    %330 = vmatpush1.bf16.msra.mxu0 0
    %331 = vmatprep.subr.bf16.mxu0 0
    %332 = vmatpush1.bf16.msra.mxu0 0
    %333 = vmatprep.subr.bf16.mxu0 0
    %334 = vmatpush1.bf16.msra.mxu0 0
    %335 = vmatprep.subr.bf16.mxu0 0
    %336 = vmatpush1.bf16.msra.mxu0 0
    %337 = vmatprep.subr.bf16.mxu0 0
    %338 = vmatpush1.bf16.msra.mxu0 0
    %339 = vmatprep.subr.bf16.mxu0 0
    %340 = vmatpush1.bf16.msra.mxu0 0
    %341 = vmatprep.subr.bf16.mxu0 0
    %342 = vmatpush1.bf16.msra.mxu0 0
    %343 = vmatprep.subr.bf16.mxu0 0
    %344 = vmatpush1.bf16.msra.mxu0 0
    %345 = vmatprep.subr.bf16.mxu0 0
    %346 = vmatpush1.bf16.msra.mxu0 0
    %347 = vmatprep.subr.bf16.mxu0 0
    %348 = vmatpush1.bf16.msra.mxu0 0
    %349 = vmatprep.subr.bf16.mxu0 0
    %350 = vmatpush1.bf16.msra.mxu0 0
    %351 = vmatprep.mubr.bf16.mxu0 0
    %352 = vmatmul.mubr.bf16.gmra.mrb[0].mxu0 %v183
    %v353 = vpop.f32.mrb[0].mxu0
    %v354 = vadd.f32 0.0, %v353
    %v355 = vpop.f32.mrb[0].mxu0
    %v356 = vpop.f32.mrb[0].mxu0
    %v357 = vadd.f32 0.0, %v356
    %v358 = vpop.f32.mrb[0].mxu0
    %359 = vmatprep.mubr.bf16.mxu0 0
    %360 = vmatmul.mubr.bf16.gmra.mrb[0].mxu0 %v186
    %v361 = vpop.f32.mrb[0].mxu0
    %v362 = vadd.f32 0.0, %v361
    %v363 = vpop.f32.mrb[0].mxu0
    %v364 = vpop.f32.mrb[0].mxu0
    %v365 = vadd.f32 0.0, %v364
    %v366 = vpop.f32.mrb[0].mxu0
    %367 = vmatprep.mubr.bf16.mxu0 0
    %368 = vmatmul.mubr.bf16.gmra.mrb[0].mxu0 %v189
    %v369 = vpop.f32.mrb[0].mxu0
    %v370 = vadd.f32 0.0, %v369
    %v371 = vpop.f32.mrb[0].mxu0
    %v372 = vpop.f32.mrb[0].mxu0
    %v373 = vadd.f32 0.0, %v372
    %v374 = vpop.f32.mrb[0].mxu0
    %375 = vmatprep.mubr.bf16.mxu0 0
    %376 = vmatmul.mubr.bf16.gmra.mrb[0].mxu0 %v192
    %v377 = vpop.f32.mrb[0].mxu0
    %v378 = vadd.f32 0.0, %v377
    %v379 = vpop.f32.mrb[0].mxu0
    %v380 = vpop.f32.mrb[0].mxu0
    %v381 = vadd.f32 0.0, %v380
    %v382 = vpop.f32.mrb[0].mxu0
    %383 = vmatprep.mubr.bf16.mxu0 0
    %384 = vmatmul.mubr.bf16.gmra.mrb[0].mxu0 %v195
    %v385 = vpop.f32.mrb[0].mxu0
    %v386 = vadd.f32 0.0, %v385
    %v387 = vpop.f32.mrb[0].mxu0
    %v388 = vpop.f32.mrb[0].mxu0
    %v389 = vadd.f32 0.0, %v388
    %v390 = vpop.f32.mrb[0].mxu0
    %391 = vmatprep.mubr.bf16.mxu0 0
    %392 = vmatmul.mubr.bf16.gmra.mrb[0].mxu0 %v198
    %v393 = vpop.f32.mrb[0].mxu0
    %v394 = vadd.f32 0.0, %v393
    %v395 = vpop.f32.mrb[0].mxu0
    %v396 = vpop.f32.mrb[0].mxu0
    %v397 = vadd.f32 0.0, %v396
    %v398 = vpop.f32.mrb[0].mxu0
    %399 = vmatprep.mubr.bf16.mxu0 0
    %400 = vmatmul.mubr.bf16.gmra.mrb[0].mxu0 %v201
    %v401 = vpop.f32.mrb[0].mxu0
    %v402 = vadd.f32 0.0, %v401
    %v403 = vpop.f32.mrb[0].mxu0
    %v404 = vpop.f32.mrb[0].mxu0
    %v405 = vadd.f32 0.0, %v404
    %v406 = vpop.f32.mrb[0].mxu0
    %407 = vmatprep.mubr.bf16.mxu0 0
    %408 = vmatmul.mubr.bf16.gmra.mrb[0].mxu0 %v204
    %v409 = vpop.f32.mrb[0].mxu0
    %v410 = vadd.f32 0.0, %v409
    %v411 = vpop.f32.mrb[0].mxu0
    %v412 = vpop.f32.mrb[0].mxu0
    %v413 = vadd.f32 0.0, %v412
    %v414 = vpop.f32.mrb[0].mxu0
    %415 = vdwg.mxu0
    %v416 = vld [vmem:[%s4] sm:$0x1]
    %v417 = vld [vmem:[%s4 + $0x1] sm:$0x1]
    %v418 = vadd.f32 %v241, %v245
    %v419 = vadd.f32 %v418, %v251
    %v420 = vadd.f32 %v419, %v255
    %v421 = vadd.f32 %v420, %v261
    %v422 = vadd.f32 %v421, %v265
    %v423 = vadd.f32 %v422, %v271
    %v424 = vadd.f32 %v423, %v275
    %v425 = vadd.f32 %v424, %v281
    %v426 = vadd.f32 %v425, %v285
    %v427 = vadd.f32 %v426, %v291
    %v428 = vadd.f32 %v427, %v295
    %v429 = vadd.f32 %v428, %v301
    %v430 = vadd.f32 %v429, %v305
    %v431 = vadd.f32 %v430, %v311
    %v432 = vadd.f32 %v431, %v315
    %v433 = vrot.slane %v432, 4
    %v434 = vadd.f32 %v432, %v433
    %v435 = vrot.slane %v434, 2
    %v436 = vadd.f32 %v434, %v435
    %v437 = vrot.slane %v436, 1
    %v438 = vadd.f32 %v436, %v437
    %v439 = vmul.f32 %v438, 0.0078125
    %v440 = vmul.f32 %v241, %v241
    %v441 = vmul.f32 %v245, %v245
    %v442 = vmul.f32 %v251, %v251
    %v443 = vmul.f32 %v255, %v255
    %v444 = vmul.f32 %v261, %v261
    %v445 = vmul.f32 %v265, %v265
    %v446 = vmul.f32 %v271, %v271
    %v447 = vmul.f32 %v275, %v275
    %v448 = vmul.f32 %v281, %v281
    %v449 = vmul.f32 %v285, %v285
    %v450 = vmul.f32 %v291, %v291
    %v451 = vmul.f32 %v295, %v295
    %v452 = vmul.f32 %v301, %v301
    %v453 = vmul.f32 %v305, %v305
    %v454 = vmul.f32 %v311, %v311
    %v455 = vmul.f32 %v315, %v315
    %v456 = vadd.f32 %v440, %v441
    %v457 = vadd.f32 %v456, %v442
    %v458 = vadd.f32 %v457, %v443
    %v459 = vadd.f32 %v458, %v444
    %v460 = vadd.f32 %v459, %v445
    %v461 = vadd.f32 %v460, %v446
    %v462 = vadd.f32 %v461, %v447
    %v463 = vadd.f32 %v462, %v448
    %v464 = vadd.f32 %v463, %v449
    %v465 = vadd.f32 %v464, %v450
    %v466 = vadd.f32 %v465, %v451
    %v467 = vadd.f32 %v466, %v452
    %v468 = vadd.f32 %v467, %v453
    %v469 = vadd.f32 %v468, %v454
    %v470 = vadd.f32 %v469, %v455
    %v471 = vrot.slane %v470, 4
    %v472 = vadd.f32 %v470, %v471
    %v473 = vrot.slane %v472, 2
    %v474 = vadd.f32 %v472, %v473
    %v475 = vrot.slane %v474, 1
    %v476 = vadd.f32 %v474, %v475
    %v477 = vmul.f32 %v476, 0.0078125
    %v478 = vmul.f32 %v439, %v439
    %v479 = vsub.f32 %v477, %v478
    %v480 = vadd.f32 %v479, 1e-05
    %v481 = vrsqrt.pop %v480
    %v482 = vmul.f32 %v416, %v481
    %v483 = vmul.f32 %v439, %v482
    %v484 = vsub.f32 %v417, %v483
    %v485 = vlaneseq
    %v486 = vshrl.u32 %v485, 7
    %v487 = vsub.s32 0, %v486
    %v488 = vrot.slane %v482, %v487
    %v489 = vmul.f32 %v241, %v488
    %v490 = vmul.f32 %v245, %v488
    %v491 = vmul.f32 %v251, %v488
    %v492 = vmul.f32 %v255, %v488
    %v493 = vmul.f32 %v261, %v488
    %v494 = vmul.f32 %v265, %v488
    %v495 = vmul.f32 %v271, %v488
    %v496 = vmul.f32 %v275, %v488
    %v497 = vmul.f32 %v281, %v488
    %v498 = vmul.f32 %v285, %v488
    %v499 = vmul.f32 %v291, %v488
    %v500 = vmul.f32 %v295, %v488
    %v501 = vmul.f32 %v301, %v488
    %v502 = vmul.f32 %v305, %v488
    %v503 = vmul.f32 %v311, %v488
    %v504 = vmul.f32 %v315, %v488
    %v505 = vlaneseq
    %v506 = vshrl.u32 %v505, 7
    %v507 = vsub.s32 0, %v506
    %v508 = vrot.slane %v484, %v507
    %v509 = vadd.f32 %v489, %v508
    %v510 = vadd.f32 %v490, %v508
    %v511 = vadd.f32 %v491, %v508
    %v512 = vadd.f32 %v492, %v508
    %v513 = vadd.f32 %v493, %v508
    %v514 = vadd.f32 %v494, %v508
    %v515 = vadd.f32 %v495, %v508
    %v516 = vadd.f32 %v496, %v508
    %v517 = vadd.f32 %v497, %v508
    %v518 = vadd.f32 %v498, %v508
    %v519 = vadd.f32 %v499, %v508
    %v520 = vadd.f32 %v500, %v508
    %v521 = vadd.f32 %v501, %v508
    %v522 = vadd.f32 %v502, %v508
    %v523 = vadd.f32 %v503, %v508
    %v524 = vadd.f32 %v504, %v508
    %v525 = vmax.f32 %v509, 0.0
    %v526 = vmax.f32 %v510, 0.0
    %v527 = vmax.f32 %v511, 0.0
    %v528 = vmax.f32 %v512, 0.0
    %v529 = vmax.f32 %v513, 0.0
    %v530 = vmax.f32 %v514, 0.0
    %v531 = vmax.f32 %v515, 0.0
    %v532 = vmax.f32 %v516, 0.0
    %v533 = vmax.f32 %v517, 0.0
    %v534 = vmax.f32 %v518, 0.0
    %v535 = vmax.f32 %v519, 0.0
    %v536 = vmax.f32 %v520, 0.0
    %v537 = vmax.f32 %v521, 0.0
    %v538 = vmax.f32 %v522, 0.0
    %v539 = vmax.f32 %v523, 0.0
    %v540 = vmax.f32 %v524, 0.0
    %541 = vst [vmem:[#allocation2] sm:$0xff] 0.0
    %542 = vst [vmem:[#allocation2 + $0x8] sm:$0x3] 0.0
    %543 = vst [vmem:[#allocation2 + $0xa0] sm:$0xff] 0.0
    %544 = vst [vmem:[#allocation2 + $0xa8] sm:$0x3] 0.0
    %s545 = scalar_lea.vmem [#allocation2], 144
    %546 = vst [vmem:[%s545] sm:$0xff] 0.0
    %547 = vst [vmem:[%s545 + $0x8] sm:$0x3] 0.0
    %548 = vst [vmem:[%s545 + $0xa0] sm:$0xff] 0.0
    %549 = vst [vmem:[%s545 + $0xa8] sm:$0x3] 0.0
    %550 = vst [vmem:[#allocation2] sm:$0x1] 0.0
    %551 = vst [vmem:[#allocation2 + $0x10] sm:$0x1] 0.0
    %552 = vst [vmem:[#allocation2 + $0x20] sm:$0x1] 0.0
    %553 = vst [vmem:[#allocation2 + $0x30] sm:$0x1] 0.0
    %554 = vst [vmem:[#allocation2 + $0x40] sm:$0x1] 0.0
    %555 = vst [vmem:[#allocation2 + $0x50] sm:$0x1] 0.0
    %556 = vst [vmem:[#allocation2 + $0x60] sm:$0x1] 0.0
    %557 = vst [vmem:[#allocation2 + $0x70] sm:$0x1] 0.0
    %558 = vst [vmem:[#allocation2 + $0x80] sm:$0x1] 0.0
    %559 = vst [vmem:[#allocation2 + $0x90] sm:$0x1] 0.0
    %560 = vst [vmem:[#allocation2 + $0xa0] sm:$0x1] 0.0
    %561 = vst [vmem:[#allocation2 + $0xb0] sm:$0x1] 0.0
    %562 = vst [vmem:[#allocation2 + $0xc0] sm:$0x1] 0.0
    %563 = vst [vmem:[#allocation2 + $0xd0] sm:$0x1] 0.0
    %564 = vst [vmem:[#allocation2 + $0xe0] sm:$0x1] 0.0
    %565 = vst [vmem:[#allocation2 + $0xf0] sm:$0x1] 0.0
    %566 = vst [vmem:[#allocation2 + $0x100] sm:$0x1] 0.0
    %567 = vst [vmem:[#allocation2 + $0x110] sm:$0x1] 0.0
    %568 = vst [vmem:[#allocation2 + $0x120] sm:$0x1] 0.0
    %569 = vst [vmem:[#allocation2 + $0x130] sm:$0x1] 0.0
    %570 = vst [vmem:[#allocation2 + $0x9] sm:$0x1] 0.0
    %571 = vst [vmem:[#allocation2 + $0x19] sm:$0x1] 0.0
    %572 = vst [vmem:[#allocation2 + $0x29] sm:$0x1] 0.0
    %573 = vst [vmem:[#allocation2 + $0x39] sm:$0x1] 0.0
    %574 = vst [vmem:[#allocation2 + $0x49] sm:$0x1] 0.0
    %575 = vst [vmem:[#allocation2 + $0x59] sm:$0x1] 0.0
    %576 = vst [vmem:[#allocation2 + $0x69] sm:$0x1] 0.0
    %577 = vst [vmem:[#allocation2 + $0x79] sm:$0x1] 0.0
    %578 = vst [vmem:[#allocation2 + $0x89] sm:$0x1] 0.0
    %579 = vst [vmem:[#allocation2 + $0x99] sm:$0x1] 0.0
    %580 = vst [vmem:[#allocation2 + $0xa9] sm:$0x1] 0.0
    %581 = vst [vmem:[#allocation2 + $0xb9] sm:$0x1] 0.0
    %582 = vst [vmem:[#allocation2 + $0xc9] sm:$0x1] 0.0
    %583 = vst [vmem:[#allocation2 + $0xd9] sm:$0x1] 0.0
    %584 = vst [vmem:[#allocation2 + $0xe9] sm:$0x1] 0.0
    %585 = vst [vmem:[#allocation2 + $0xf9] sm:$0x1] 0.0
    %586 = vst [vmem:[#allocation2 + $0x109] sm:$0x1] 0.0
    %587 = vst [vmem:[#allocation2 + $0x119] sm:$0x1] 0.0
    %588 = vst [vmem:[#allocation2 + $0x129] sm:$0x1] 0.0
    %589 = vst [vmem:[#allocation2 + $0x139] sm:$0x1] 0.0
    %s590 = scalar_lea.vmem [#allocation2], 16
    %591 = vst [vmem:[%s590 + $0x1] sm:$0xff] %v525
    %592 = vst [vmem:[%s590 + $0x11] sm:$0xff] %v526
    %593 = vst [vmem:[%s590 + $0x21] sm:$0xff] %v527
    %594 = vst [vmem:[%s590 + $0x31] sm:$0xff] %v528
    %595 = vst [vmem:[%s590 + $0x41] sm:$0xff] %v529
    %596 = vst [vmem:[%s590 + $0x51] sm:$0xff] %v530
    %597 = vst [vmem:[%s590 + $0x61] sm:$0xff] %v531
    %598 = vst [vmem:[%s590 + $0x71] sm:$0xff] %v532
    %599 = vst [vmem:[%s590 + $0xa1] sm:$0xff] %v533
    %600 = vst [vmem:[%s590 + $0xb1] sm:$0xff] %v534
    %601 = vst [vmem:[%s590 + $0xc1] sm:$0xff] %v535
    %602 = vst [vmem:[%s590 + $0xd1] sm:$0xff] %v536
    %603 = vst [vmem:[%s590 + $0xe1] sm:$0xff] %v537
    %604 = vst [vmem:[%s590 + $0xf1] sm:$0xff] %v538
    %605 = vst [vmem:[%s590 + $0x101] sm:$0xff] %v539
    %606 = vst [vmem:[%s590 + $0x111] sm:$0xff] %v540
    %v607 = vld [vmem:[#allocation2] sm:$0xff]
    %v608 = vld [vmem:[#allocation2 + $0x10] sm:$0xff]
    %v609 = vld [vmem:[#allocation2 + $0x20] sm:$0xff]
    %v610 = vld [vmem:[#allocation2 + $0x30] sm:$0xff]
    %v611 = vld [vmem:[#allocation2 + $0x40] sm:$0xff]
    %v612 = vld [vmem:[#allocation2 + $0x50] sm:$0xff]
    %v613 = vld [vmem:[#allocation2 + $0x60] sm:$0xff]
    %v614 = vld [vmem:[#allocation2 + $0x70] sm:$0xff]
    %v615 = vld [vmem:[#allocation2 + $0xa0] sm:$0xff]
    %v616 = vld [vmem:[#allocation2 + $0xb0] sm:$0xff]
    %v617 = vld [vmem:[#allocation2 + $0xc0] sm:$0xff]
    %v618 = vld [vmem:[#allocation2 + $0xd0] sm:$0xff]
    %v619 = vld [vmem:[#allocation2 + $0xe0] sm:$0xff]
    %v620 = vld [vmem:[#allocation2 + $0xf0] sm:$0xff]
    %v621 = vld [vmem:[#allocation2 + $0x100] sm:$0xff]
    %v622 = vld [vmem:[#allocation2 + $0x110] sm:$0xff]
    %v623 = vld [vmem:[#allocation2 + $0x1] sm:$0xff]
    %v624 = vld [vmem:[#allocation2 + $0x11] sm:$0xff]
    %v625 = vld [vmem:[#allocation2 + $0x21] sm:$0xff]
    %v626 = vld [vmem:[#allocation2 + $0x31] sm:$0xff]
    %v627 = vld [vmem:[#allocation2 + $0x41] sm:$0xff]
    %v628 = vld [vmem:[#allocation2 + $0x51] sm:$0xff]
    %v629 = vld [vmem:[#allocation2 + $0x61] sm:$0xff]
    %v630 = vld [vmem:[#allocation2 + $0x71] sm:$0xff]
    %v631 = vld [vmem:[#allocation2 + $0xa1] sm:$0xff]
    %v632 = vld [vmem:[#allocation2 + $0xb1] sm:$0xff]
    %v633 = vld [vmem:[#allocation2 + $0xc1] sm:$0xff]
    %v634 = vld [vmem:[#allocation2 + $0xd1] sm:$0xff]
    %v635 = vld [vmem:[#allocation2 + $0xe1] sm:$0xff]
    %v636 = vld [vmem:[#allocation2 + $0xf1] sm:$0xff]
    %v637 = vld [vmem:[#allocation2 + $0x101] sm:$0xff]
    %v638 = vld [vmem:[#allocation2 + $0x111] sm:$0xff]
    %v639 = vld [vmem:[#allocation2 + $0x2] sm:$0xff]
    %v640 = vld [vmem:[#allocation2 + $0x12] sm:$0xff]
    %v641 = vld [vmem:[#allocation2 + $0x22] sm:$0xff]
    %v642 = vld [vmem:[#allocation2 + $0x32] sm:$0xff]
    %v643 = vld [vmem:[#allocation2 + $0x42] sm:$0xff]
    %v644 = vld [vmem:[#allocation2 + $0x52] sm:$0xff]
    %v645 = vld [vmem:[#allocation2 + $0x62] sm:$0xff]
    %v646 = vld [vmem:[#allocation2 + $0x72] sm:$0xff]
    %v647 = vld [vmem:[#allocation2 + $0xa2] sm:$0xff]
    %v648 = vld [vmem:[#allocation2 + $0xb2] sm:$0xff]
    %v649 = vld [vmem:[#allocation2 + $0xc2] sm:$0xff]
    %v650 = vld [vmem:[#allocation2 + $0xd2] sm:$0xff]
    %v651 = vld [vmem:[#allocation2 + $0xe2] sm:$0xff]
    %v652 = vld [vmem:[#allocation2 + $0xf2] sm:$0xff]
    %v653 = vld [vmem:[#allocation2 + $0x102] sm:$0xff]
    %v654 = vld [vmem:[#allocation2 + $0x112] sm:$0xff]
    %v655 = vld [vmem:[%s590] sm:$0xff]
    %v656 = vld [vmem:[%s590 + $0x10] sm:$0xff]
    %v657 = vld [vmem:[%s590 + $0x20] sm:$0xff]
    %v658 = vld [vmem:[%s590 + $0x30] sm:$0xff]
    %v659 = vld [vmem:[%s590 + $0x40] sm:$0xff]
    %v660 = vld [vmem:[%s590 + $0x50] sm:$0xff]
    %v661 = vld [vmem:[%s590 + $0x60] sm:$0xff]
    %v662 = vld [vmem:[%s590 + $0x70] sm:$0xff]
    %v663 = vld [vmem:[%s590 + $0xa0] sm:$0xff]
    %v664 = vld [vmem:[%s590 + $0xb0] sm:$0xff]
    %v665 = vld [vmem:[%s590 + $0xc0] sm:$0xff]
    %v666 = vld [vmem:[%s590 + $0xd0] sm:$0xff]
    %v667 = vld [vmem:[%s590 + $0xe0] sm:$0xff]
    %v668 = vld [vmem:[%s590 + $0xf0] sm:$0xff]
    %v669 = vld [vmem:[%s590 + $0x100] sm:$0xff]
    %v670 = vld [vmem:[%s590 + $0x110] sm:$0xff]
    %v671 = vld [vmem:[%s590 + $0x1] sm:$0xff]
    %v672 = vld [vmem:[%s590 + $0x11] sm:$0xff]
    %v673 = vld [vmem:[%s590 + $0x21] sm:$0xff]
    %v674 = vld [vmem:[%s590 + $0x31] sm:$0xff]
    %v675 = vld [vmem:[%s590 + $0x41] sm:$0xff]
    %v676 = vld [vmem:[%s590 + $0x51] sm:$0xff]
    %v677 = vld [vmem:[%s590 + $0x61] sm:$0xff]
    %v678 = vld [vmem:[%s590 + $0x71] sm:$0xff]
    %v679 = vld [vmem:[%s590 + $0xa1] sm:$0xff]
    %v680 = vld [vmem:[%s590 + $0xb1] sm:$0xff]
    %v681 = vld [vmem:[%s590 + $0xc1] sm:$0xff]
    %v682 = vld [vmem:[%s590 + $0xd1] sm:$0xff]
    %v683 = vld [vmem:[%s590 + $0xe1] sm:$0xff]
    %v684 = vld [vmem:[%s590 + $0xf1] sm:$0xff]
    %v685 = vld [vmem:[%s590 + $0x101] sm:$0xff]
    %v686 = vld [vmem:[%s590 + $0x111] sm:$0xff]
    %v687 = vld [vmem:[%s590 + $0x2] sm:$0xff]
    %v688 = vld [vmem:[%s590 + $0x12] sm:$0xff]
    %v689 = vld [vmem:[%s590 + $0x22] sm:$0xff]
    %v690 = vld [vmem:[%s590 + $0x32] sm:$0xff]
    %v691 = vld [vmem:[%s590 + $0x42] sm:$0xff]
    %v692 = vld [vmem:[%s590 + $0x52] sm:$0xff]
    %v693 = vld [vmem:[%s590 + $0x62] sm:$0xff]
    %v694 = vld [vmem:[%s590 + $0x72] sm:$0xff]
    %v695 = vld [vmem:[%s590 + $0xa2] sm:$0xff]
    %v696 = vld [vmem:[%s590 + $0xb2] sm:$0xff]
    %v697 = vld [vmem:[%s590 + $0xc2] sm:$0xff]
    %v698 = vld [vmem:[%s590 + $0xd2] sm:$0xff]
    %v699 = vld [vmem:[%s590 + $0xe2] sm:$0xff]
    %v700 = vld [vmem:[%s590 + $0xf2] sm:$0xff]
    %v701 = vld [vmem:[%s590 + $0x102] sm:$0xff]
    %v702 = vld [vmem:[%s590 + $0x112] sm:$0xff]
    %s703 = scalar_lea.vmem [#allocation2], 32
    %v704 = vld [vmem:[%s703] sm:$0xff]
    %v705 = vld [vmem:[%s703 + $0x10] sm:$0xff]
    %v706 = vld [vmem:[%s703 + $0x20] sm:$0xff]
    %v707 = vld [vmem:[%s703 + $0x30] sm:$0xff]
    %v708 = vld [vmem:[%s703 + $0x40] sm:$0xff]
    %v709 = vld [vmem:[%s703 + $0x50] sm:$0xff]
    %v710 = vld [vmem:[%s703 + $0x60] sm:$0xff]
    %v711 = vld [vmem:[%s703 + $0x70] sm:$0xff]
    %v712 = vld [vmem:[%s703 + $0xa0] sm:$0xff]
    %v713 = vld [vmem:[%s703 + $0xb0] sm:$0xff]
    %v714 = vld [vmem:[%s703 + $0xc0] sm:$0xff]
    %v715 = vld [vmem:[%s703 + $0xd0] sm:$0xff]
    %v716 = vld [vmem:[%s703 + $0xe0] sm:$0xff]
    %v717 = vld [vmem:[%s703 + $0xf0] sm:$0xff]
    %v718 = vld [vmem:[%s703 + $0x100] sm:$0xff]
    %v719 = vld [vmem:[%s703 + $0x110] sm:$0xff]
    %v720 = vld [vmem:[%s703 + $0x1] sm:$0xff]
    %v721 = vld [vmem:[%s703 + $0x11] sm:$0xff]
    %v722 = vld [vmem:[%s703 + $0x21] sm:$0xff]
    %v723 = vld [vmem:[%s703 + $0x31] sm:$0xff]
    %v724 = vld [vmem:[%s703 + $0x41] sm:$0xff]
    %v725 = vld [vmem:[%s703 + $0x51] sm:$0xff]
    %v726 = vld [vmem:[%s703 + $0x61] sm:$0xff]
    %v727 = vld [vmem:[%s703 + $0x71] sm:$0xff]
    %v728 = vld [vmem:[%s703 + $0xa1] sm:$0xff]
    %v729 = vld [vmem:[%s703 + $0xb1] sm:$0xff]
    %v730 = vld [vmem:[%s703 + $0xc1] sm:$0xff]
    %v731 = vld [vmem:[%s703 + $0xd1] sm:$0xff]
    %v732 = vld [vmem:[%s703 + $0xe1] sm:$0xff]
    %v733 = vld [vmem:[%s703 + $0xf1] sm:$0xff]
    %v734 = vld [vmem:[%s703 + $0x101] sm:$0xff]
    %v735 = vld [vmem:[%s703 + $0x111] sm:$0xff]
    %v736 = vld [vmem:[%s703 + $0x2] sm:$0xff]
    %v737 = vld [vmem:[%s703 + $0x12] sm:$0xff]
    %v738 = vld [vmem:[%s703 + $0x22] sm:$0xff]
    %v739 = vld [vmem:[%s703 + $0x32] sm:$0xff]
    %v740 = vld [vmem:[%s703 + $0x42] sm:$0xff]
    %v741 = vld [vmem:[%s703 + $0x52] sm:$0xff]
    %v742 = vld [vmem:[%s703 + $0x62] sm:$0xff]
    %v743 = vld [vmem:[%s703 + $0x72] sm:$0xff]
    %v744 = vld [vmem:[%s703 + $0xa2] sm:$0xff]
    %v745 = vld [vmem:[%s703 + $0xb2] sm:$0xff]
    %v746 = vld [vmem:[%s703 + $0xc2] sm:$0xff]
    %v747 = vld [vmem:[%s703 + $0xd2] sm:$0xff]
    %v748 = vld [vmem:[%s703 + $0xe2] sm:$0xff]
    %v749 = vld [vmem:[%s703 + $0xf2] sm:$0xff]
    %v750 = vld [vmem:[%s703 + $0x102] sm:$0xff]
    %v751 = vld [vmem:[%s703 + $0x112] sm:$0xff]
    %v752 = vpack.c.bf16 %v608, %v607
    %v753 = vpack.c.bf16 %v624, %v623
    %v754 = vpack.c.bf16 %v640, %v639
    %v755 = vpack.c.bf16 %v656, %v655
    %v756 = vpack.c.bf16 %v672, %v671
    %v757 = vpack.c.bf16 %v688, %v687
    %v758 = vpack.c.bf16 %v705, %v704
    %v759 = vpack.c.bf16 %v721, %v720
    %v760 = vpack.c.bf16 %v737, %v736
    %v761 = vpack.c.bf16 %v610, %v609
    %v762 = vpack.c.bf16 %v626, %v625
    %v763 = vpack.c.bf16 %v642, %v641
    %v764 = vpack.c.bf16 %v658, %v657
    %v765 = vpack.c.bf16 %v674, %v673
    %v766 = vpack.c.bf16 %v690, %v689
    %v767 = vpack.c.bf16 %v707, %v706
    %v768 = vpack.c.bf16 %v723, %v722
    %v769 = vpack.c.bf16 %v739, %v738
    %v770 = vpack.c.bf16 %v612, %v611
    %v771 = vpack.c.bf16 %v628, %v627
    %v772 = vpack.c.bf16 %v644, %v643
    %v773 = vpack.c.bf16 %v660, %v659
    %v774 = vpack.c.bf16 %v676, %v675
    %v775 = vpack.c.bf16 %v692, %v691
    %v776 = vpack.c.bf16 %v709, %v708
    %v777 = vpack.c.bf16 %v725, %v724
    %v778 = vpack.c.bf16 %v741, %v740
    %v779 = vpack.c.bf16 %v614, %v613
    %v780 = vpack.c.bf16 %v630, %v629
    %v781 = vpack.c.bf16 %v646, %v645
    %v782 = vpack.c.bf16 %v662, %v661
    %v783 = vpack.c.bf16 %v678, %v677
    %v784 = vpack.c.bf16 %v694, %v693
    %v785 = vpack.c.bf16 %v711, %v710
    %v786 = vpack.c.bf16 %v727, %v726
    %v787 = vpack.c.bf16 %v743, %v742
    %v788 = vpack.c.bf16 %v616, %v615
    %v789 = vpack.c.bf16 %v632, %v631
    %v790 = vpack.c.bf16 %v648, %v647
    %v791 = vpack.c.bf16 %v664, %v663
    %v792 = vpack.c.bf16 %v680, %v679
    %v793 = vpack.c.bf16 %v696, %v695
    %v794 = vpack.c.bf16 %v713, %v712
    %v795 = vpack.c.bf16 %v729, %v728
    %v796 = vpack.c.bf16 %v745, %v744
    %v797 = vpack.c.bf16 %v618, %v617
    %v798 = vpack.c.bf16 %v634, %v633
    %v799 = vpack.c.bf16 %v650, %v649
    %v800 = vpack.c.bf16 %v666, %v665
    %v801 = vpack.c.bf16 %v682, %v681
    %v802 = vpack.c.bf16 %v698, %v697
    %v803 = vpack.c.bf16 %v715, %v714
    %v804 = vpack.c.bf16 %v731, %v730
    %v805 = vpack.c.bf16 %v747, %v746
    %v806 = vpack.c.bf16 %v620, %v619
    %v807 = vpack.c.bf16 %v636, %v635
    %v808 = vpack.c.bf16 %v652, %v651
    %v809 = vpack.c.bf16 %v668, %v667
    %v810 = vpack.c.bf16 %v684, %v683
    %v811 = vpack.c.bf16 %v700, %v699
    %v812 = vpack.c.bf16 %v717, %v716
    %v813 = vpack.c.bf16 %v733, %v732
    %v814 = vpack.c.bf16 %v749, %v748
    %v815 = vpack.c.bf16 %v622, %v621
    %v816 = vpack.c.bf16 %v638, %v637
    %v817 = vpack.c.bf16 %v654, %v653
    %v818 = vpack.c.bf16 %v670, %v669
    %v819 = vpack.c.bf16 %v686, %v685
    %v820 = vpack.c.bf16 %v702, %v701
    %v821 = vpack.c.bf16 %v719, %v718
    %v822 = vpack.c.bf16 %v735, %v734
    %v823 = vpack.c.bf16 %v751, %v750
    %v824 = vld [vmem:[#allocation8] sm:$0xf]
    %v825 = vld [vmem:[#allocation8 + $0x4] sm:$0xf]
    %v826 = vld [vmem:[#allocation8 + $0x8] sm:$0xf]
    %v827 = vld [vmem:[#allocation8 + $0xc] sm:$0xf]
    %v828 = vld [vmem:[#allocation8 + $0x10] sm:$0xf]
    %v829 = vld [vmem:[#allocation8 + $0x14] sm:$0xf]
    %v830 = vld [vmem:[#allocation8 + $0x18] sm:$0xf]
    %v831 = vld [vmem:[#allocation8 + $0x1c] sm:$0xf]
    %v832 = vld [vmem:[#allocation8 + $0x20] sm:$0xf]
    %v833 = vld [vmem:[#allocation8 + $0x24] sm:$0xf]
    %v834 = vld [vmem:[#allocation8 + $0x28] sm:$0xf]
    %v835 = vld [vmem:[#allocation8 + $0x2c] sm:$0xf]
    %v836 = vld [vmem:[#allocation8 + $0x30] sm:$0xf]
    %v837 = vld [vmem:[#allocation8 + $0x34] sm:$0xf]
    %v838 = vld [vmem:[#allocation8 + $0x38] sm:$0xf]
    %v839 = vld [vmem:[#allocation8 + $0x3c] sm:$0xf]
    %v840 = vld [vmem:[#allocation8 + $0x40] sm:$0xf]
    %v841 = vld [vmem:[#allocation8 + $0x44] sm:$0xf]
    %v842 = vld [vmem:[#allocation8 + $0x48] sm:$0xf]
    %v843 = vld [vmem:[#allocation8 + $0x4c] sm:$0xf]
    %v844 = vld [vmem:[#allocation8 + $0x50] sm:$0xf]
    %v845 = vld [vmem:[#allocation8 + $0x54] sm:$0xf]
    %v846 = vld [vmem:[#allocation8 + $0x58] sm:$0xf]
    %v847 = vld [vmem:[#allocation8 + $0x5c] sm:$0xf]
    %v848 = vld [vmem:[#allocation8 + $0x60] sm:$0xf]
    %v849 = vld [vmem:[#allocation8 + $0x64] sm:$0xf]
    %v850 = vld [vmem:[#allocation8 + $0x68] sm:$0xf]
    %v851 = vld [vmem:[#allocation8 + $0x6c] sm:$0xf]
    %v852 = vld [vmem:[#allocation8 + $0x70] sm:$0xf]
    %v853 = vld [vmem:[#allocation8 + $0x74] sm:$0xf]
    %v854 = vld [vmem:[#allocation8 + $0x78] sm:$0xf]
    %v855 = vld [vmem:[#allocation8 + $0x7c] sm:$0xf]
    %v856 = vld [vmem:[#allocation8 + $0x80] sm:$0xf]
    %v857 = vld [vmem:[#allocation8 + $0x84] sm:$0xf]
    %v858 = vld [vmem:[#allocation8 + $0x88] sm:$0xf]
    %v859 = vld [vmem:[#allocation8 + $0x8c] sm:$0xf]
    %v860 = vld [vmem:[#allocation8 + $0x90] sm:$0xf]
    %v861 = vld [vmem:[#allocation8 + $0x94] sm:$0xf]
    %v862 = vld [vmem:[#allocation8 + $0x98] sm:$0xf]
    %v863 = vld [vmem:[#allocation8 + $0x9c] sm:$0xf]
    %v864 = vld [vmem:[#allocation8 + $0xa0] sm:$0xf]
    %v865 = vld [vmem:[#allocation8 + $0xa4] sm:$0xf]
    %v866 = vld [vmem:[#allocation8 + $0xa8] sm:$0xf]
    %v867 = vld [vmem:[#allocation8 + $0xac] sm:$0xf]
    %v868 = vld [vmem:[#allocation8 + $0xb0] sm:$0xf]
    %v869 = vld [vmem:[#allocation8 + $0xb4] sm:$0xf]
    %v870 = vld [vmem:[#allocation8 + $0xb8] sm:$0xf]
    %v871 = vld [vmem:[#allocation8 + $0xbc] sm:$0xf]
    %v872 = vld [vmem:[#allocation8 + $0xc0] sm:$0xf]
    %v873 = vld [vmem:[#allocation8 + $0xc4] sm:$0xf]
    %v874 = vld [vmem:[#allocation8 + $0xc8] sm:$0xf]
    %v875 = vld [vmem:[#allocation8 + $0xcc] sm:$0xf]
    %v876 = vld [vmem:[#allocation8 + $0xd0] sm:$0xf]
    %v877 = vld [vmem:[#allocation8 + $0xd4] sm:$0xf]
    %v878 = vld [vmem:[#allocation8 + $0xd8] sm:$0xf]
    %v879 = vld [vmem:[#allocation8 + $0xdc] sm:$0xf]
    %v880 = vld [vmem:[#allocation8 + $0xe0] sm:$0xf]
    %v881 = vld [vmem:[#allocation8 + $0xe4] sm:$0xf]
    %v882 = vld [vmem:[#allocation8 + $0xe8] sm:$0xf]
    %v883 = vld [vmem:[#allocation8 + $0xec] sm:$0xf]
    %v884 = vld [vmem:[#allocation8 + $0xf0] sm:$0xf]
    %v885 = vld [vmem:[#allocation8 + $0xf4] sm:$0xf]
    %v886 = vld [vmem:[#allocation8 + $0xf8] sm:$0xf]
    %v887 = vld [vmem:[#allocation8 + $0xfc] sm:$0xf]
    %v888 = vld [vmem:[#allocation8 + $0x100] sm:$0xf]
    %v889 = vld [vmem:[#allocation8 + $0x104] sm:$0xf]
    %v890 = vld [vmem:[#allocation8 + $0x108] sm:$0xf]
    %v891 = vld [vmem:[#allocation8 + $0x10c] sm:$0xf]
    %v892 = vld [vmem:[#allocation8 + $0x110] sm:$0xf]
    %v893 = vld [vmem:[#allocation8 + $0x114] sm:$0xf]
    %v894 = vld [vmem:[#allocation8 + $0x118] sm:$0xf]
    %v895 = vld [vmem:[#allocation8 + $0x11c] sm:$0xf]
    %v896 = vld [vmem:[#allocation8 + $0x120] sm:$0xf]
    %v897 = vld [vmem:[#allocation8 + $0x124] sm:$0xf]
    %v898 = vld [vmem:[#allocation8 + $0x128] sm:$0xf]
    %v899 = vld [vmem:[#allocation8 + $0x12c] sm:$0xf]
    %v900 = vld [vmem:[#allocation8 + $0x130] sm:$0xf]
    %v901 = vld [vmem:[#allocation8 + $0x134] sm:$0xf]
    %v902 = vld [vmem:[#allocation8 + $0x138] sm:$0xf]
    %v903 = vld [vmem:[#allocation8 + $0x13c] sm:$0xf]
    %v904 = vld [vmem:[#allocation8 + $0x140] sm:$0xf]
    %v905 = vld [vmem:[#allocation8 + $0x144] sm:$0xf]
    %v906 = vld [vmem:[#allocation8 + $0x148] sm:$0xf]
    %v907 = vld [vmem:[#allocation8 + $0x14c] sm:$0xf]
    %v908 = vld [vmem:[#allocation8 + $0x150] sm:$0xf]
    %v909 = vld [vmem:[#allocation8 + $0x154] sm:$0xf]
    %v910 = vld [vmem:[#allocation8 + $0x158] sm:$0xf]
    %v911 = vld [vmem:[#allocation8 + $0x15c] sm:$0xf]
    %v912 = vld [vmem:[#allocation8 + $0x160] sm:$0xf]
    %v913 = vld [vmem:[#allocation8 + $0x164] sm:$0xf]
    %v914 = vld [vmem:[#allocation8 + $0x168] sm:$0xf]
    %v915 = vld [vmem:[#allocation8 + $0x16c] sm:$0xf]
    %v916 = vld [vmem:[#allocation8 + $0x170] sm:$0xf]
    %v917 = vld [vmem:[#allocation8 + $0x174] sm:$0xf]
    %v918 = vld [vmem:[#allocation8 + $0x178] sm:$0xf]
    %v919 = vld [vmem:[#allocation8 + $0x17c] sm:$0xf]
    %v920 = vld [vmem:[#allocation8 + $0x180] sm:$0xf]
    %v921 = vld [vmem:[#allocation8 + $0x184] sm:$0xf]
    %v922 = vld [vmem:[#allocation8 + $0x188] sm:$0xf]
    %v923 = vld [vmem:[#allocation8 + $0x18c] sm:$0xf]
    %v924 = vld [vmem:[#allocation8 + $0x190] sm:$0xf]
    %v925 = vld [vmem:[#allocation8 + $0x194] sm:$0xf]
    %v926 = vld [vmem:[#allocation8 + $0x198] sm:$0xf]
    %v927 = vld [vmem:[#allocation8 + $0x19c] sm:$0xf]
    %v928 = vld [vmem:[#allocation8 + $0x1a0] sm:$0xf]
    %v929 = vld [vmem:[#allocation8 + $0x1a4] sm:$0xf]
    %v930 = vld [vmem:[#allocation8 + $0x1a8] sm:$0xf]
    %v931 = vld [vmem:[#allocation8 + $0x1ac] sm:$0xf]
    %v932 = vld [vmem:[#allocation8 + $0x1b0] sm:$0xf]
    %v933 = vld [vmem:[#allocation8 + $0x1b4] sm:$0xf]
    %v934 = vld [vmem:[#allocation8 + $0x1b8] sm:$0xf]
    %v935 = vld [vmem:[#allocation8 + $0x1bc] sm:$0xf]
    %v936 = vld [vmem:[#allocation8 + $0x1c0] sm:$0xf]
    %v937 = vld [vmem:[#allocation8 + $0x1c4] sm:$0xf]
    %v938 = vld [vmem:[#allocation8 + $0x1c8] sm:$0xf]
    %v939 = vld [vmem:[#allocation8 + $0x1cc] sm:$0xf]
    %v940 = vld [vmem:[#allocation8 + $0x1d0] sm:$0xf]
    %v941 = vld [vmem:[#allocation8 + $0x1d4] sm:$0xf]
    %v942 = vld [vmem:[#allocation8 + $0x1d8] sm:$0xf]
    %v943 = vld [vmem:[#allocation8 + $0x1dc] sm:$0xf]
    %v944 = vld [vmem:[#allocation8 + $0x1e0] sm:$0xf]
    %v945 = vld [vmem:[#allocation8 + $0x1e4] sm:$0xf]
    %v946 = vld [vmem:[#allocation8 + $0x1e8] sm:$0xf]
    %v947 = vld [vmem:[#allocation8 + $0x1ec] sm:$0xf]
    %v948 = vld [vmem:[#allocation8 + $0x1f0] sm:$0xf]
    %v949 = vld [vmem:[#allocation8 + $0x1f4] sm:$0xf]
    %v950 = vld [vmem:[#allocation8 + $0x1f8] sm:$0xf]
    %v951 = vld [vmem:[#allocation8 + $0x1fc] sm:$0xf]
    %v952 = vld [vmem:[#allocation8 + $0x200] sm:$0xf]
    %v953 = vld [vmem:[#allocation8 + $0x204] sm:$0xf]
    %v954 = vld [vmem:[#allocation8 + $0x208] sm:$0xf]
    %v955 = vld [vmem:[#allocation8 + $0x20c] sm:$0xf]
    %v956 = vld [vmem:[#allocation8 + $0x210] sm:$0xf]
    %v957 = vld [vmem:[#allocation8 + $0x214] sm:$0xf]
    %v958 = vld [vmem:[#allocation8 + $0x218] sm:$0xf]
    %v959 = vld [vmem:[#allocation8 + $0x21c] sm:$0xf]
    %v960 = vld [vmem:[#allocation8 + $0x220] sm:$0xf]
    %v961 = vld [vmem:[#allocation8 + $0x224] sm:$0xf]
    %v962 = vld [vmem:[#allocation8 + $0x228] sm:$0xf]
    %v963 = vld [vmem:[#allocation8 + $0x22c] sm:$0xf]
    %v964 = vld [vmem:[#allocation8 + $0x230] sm:$0xf]
    %v965 = vld [vmem:[#allocation8 + $0x234] sm:$0xf]
    %v966 = vld [vmem:[#allocation8 + $0x238] sm:$0xf]
    %v967 = vld [vmem:[#allocation8 + $0x23c] sm:$0xf]
    %v1112 = vunpack.c.l.b16 %v824
    %v1113 = vunpack.c.l.b16 %v825
    %v1114 = vunpack.c.l.b16 %v826
    %v1115 = vunpack.c.l.b16 %v827
    %v1116 = vunpack.c.l.b16 %v828
    %v1117 = vunpack.c.l.b16 %v829
    %v1118 = vunpack.c.l.b16 %v830
    %v1119 = vunpack.c.l.b16 %v831
    %v1120 = vunpack.c.l.b16 %v832
    %v1121 = vunpack.c.l.b16 %v833
    %v1122 = vunpack.c.l.b16 %v834
    %v1123 = vunpack.c.l.b16 %v835
    %v1124 = vunpack.c.l.b16 %v836
    %v1125 = vunpack.c.l.b16 %v837
    %v1126 = vunpack.c.l.b16 %v838
    %v1127 = vunpack.c.l.b16 %v839
    %v1128 = vunpack.c.l.b16 %v840
    %v1129 = vunpack.c.l.b16 %v841
    %v1130 = vunpack.c.l.b16 %v842
    %v1131 = vunpack.c.l.b16 %v843
    %v1132 = vunpack.c.l.b16 %v844
    %v1133 = vunpack.c.l.b16 %v845
    %v1134 = vunpack.c.l.b16 %v846
    %v1135 = vunpack.c.l.b16 %v847
    %v1136 = vunpack.c.l.b16 %v848
    %v1137 = vunpack.c.l.b16 %v849
    %v1138 = vunpack.c.l.b16 %v850
    %v1139 = vunpack.c.l.b16 %v851
    %v1140 = vunpack.c.l.b16 %v852
    %v1141 = vunpack.c.l.b16 %v853
    %v1142 = vunpack.c.l.b16 %v854
    %v1143 = vunpack.c.l.b16 %v855
    %v1144 = vunpack.c.l.b16 %v856
    %v1145 = vunpack.c.l.b16 %v857
    %v1146 = vunpack.c.l.b16 %v858
    %v1147 = vunpack.c.l.b16 %v859
    %v1148 = vunpack.c.l.b16 %v860
    %v1149 = vunpack.c.l.b16 %v861
    %v1150 = vunpack.c.l.b16 %v862
    %v1151 = vunpack.c.l.b16 %v863
    %v1152 = vunpack.c.l.b16 %v864
    %v1153 = vunpack.c.l.b16 %v865
    %v1154 = vunpack.c.l.b16 %v866
    %v1155 = vunpack.c.l.b16 %v867
    %v1156 = vunpack.c.l.b16 %v868
    %v1157 = vunpack.c.l.b16 %v869
    %v1158 = vunpack.c.l.b16 %v870
    %v1159 = vunpack.c.l.b16 %v871
    %v1160 = vunpack.c.l.b16 %v872
    %v1161 = vunpack.c.l.b16 %v873
    %v1162 = vunpack.c.l.b16 %v874
    %v1163 = vunpack.c.l.b16 %v875
    %v1164 = vunpack.c.l.b16 %v876
    %v1165 = vunpack.c.l.b16 %v877
    %v1166 = vunpack.c.l.b16 %v878
    %v1167 = vunpack.c.l.b16 %v879
    %v1168 = vunpack.c.l.b16 %v880
    %v1169 = vunpack.c.l.b16 %v881
    %v1170 = vunpack.c.l.b16 %v882
    %v1171 = vunpack.c.l.b16 %v883
    %v1172 = vunpack.c.l.b16 %v884
    %v1173 = vunpack.c.l.b16 %v885
    %v1174 = vunpack.c.l.b16 %v886
    %v1175 = vunpack.c.l.b16 %v887
    %v1176 = vunpack.c.l.b16 %v888
    %v1177 = vunpack.c.l.b16 %v889
    %v1178 = vunpack.c.l.b16 %v890
    %v1179 = vunpack.c.l.b16 %v891
    %v1180 = vunpack.c.l.b16 %v892
    %v1181 = vunpack.c.l.b16 %v893
    %v1182 = vunpack.c.l.b16 %v894
    %v1183 = vunpack.c.l.b16 %v895
    %v1184 = vunpack.c.l.b16 %v896
    %v1185 = vunpack.c.l.b16 %v897
    %v1186 = vunpack.c.l.b16 %v898
    %v1187 = vunpack.c.l.b16 %v899
    %v1188 = vunpack.c.l.b16 %v900
    %v1189 = vunpack.c.l.b16 %v901
    %v1190 = vunpack.c.l.b16 %v902
    %v1191 = vunpack.c.l.b16 %v903
    %v1192 = vunpack.c.l.b16 %v904
    %v1193 = vunpack.c.l.b16 %v905
    %v1194 = vunpack.c.l.b16 %v906
    %v1195 = vunpack.c.l.b16 %v907
    %v1196 = vunpack.c.l.b16 %v908
    %v1197 = vunpack.c.l.b16 %v909
    %v1198 = vunpack.c.l.b16 %v910
    %v1199 = vunpack.c.l.b16 %v911
    %v1200 = vunpack.c.l.b16 %v912
    %v1201 = vunpack.c.l.b16 %v913
    %v1202 = vunpack.c.l.b16 %v914
    %v1203 = vunpack.c.l.b16 %v915
    %v1204 = vunpack.c.l.b16 %v916
    %v1205 = vunpack.c.l.b16 %v917
    %v1206 = vunpack.c.l.b16 %v918
    %v1207 = vunpack.c.l.b16 %v919
    %v1208 = vunpack.c.l.b16 %v920
    %v1209 = vunpack.c.l.b16 %v921
    %v1210 = vunpack.c.l.b16 %v922
    %v1211 = vunpack.c.l.b16 %v923
    %v1212 = vunpack.c.l.b16 %v924
    %v1213 = vunpack.c.l.b16 %v925
    %v1214 = vunpack.c.l.b16 %v926
    %v1215 = vunpack.c.l.b16 %v927
    %v1216 = vunpack.c.l.b16 %v928
    %v1217 = vunpack.c.l.b16 %v929
    %v1218 = vunpack.c.l.b16 %v930
    %v1219 = vunpack.c.l.b16 %v931
    %v1220 = vunpack.c.l.b16 %v932
    %v1221 = vunpack.c.l.b16 %v933
    %v1222 = vunpack.c.l.b16 %v934
    %v1223 = vunpack.c.l.b16 %v935
    %v1224 = vunpack.c.l.b16 %v936
    %v1225 = vunpack.c.l.b16 %v937
    %v1226 = vunpack.c.l.b16 %v938
    %v1227 = vunpack.c.l.b16 %v939
    %v1228 = vunpack.c.l.b16 %v940
    %v1229 = vunpack.c.l.b16 %v941
    %v1230 = vunpack.c.l.b16 %v942
    %v1231 = vunpack.c.l.b16 %v943
    %v1232 = vunpack.c.l.b16 %v944
    %v1233 = vunpack.c.l.b16 %v945
    %v1234 = vunpack.c.l.b16 %v946
    %v1235 = vunpack.c.l.b16 %v947
    %v1236 = vunpack.c.l.b16 %v948
    %v1237 = vunpack.c.l.b16 %v949
    %v1238 = vunpack.c.l.b16 %v950
    %v1239 = vunpack.c.l.b16 %v951
    %v1240 = vunpack.c.l.b16 %v952
    %v1241 = vunpack.c.l.b16 %v953
    %v1242 = vunpack.c.l.b16 %v954
    %v1243 = vunpack.c.l.b16 %v955
    %v1244 = vunpack.c.l.b16 %v956
    %v1245 = vunpack.c.l.b16 %v957
    %v1246 = vunpack.c.l.b16 %v958
    %v1247 = vunpack.c.l.b16 %v959
    %v1248 = vunpack.c.l.b16 %v960
    %v1249 = vunpack.c.l.b16 %v961
    %v1250 = vunpack.c.l.b16 %v962
    %v1251 = vunpack.c.l.b16 %v963
    %v1252 = vunpack.c.l.b16 %v964
    %v1253 = vunpack.c.l.b16 %v965
    %v1254 = vunpack.c.l.b16 %v966
    %v1255 = vunpack.c.l.b16 %v967
    %v1256 = vpack.c.b16 %v1113, %v1112
    %v1257 = vpack.c.b16 %v1115, %v1114
    %v1258 = vpack.c.b16 %v1117, %v1116
    %v1259 = vpack.c.b16 %v1119, %v1118
    %v1260 = vpack.c.b16 %v1121, %v1120
    %v1261 = vpack.c.b16 %v1123, %v1122
    %v1262 = vpack.c.b16 %v1125, %v1124
    %v1263 = vpack.c.b16 %v1127, %v1126
    %v1264 = vpack.c.b16 %v1129, %v1128
    %v1265 = vpack.c.b16 %v1131, %v1130
    %v1266 = vpack.c.b16 %v1133, %v1132
    %v1267 = vpack.c.b16 %v1135, %v1134
    %v1268 = vpack.c.b16 %v1137, %v1136
    %v1269 = vpack.c.b16 %v1139, %v1138
    %v1270 = vpack.c.b16 %v1141, %v1140
    %v1271 = vpack.c.b16 %v1143, %v1142
    %v1272 = vpack.c.b16 %v1145, %v1144
    %v1273 = vpack.c.b16 %v1147, %v1146
    %v1274 = vpack.c.b16 %v1149, %v1148
    %v1275 = vpack.c.b16 %v1151, %v1150
    %v1276 = vpack.c.b16 %v1153, %v1152
    %v1277 = vpack.c.b16 %v1155, %v1154
    %v1278 = vpack.c.b16 %v1157, %v1156
    %v1279 = vpack.c.b16 %v1159, %v1158
    %v1280 = vpack.c.b16 %v1161, %v1160
    %v1281 = vpack.c.b16 %v1163, %v1162
    %v1282 = vpack.c.b16 %v1165, %v1164
    %v1283 = vpack.c.b16 %v1167, %v1166
    %v1284 = vpack.c.b16 %v1169, %v1168
    %v1285 = vpack.c.b16 %v1171, %v1170
    %v1286 = vpack.c.b16 %v1173, %v1172
    %v1287 = vpack.c.b16 %v1175, %v1174
    %v1288 = vpack.c.b16 %v1177, %v1176
    %v1289 = vpack.c.b16 %v1179, %v1178
    %v1290 = vpack.c.b16 %v1181, %v1180
    %v1291 = vpack.c.b16 %v1183, %v1182
    %v1292 = vpack.c.b16 %v1185, %v1184
    %v1293 = vpack.c.b16 %v1187, %v1186
    %v1294 = vpack.c.b16 %v1189, %v1188
    %v1295 = vpack.c.b16 %v1191, %v1190
    %v1296 = vpack.c.b16 %v1193, %v1192
    %v1297 = vpack.c.b16 %v1195, %v1194
    %v1298 = vpack.c.b16 %v1197, %v1196
    %v1299 = vpack.c.b16 %v1199, %v1198
    %v1300 = vpack.c.b16 %v1201, %v1200
    %v1301 = vpack.c.b16 %v1203, %v1202
    %v1302 = vpack.c.b16 %v1205, %v1204
    %v1303 = vpack.c.b16 %v1207, %v1206
    %v1304 = vpack.c.b16 %v1209, %v1208
    %v1305 = vpack.c.b16 %v1211, %v1210
    %v1306 = vpack.c.b16 %v1213, %v1212
    %v1307 = vpack.c.b16 %v1215, %v1214
    %v1308 = vpack.c.b16 %v1217, %v1216
    %v1309 = vpack.c.b16 %v1219, %v1218
    %v1310 = vpack.c.b16 %v1221, %v1220
    %v1311 = vpack.c.b16 %v1223, %v1222
    %v1312 = vpack.c.b16 %v1225, %v1224
    %v1313 = vpack.c.b16 %v1227, %v1226
    %v1314 = vpack.c.b16 %v1229, %v1228
    %v1315 = vpack.c.b16 %v1231, %v1230
    %v1316 = vpack.c.b16 %v1233, %v1232
    %v1317 = vpack.c.b16 %v1235, %v1234
    %v1318 = vpack.c.b16 %v1237, %v1236
    %v1319 = vpack.c.b16 %v1239, %v1238
    %v1320 = vpack.c.b16 %v1241, %v1240
    %v1321 = vpack.c.b16 %v1243, %v1242
    %v1322 = vpack.c.b16 %v1245, %v1244
    %v1323 = vpack.c.b16 %v1247, %v1246
    %v1324 = vpack.c.b16 %v1249, %v1248
    %v1325 = vpack.c.b16 %v1251, %v1250
    %v1326 = vpack.c.b16 %v1253, %v1252
    %v1327 = vpack.c.b16 %v1255, %v1254
    %1400 = vmatprep.subr.bf16.mxu0 0
    %1401 = vmatpush1.bf16.msra.mxu0 %v1256
    %1402 = vmatprep.subr.bf16.mxu0 0
    %1403 = vmatpush1.bf16.msra.mxu0 %v1257
    %1404 = vmatprep.subr.bf16.mxu0 0
    %1405 = vmatpush1.bf16.msra.mxu0 %v1258
    %1406 = vmatprep.subr.bf16.mxu0 0
    %1407 = vmatpush1.bf16.msra.mxu0 %v1259
    %1408 = vmatprep.subr.bf16.mxu0 0
    %1409 = vmatpush1.bf16.msra.mxu0 %v1260
    %1410 = vmatprep.subr.bf16.mxu0 0
    %1411 = vmatpush1.bf16.msra.mxu0 %v1261
    %1412 = vmatprep.subr.bf16.mxu0 0
    %1413 = vmatpush1.bf16.msra.mxu0 %v1262
    %1414 = vmatprep.subr.bf16.mxu0 0
    %1415 = vmatpush1.bf16.msra.mxu0 %v1263
    %1416 = vmatprep.subr.bf16.mxu0 0
    %1417 = vmatpush1.bf16.msra.mxu0 %v1264
    %1418 = vmatprep.subr.bf16.mxu0 0
    %1419 = vmatpush1.bf16.msra.mxu0 %v1265
    %1420 = vmatprep.subr.bf16.mxu0 0
    %1421 = vmatpush1.bf16.msra.mxu0 %v1266
    %1422 = vmatprep.subr.bf16.mxu0 0
    %1423 = vmatpush1.bf16.msra.mxu0 %v1267
    %1424 = vmatprep.subr.bf16.mxu0 0
    %1425 = vmatpush1.bf16.msra.mxu0 %v1268
    %1426 = vmatprep.subr.bf16.mxu0 0
    %1427 = vmatpush1.bf16.msra.mxu0 %v1269
    %1428 = vmatprep.subr.bf16.mxu0 0
    %1429 = vmatpush1.bf16.msra.mxu0 %v1270
    %1430 = vmatprep.subr.bf16.mxu0 0
    %1431 = vmatpush1.bf16.msra.mxu0 %v1271
    %1432 = vmatprep.mubr.bf16.mxu0 %v753
    %1433 = vmatmul.mubr.bf16.gmra.mrb[0].mxu0 %v752
    %v1434 = vpop.f32.mrb[0].mxu0
    %v1435 = vadd.f32 0.0, %v1434
    %v1436 = vpop.f32.mrb[0].mxu0
    %v1437 = vpop.f32.mrb[0].mxu0
    %v1438 = vadd.f32 0.0, %v1437
    %v1439 = vpop.f32.mrb[0].mxu0
    %1440 = vmatprep.mubr.bf16.mxu0 %v762
    %1441 = vmatmul.mubr.bf16.gmra.mrb[0].mxu0 %v761
    %v1442 = vpop.f32.mrb[0].mxu0
    %v1443 = vadd.f32 0.0, %v1442
    %v1444 = vpop.f32.mrb[0].mxu0
    %v1445 = vpop.f32.mrb[0].mxu0
    %v1446 = vadd.f32 0.0, %v1445
    %v1447 = vpop.f32.mrb[0].mxu0
    %1448 = vmatprep.mubr.bf16.mxu0 %v771
    %1449 = vmatmul.mubr.bf16.gmra.mrb[0].mxu0 %v770
    %v1450 = vpop.f32.mrb[0].mxu0
    %v1451 = vadd.f32 0.0, %v1450
    %v1452 = vpop.f32.mrb[0].mxu0
    %v1453 = vpop.f32.mrb[0].mxu0
    %v1454 = vadd.f32 0.0, %v1453
    %v1455 = vpop.f32.mrb[0].mxu0
    %1456 = vmatprep.mubr.bf16.mxu0 %v780
    %1457 = vmatmul.mubr.bf16.gmra.mrb[0].mxu0 %v779
    %v1458 = vpop.f32.mrb[0].mxu0
    %v1459 = vadd.f32 0.0, %v1458
    %v1460 = vpop.f32.mrb[0].mxu0
    %v1461 = vpop.f32.mrb[0].mxu0
    %v1462 = vadd.f32 0.0, %v1461
    %v1463 = vpop.f32.mrb[0].mxu0
    %1464 = vmatprep.mubr.bf16.mxu0 %v789
    %1465 = vmatmul.mubr.bf16.gmra.mrb[0].mxu0 %v788
    %v1466 = vpop.f32.mrb[0].mxu0
    %v1467 = vadd.f32 0.0, %v1466
    %v1468 = vpop.f32.mrb[0].mxu0
    %v1469 = vpop.f32.mrb[0].mxu0
    %v1470 = vadd.f32 0.0, %v1469
    %v1471 = vpop.f32.mrb[0].mxu0
    %1472 = vmatprep.mubr.bf16.mxu0 %v798
    %1473 = vmatmul.mubr.bf16.gmra.mrb[0].mxu0 %v797
    %v1474 = vpop.f32.mrb[0].mxu0
    %v1475 = vadd.f32 0.0, %v1474
    %v1476 = vpop.f32.mrb[0].mxu0
    %v1477 = vpop.f32.mrb[0].mxu0
    %v1478 = vadd.f32 0.0, %v1477
    %v1479 = vpop.f32.mrb[0].mxu0
    %1480 = vmatprep.mubr.bf16.mxu0 %v807
    %1481 = vmatmul.mubr.bf16.gmra.mrb[0].mxu0 %v806
    %v1482 = vpop.f32.mrb[0].mxu0
    %v1483 = vadd.f32 0.0, %v1482
    %v1484 = vpop.f32.mrb[0].mxu0
    %v1485 = vpop.f32.mrb[0].mxu0
    %v1486 = vadd.f32 0.0, %v1485
    %v1487 = vpop.f32.mrb[0].mxu0
    %1488 = vmatprep.mubr.bf16.mxu0 %v816
    %1489 = vmatmul.mubr.bf16.gmra.mrb[0].mxu0 %v815
    %v1490 = vpop.f32.mrb[0].mxu0
    %v1491 = vadd.f32 0.0, %v1490
    %v1492 = vpop.f32.mrb[0].mxu0
    %v1493 = vpop.f32.mrb[0].mxu0
    %v1494 = vadd.f32 0.0, %v1493
    %v1495 = vpop.f32.mrb[0].mxu0
    %1496 = vdwg.mxu0
    %1497 = vmatprep.subr.bf16.mxu0 0
    %1498 = vmatpush1.bf16.msra.mxu0 %v1272
    %1499 = vmatprep.subr.bf16.mxu0 0
    %1500 = vmatpush1.bf16.msra.mxu0 %v1273
    %1501 = vmatprep.subr.bf16.mxu0 0
    %1502 = vmatpush1.bf16.msra.mxu0 %v1274
    %1503 = vmatprep.subr.bf16.mxu0 0
    %1504 = vmatpush1.bf16.msra.mxu0 %v1275
    %1505 = vmatprep.subr.bf16.mxu0 0
    %1506 = vmatpush1.bf16.msra.mxu0 %v1276
    %1507 = vmatprep.subr.bf16.mxu0 0
    %1508 = vmatpush1.bf16.msra.mxu0 %v1277
    %1509 = vmatprep.subr.bf16.mxu0 0
    %1510 = vmatpush1.bf16.msra.mxu0 %v1278
    %1511 = vmatprep.subr.bf16.mxu0 0
    %1512 = vmatpush1.bf16.msra.mxu0 %v1279
    %1513 = vmatprep.subr.bf16.mxu0 0
    %1514 = vmatpush1.bf16.msra.mxu0 %v1280
    %1515 = vmatprep.subr.bf16.mxu0 0
    %1516 = vmatpush1.bf16.msra.mxu0 %v1281
    %1517 = vmatprep.subr.bf16.mxu0 0
    %1518 = vmatpush1.bf16.msra.mxu0 %v1282
    %1519 = vmatprep.subr.bf16.mxu0 0
    %1520 = vmatpush1.bf16.msra.mxu0 %v1283
    %1521 = vmatprep.subr.bf16.mxu0 0
    %1522 = vmatpush1.bf16.msra.mxu0 %v1284
    %1523 = vmatprep.subr.bf16.mxu0 0
    %1524 = vmatpush1.bf16.msra.mxu0 %v1285
    %1525 = vmatprep.subr.bf16.mxu0 0
    %1526 = vmatpush1.bf16.msra.mxu0 %v1286
    %1527 = vmatprep.subr.bf16.mxu0 0
    %1528 = vmatpush1.bf16.msra.mxu0 %v1287
    %1529 = vmatprep.mubr.bf16.mxu0 %v755
    %1530 = vmatmul.mubr.bf16.gmra.mrb[0].mxu0 %v754
    %v1531 = vpop.f32.mrb[0].mxu0
    %v1532 = vadd.f32 %v1435, %v1531
    %v1533 = vpop.f32.mrb[0].mxu0
    %v1534 = vpop.f32.mrb[0].mxu0
    %v1535 = vadd.f32 %v1438, %v1534
    %v1536 = vpop.f32.mrb[0].mxu0
    %1537 = vmatprep.mubr.bf16.mxu0 %v764
    %1538 = vmatmul.mubr.bf16.gmra.mrb[0].mxu0 %v763
    %v1539 = vpop.f32.mrb[0].mxu0
    %v1540 = vadd.f32 %v1443, %v1539
    %v1541 = vpop.f32.mrb[0].mxu0
    %v1542 = vpop.f32.mrb[0].mxu0
    %v1543 = vadd.f32 %v1446, %v1542
    %v1544 = vpop.f32.mrb[0].mxu0
    %1545 = vmatprep.mubr.bf16.mxu0 %v773
    %1546 = vmatmul.mubr.bf16.gmra.mrb[0].mxu0 %v772
    %v1547 = vpop.f32.mrb[0].mxu0
    %v1548 = vadd.f32 %v1451, %v1547
    %v1549 = vpop.f32.mrb[0].mxu0
    %v1550 = vpop.f32.mrb[0].mxu0
    %v1551 = vadd.f32 %v1454, %v1550
    %v1552 = vpop.f32.mrb[0].mxu0
    %1553 = vmatprep.mubr.bf16.mxu0 %v782
    %1554 = vmatmul.mubr.bf16.gmra.mrb[0].mxu0 %v781
    %v1555 = vpop.f32.mrb[0].mxu0
    %v1556 = vadd.f32 %v1459, %v1555
    %v1557 = vpop.f32.mrb[0].mxu0
    %v1558 = vpop.f32.mrb[0].mxu0
    %v1559 = vadd.f32 %v1462, %v1558
    %v1560 = vpop.f32.mrb[0].mxu0
    %1561 = vmatprep.mubr.bf16.mxu0 %v791
    %1562 = vmatmul.mubr.bf16.gmra.mrb[0].mxu0 %v790
    %v1563 = vpop.f32.mrb[0].mxu0
    %v1564 = vadd.f32 %v1467, %v1563
    %v1565 = vpop.f32.mrb[0].mxu0
    %v1566 = vpop.f32.mrb[0].mxu0
    %v1567 = vadd.f32 %v1470, %v1566
    %v1568 = vpop.f32.mrb[0].mxu0
    %1569 = vmatprep.mubr.bf16.mxu0 %v800
    %1570 = vmatmul.mubr.bf16.gmra.mrb[0].mxu0 %v799
    %v1571 = vpop.f32.mrb[0].mxu0
    %v1572 = vadd.f32 %v1475, %v1571
    %v1573 = vpop.f32.mrb[0].mxu0
    %v1574 = vpop.f32.mrb[0].mxu0
    %v1575 = vadd.f32 %v1478, %v1574
    %v1576 = vpop.f32.mrb[0].mxu0
    %1577 = vmatprep.mubr.bf16.mxu0 %v809
    %1578 = vmatmul.mubr.bf16.gmra.mrb[0].mxu0 %v808
    %v1579 = vpop.f32.mrb[0].mxu0
    %v1580 = vadd.f32 %v1483, %v1579
    %v1581 = vpop.f32.mrb[0].mxu0
    %v1582 = vpop.f32.mrb[0].mxu0
    %v1583 = vadd.f32 %v1486, %v1582
    %v1584 = vpop.f32.mrb[0].mxu0
    %1585 = vmatprep.mubr.bf16.mxu0 %v818
    %1586 = vmatmul.mubr.bf16.gmra.mrb[0].mxu0 %v817
    %v1587 = vpop.f32.mrb[0].mxu0
    %v1588 = vadd.f32 %v1491, %v1587
    %v1589 = vpop.f32.mrb[0].mxu0
    %v1590 = vpop.f32.mrb[0].mxu0
    %v1591 = vadd.f32 %v1494, %v1590
    %v1592 = vpop.f32.mrb[0].mxu0
    %1593 = vdwg.mxu0
    %1594 = vmatprep.subr.bf16.mxu0 0
    %1595 = vmatpush1.bf16.msra.mxu0 %v1288
    %1596 = vmatprep.subr.bf16.mxu0 0
    %1597 = vmatpush1.bf16.msra.mxu0 %v1289
    %1598 = vmatprep.subr.bf16.mxu0 0
    %1599 = vmatpush1.bf16.msra.mxu0 %v1290
    %1600 = vmatprep.subr.bf16.mxu0 0
    %1601 = vmatpush1.bf16.msra.mxu0 %v1291
    %1602 = vmatprep.subr.bf16.mxu0 0
    %1603 = vmatpush1.bf16.msra.mxu0 %v1292
    %1604 = vmatprep.subr.bf16.mxu0 0
    %1605 = vmatpush1.bf16.msra.mxu0 %v1293
    %1606 = vmatprep.subr.bf16.mxu0 0
    %1607 = vmatpush1.bf16.msra.mxu0 %v1294
    %1608 = vmatprep.subr.bf16.mxu0 0
    %1609 = vmatpush1.bf16.msra.mxu0 %v1295
    %1610 = vmatprep.subr.bf16.mxu0 0
    %1611 = vmatpush1.bf16.msra.mxu0 %v1296
    %1612 = vmatprep.subr.bf16.mxu0 0
    %1613 = vmatpush1.bf16.msra.mxu0 %v1297
    %1614 = vmatprep.subr.bf16.mxu0 0
    %1615 = vmatpush1.bf16.msra.mxu0 %v1298
    %1616 = vmatprep.subr.bf16.mxu0 0
    %1617 = vmatpush1.bf16.msra.mxu0 %v1299
    %1618 = vmatprep.subr.bf16.mxu0 0
    %1619 = vmatpush1.bf16.msra.mxu0 %v1300
    %1620 = vmatprep.subr.bf16.mxu0 0
    %1621 = vmatpush1.bf16.msra.mxu0 %v1301
    %1622 = vmatprep.subr.bf16.mxu0 0
    %1623 = vmatpush1.bf16.msra.mxu0 %v1302
    %1624 = vmatprep.subr.bf16.mxu0 0
    %1625 = vmatpush1.bf16.msra.mxu0 %v1303
    %1626 = vmatprep.mubr.bf16.mxu0 %v757
    %1627 = vmatmul.mubr.bf16.gmra.mrb[0].mxu0 %v756
    %v1628 = vpop.f32.mrb[0].mxu0
    %v1629 = vadd.f32 %v1532, %v1628
    %v1630 = vpop.f32.mrb[0].mxu0
    %v1631 = vpop.f32.mrb[0].mxu0
    %v1632 = vadd.f32 %v1535, %v1631
    %v1633 = vpop.f32.mrb[0].mxu0
    %1634 = vmatprep.mubr.bf16.mxu0 %v766
    %1635 = vmatmul.mubr.bf16.gmra.mrb[0].mxu0 %v765
    %v1636 = vpop.f32.mrb[0].mxu0
    %v1637 = vadd.f32 %v1540, %v1636
    %v1638 = vpop.f32.mrb[0].mxu0
    %v1639 = vpop.f32.mrb[0].mxu0
    %v1640 = vadd.f32 %v1543, %v1639
    %v1641 = vpop.f32.mrb[0].mxu0
    %1642 = vmatprep.mubr.bf16.mxu0 %v775
    %1643 = vmatmul.mubr.bf16.gmra.mrb[0].mxu0 %v774
    %v1644 = vpop.f32.mrb[0].mxu0
    %v1645 = vadd.f32 %v1548, %v1644
    %v1646 = vpop.f32.mrb[0].mxu0
    %v1647 = vpop.f32.mrb[0].mxu0
    %v1648 = vadd.f32 %v1551, %v1647
    %v1649 = vpop.f32.mrb[0].mxu0
    %1650 = vmatprep.mubr.bf16.mxu0 %v784
    %1651 = vmatmul.mubr.bf16.gmra.mrb[0].mxu0 %v783
    %v1652 = vpop.f32.mrb[0].mxu0
    %v1653 = vadd.f32 %v1556, %v1652
    %v1654 = vpop.f32.mrb[0].mxu0
    %v1655 = vpop.f32.mrb[0].mxu0
    %v1656 = vadd.f32 %v1559, %v1655
    %v1657 = vpop.f32.mrb[0].mxu0
    %1658 = vmatprep.mubr.bf16.mxu0 %v793
    %1659 = vmatmul.mubr.bf16.gmra.mrb[0].mxu0 %v792
    %v1660 = vpop.f32.mrb[0].mxu0
    %v1661 = vadd.f32 %v1564, %v1660
    %v1662 = vpop.f32.mrb[0].mxu0
    %v1663 = vpop.f32.mrb[0].mxu0
    %v1664 = vadd.f32 %v1567, %v1663
    %v1665 = vpop.f32.mrb[0].mxu0
    %1666 = vmatprep.mubr.bf16.mxu0 %v802
    %1667 = vmatmul.mubr.bf16.gmra.mrb[0].mxu0 %v801
    %v1668 = vpop.f32.mrb[0].mxu0
    %v1669 = vadd.f32 %v1572, %v1668
    %v1670 = vpop.f32.mrb[0].mxu0
    %v1671 = vpop.f32.mrb[0].mxu0
    %v1672 = vadd.f32 %v1575, %v1671
    %v1673 = vpop.f32.mrb[0].mxu0
    %1674 = vmatprep.mubr.bf16.mxu0 %v811
    %1675 = vmatmul.mubr.bf16.gmra.mrb[0].mxu0 %v810
    %v1676 = vpop.f32.mrb[0].mxu0
    %v1677 = vadd.f32 %v1580, %v1676
    %v1678 = vpop.f32.mrb[0].mxu0
    %v1679 = vpop.f32.mrb[0].mxu0
    %v1680 = vadd.f32 %v1583, %v1679
    %v1681 = vpop.f32.mrb[0].mxu0
    %1682 = vmatprep.mubr.bf16.mxu0 %v820
    %1683 = vmatmul.mubr.bf16.gmra.mrb[0].mxu0 %v819
    %v1684 = vpop.f32.mrb[0].mxu0
    %v1685 = vadd.f32 %v1588, %v1684
    %v1686 = vpop.f32.mrb[0].mxu0
    %v1687 = vpop.f32.mrb[0].mxu0
    %v1688 = vadd.f32 %v1591, %v1687
    %v1689 = vpop.f32.mrb[0].mxu0
    %1690 = vdwg.mxu0
    %1691 = vmatprep.subr.bf16.mxu0 0
    %1692 = vmatpush1.bf16.msra.mxu0 %v1304
    %1693 = vmatprep.subr.bf16.mxu0 0
    %1694 = vmatpush1.bf16.msra.mxu0 %v1305
    %1695 = vmatprep.subr.bf16.mxu0 0
    %1696 = vmatpush1.bf16.msra.mxu0 %v1306
    %1697 = vmatprep.subr.bf16.mxu0 0
    %1698 = vmatpush1.bf16.msra.mxu0 %v1307
    %1699 = vmatprep.subr.bf16.mxu0 0
    %1700 = vmatpush1.bf16.msra.mxu0 %v1308
    %1701 = vmatprep.subr.bf16.mxu0 0
    %1702 = vmatpush1.bf16.msra.mxu0 %v1309
    %1703 = vmatprep.subr.bf16.mxu0 0
    %1704 = vmatpush1.bf16.msra.mxu0 %v1310
    %1705 = vmatprep.subr.bf16.mxu0 0
    %1706 = vmatpush1.bf16.msra.mxu0 %v1311
    %1707 = vmatprep.subr.bf16.mxu0 0
    %1708 = vmatpush1.bf16.msra.mxu0 %v1312
    %1709 = vmatprep.subr.bf16.mxu0 0
    %1710 = vmatpush1.bf16.msra.mxu0 %v1313
    %1711 = vmatprep.subr.bf16.mxu0 0
    %1712 = vmatpush1.bf16.msra.mxu0 %v1314
    %1713 = vmatprep.subr.bf16.mxu0 0
    %1714 = vmatpush1.bf16.msra.mxu0 %v1315
    %1715 = vmatprep.subr.bf16.mxu0 0
    %1716 = vmatpush1.bf16.msra.mxu0 %v1316
    %1717 = vmatprep.subr.bf16.mxu0 0
    %1718 = vmatpush1.bf16.msra.mxu0 %v1317
    %1719 = vmatprep.subr.bf16.mxu0 0
    %1720 = vmatpush1.bf16.msra.mxu0 %v1318
    %1721 = vmatprep.subr.bf16.mxu0 0
    %1722 = vmatpush1.bf16.msra.mxu0 %v1319
    %1723 = vmatprep.mubr.bf16.mxu0 %v759
    %1724 = vmatmul.mubr.bf16.gmra.mrb[0].mxu0 %v758
    %v1725 = vpop.f32.mrb[0].mxu0
    %v1726 = vadd.f32 %v1629, %v1725
    %v1727 = vpop.f32.mrb[0].mxu0
    %v1728 = vpop.f32.mrb[0].mxu0
    %v1729 = vadd.f32 %v1632, %v1728
    %v1730 = vpop.f32.mrb[0].mxu0
    %1731 = vmatprep.mubr.bf16.mxu0 %v768
    %1732 = vmatmul.mubr.bf16.gmra.mrb[0].mxu0 %v767
    %v1733 = vpop.f32.mrb[0].mxu0
    %v1734 = vadd.f32 %v1637, %v1733
    %v1735 = vpop.f32.mrb[0].mxu0
    %v1736 = vpop.f32.mrb[0].mxu0
    %v1737 = vadd.f32 %v1640, %v1736
    %v1738 = vpop.f32.mrb[0].mxu0
    %1739 = vmatprep.mubr.bf16.mxu0 %v777
    %1740 = vmatmul.mubr.bf16.gmra.mrb[0].mxu0 %v776
    %v1741 = vpop.f32.mrb[0].mxu0
    %v1742 = vadd.f32 %v1645, %v1741
    %v1743 = vpop.f32.mrb[0].mxu0
    %v1744 = vpop.f32.mrb[0].mxu0
    %v1745 = vadd.f32 %v1648, %v1744
    %v1746 = vpop.f32.mrb[0].mxu0
    %1747 = vmatprep.mubr.bf16.mxu0 %v786
    %1748 = vmatmul.mubr.bf16.gmra.mrb[0].mxu0 %v785
    %v1749 = vpop.f32.mrb[0].mxu0
    %v1750 = vadd.f32 %v1653, %v1749
    %v1751 = vpop.f32.mrb[0].mxu0
    %v1752 = vpop.f32.mrb[0].mxu0
    %v1753 = vadd.f32 %v1656, %v1752
    %v1754 = vpop.f32.mrb[0].mxu0
    %1755 = vmatprep.mubr.bf16.mxu0 %v795
    %1756 = vmatmul.mubr.bf16.gmra.mrb[0].mxu0 %v794
    %v1757 = vpop.f32.mrb[0].mxu0
    %v1758 = vadd.f32 %v1661, %v1757
    %v1759 = vpop.f32.mrb[0].mxu0
    %v1760 = vpop.f32.mrb[0].mxu0
    %v1761 = vadd.f32 %v1664, %v1760
    %v1762 = vpop.f32.mrb[0].mxu0
    %1763 = vmatprep.mubr.bf16.mxu0 %v804
    %1764 = vmatmul.mubr.bf16.gmra.mrb[0].mxu0 %v803
    %v1765 = vpop.f32.mrb[0].mxu0
    %v1766 = vadd.f32 %v1669, %v1765
    %v1767 = vpop.f32.mrb[0].mxu0
    %v1768 = vpop.f32.mrb[0].mxu0
    %v1769 = vadd.f32 %v1672, %v1768
    %v1770 = vpop.f32.mrb[0].mxu0
    %1771 = vmatprep.mubr.bf16.mxu0 %v813
    %1772 = vmatmul.mubr.bf16.gmra.mrb[0].mxu0 %v812
    %v1773 = vpop.f32.mrb[0].mxu0
    %v1774 = vadd.f32 %v1677, %v1773
    %v1775 = vpop.f32.mrb[0].mxu0
    %v1776 = vpop.f32.mrb[0].mxu0
    %v1777 = vadd.f32 %v1680, %v1776
    %v1778 = vpop.f32.mrb[0].mxu0
    %1779 = vmatprep.mubr.bf16.mxu0 %v822
    %1780 = vmatmul.mubr.bf16.gmra.mrb[0].mxu0 %v821
    %v1781 = vpop.f32.mrb[0].mxu0
    %v1782 = vadd.f32 %v1685, %v1781
    %v1783 = vpop.f32.mrb[0].mxu0
    %v1784 = vpop.f32.mrb[0].mxu0
    %v1785 = vadd.f32 %v1688, %v1784
    %v1786 = vpop.f32.mrb[0].mxu0
    %1787 = vdwg.mxu0
    %1788 = vmatprep.subr.bf16.mxu0 0
    %1789 = vmatpush1.bf16.msra.mxu0 %v1320
    %1790 = vmatprep.subr.bf16.mxu0 0
    %1791 = vmatpush1.bf16.msra.mxu0 %v1321
    %1792 = vmatprep.subr.bf16.mxu0 0
    %1793 = vmatpush1.bf16.msra.mxu0 %v1322
    %1794 = vmatprep.subr.bf16.mxu0 0
    %1795 = vmatpush1.bf16.msra.mxu0 %v1323
    %1796 = vmatprep.subr.bf16.mxu0 0
    %1797 = vmatpush1.bf16.msra.mxu0 %v1324
    %1798 = vmatprep.subr.bf16.mxu0 0
    %1799 = vmatpush1.bf16.msra.mxu0 %v1325
    %1800 = vmatprep.subr.bf16.mxu0 0
    %1801 = vmatpush1.bf16.msra.mxu0 %v1326
    %1802 = vmatprep.subr.bf16.mxu0 0
    %1803 = vmatpush1.bf16.msra.mxu0 %v1327
    %1804 = vmatprep.subr.bf16.mxu0 0
    %1805 = vmatpush1.bf16.msra.mxu0 0
    %1806 = vmatprep.subr.bf16.mxu0 0
    %1807 = vmatpush1.bf16.msra.mxu0 0
    %1808 = vmatprep.subr.bf16.mxu0 0
    %1809 = vmatpush1.bf16.msra.mxu0 0
    %1810 = vmatprep.subr.bf16.mxu0 0
    %1811 = vmatpush1.bf16.msra.mxu0 0
    %1812 = vmatprep.subr.bf16.mxu0 0
    %1813 = vmatpush1.bf16.msra.mxu0 0
    %1814 = vmatprep.subr.bf16.mxu0 0
    %1815 = vmatpush1.bf16.msra.mxu0 0
    %1816 = vmatprep.subr.bf16.mxu0 0
    %1817 = vmatpush1.bf16.msra.mxu0 0
    %1818 = vmatprep.subr.bf16.mxu0 0
    %1819 = vmatpush1.bf16.msra.mxu0 0
    %1820 = vmatprep.mubr.bf16.mxu0 0
    %1821 = vmatmul.mubr.bf16.gmra.mrb[0].mxu0 %v760
    %v1822 = vpop.f32.mrb[0].mxu0
    %v1823 = vadd.f32 %v1726, %v1822
    %v1824 = vpop.f32.mrb[0].mxu0
    %v1825 = vpop.f32.mrb[0].mxu0
    %v1826 = vadd.f32 %v1729, %v1825
    %v1827 = vpop.f32.mrb[0].mxu0
    %1828 = vmatprep.mubr.bf16.mxu0 0
    %1829 = vmatmul.mubr.bf16.gmra.mrb[0].mxu0 %v769
    %v1830 = vpop.f32.mrb[0].mxu0
    %v1831 = vadd.f32 %v1734, %v1830
    %v1832 = vpop.f32.mrb[0].mxu0
    %v1833 = vpop.f32.mrb[0].mxu0
    %v1834 = vadd.f32 %v1737, %v1833
    %v1835 = vpop.f32.mrb[0].mxu0
    %1836 = vmatprep.mubr.bf16.mxu0 0
    %1837 = vmatmul.mubr.bf16.gmra.mrb[0].mxu0 %v778
    %v1838 = vpop.f32.mrb[0].mxu0
    %v1839 = vadd.f32 %v1742, %v1838
    %v1840 = vpop.f32.mrb[0].mxu0
    %v1841 = vpop.f32.mrb[0].mxu0
    %v1842 = vadd.f32 %v1745, %v1841
    %v1843 = vpop.f32.mrb[0].mxu0
    %1844 = vmatprep.mubr.bf16.mxu0 0
    %1845 = vmatmul.mubr.bf16.gmra.mrb[0].mxu0 %v787
    %v1846 = vpop.f32.mrb[0].mxu0
    %v1847 = vadd.f32 %v1750, %v1846
    %v1848 = vpop.f32.mrb[0].mxu0
    %v1849 = vpop.f32.mrb[0].mxu0
    %v1850 = vadd.f32 %v1753, %v1849
    %v1851 = vpop.f32.mrb[0].mxu0
    %1852 = vmatprep.mubr.bf16.mxu0 0
    %1853 = vmatmul.mubr.bf16.gmra.mrb[0].mxu0 %v796
    %v1854 = vpop.f32.mrb[0].mxu0
    %v1855 = vadd.f32 %v1758, %v1854
    %v1856 = vpop.f32.mrb[0].mxu0
    %v1857 = vpop.f32.mrb[0].mxu0
    %v1858 = vadd.f32 %v1761, %v1857
    %v1859 = vpop.f32.mrb[0].mxu0
    %1860 = vmatprep.mubr.bf16.mxu0 0
    %1861 = vmatmul.mubr.bf16.gmra.mrb[0].mxu0 %v805
    %v1862 = vpop.f32.mrb[0].mxu0
    %v1863 = vadd.f32 %v1766, %v1862
    %v1864 = vpop.f32.mrb[0].mxu0
    %v1865 = vpop.f32.mrb[0].mxu0
    %v1866 = vadd.f32 %v1769, %v1865
    %v1867 = vpop.f32.mrb[0].mxu0
    %1868 = vmatprep.mubr.bf16.mxu0 0
    %1869 = vmatmul.mubr.bf16.gmra.mrb[0].mxu0 %v814
    %v1870 = vpop.f32.mrb[0].mxu0
    %v1871 = vadd.f32 %v1774, %v1870
    %v1872 = vpop.f32.mrb[0].mxu0
    %v1873 = vpop.f32.mrb[0].mxu0
    %v1874 = vadd.f32 %v1777, %v1873
    %v1875 = vpop.f32.mrb[0].mxu0
    %1876 = vmatprep.mubr.bf16.mxu0 0
    %1877 = vmatmul.mubr.bf16.gmra.mrb[0].mxu0 %v823
    %v1878 = vpop.f32.mrb[0].mxu0
    %v1879 = vadd.f32 %v1782, %v1878
    %v1880 = vpop.f32.mrb[0].mxu0
    %v1881 = vpop.f32.mrb[0].mxu0
    %v1882 = vadd.f32 %v1785, %v1881
    %v1883 = vpop.f32.mrb[0].mxu0
    %1884 = vdwg.mxu0
    %v1885 = vld [vmem:[%s4 + $0x2] sm:$0x1]
    %v1886 = vld [vmem:[%s4 + $0x3] sm:$0x1]
    %v1887 = vadd.f32 %v1823, %v1826
    %v1888 = vadd.f32 %v1887, %v1831
    %v1889 = vadd.f32 %v1888, %v1834
    %v1890 = vadd.f32 %v1889, %v1839
    %v1891 = vadd.f32 %v1890, %v1842
    %v1892 = vadd.f32 %v1891, %v1847
    %v1893 = vadd.f32 %v1892, %v1850
    %v1894 = vadd.f32 %v1893, %v1855
    %v1895 = vadd.f32 %v1894, %v1858
    %v1896 = vadd.f32 %v1895, %v1863
    %v1897 = vadd.f32 %v1896, %v1866
    %v1898 = vadd.f32 %v1897, %v1871
    %v1899 = vadd.f32 %v1898, %v1874
    %v1900 = vadd.f32 %v1899, %v1879
    %v1901 = vadd.f32 %v1900, %v1882
    %v1902 = vrot.slane %v1901, 4
    %v1903 = vadd.f32 %v1901, %v1902
    %v1904 = vrot.slane %v1903, 2
    %v1905 = vadd.f32 %v1903, %v1904
    %v1906 = vrot.slane %v1905, 1
    %v1907 = vadd.f32 %v1905, %v1906
    %v1908 = vmul.f32 %v1907, 0.0078125
    %v1909 = vmul.f32 %v1823, %v1823
    %v1910 = vmul.f32 %v1826, %v1826
    %v1911 = vmul.f32 %v1831, %v1831
    %v1912 = vmul.f32 %v1834, %v1834
    %v1913 = vmul.f32 %v1839, %v1839
    %v1914 = vmul.f32 %v1842, %v1842
    %v1915 = vmul.f32 %v1847, %v1847
    %v1916 = vmul.f32 %v1850, %v1850
    %v1917 = vmul.f32 %v1855, %v1855
    %v1918 = vmul.f32 %v1858, %v1858
    %v1919 = vmul.f32 %v1863, %v1863
    %v1920 = vmul.f32 %v1866, %v1866
    %v1921 = vmul.f32 %v1871, %v1871
    %v1922 = vmul.f32 %v1874, %v1874
    %v1923 = vmul.f32 %v1879, %v1879
    %v1924 = vmul.f32 %v1882, %v1882
    %v1925 = vadd.f32 %v1909, %v1910
    %v1926 = vadd.f32 %v1925, %v1911
    %v1927 = vadd.f32 %v1926, %v1912
    %v1928 = vadd.f32 %v1927, %v1913
    %v1929 = vadd.f32 %v1928, %v1914
    %v1930 = vadd.f32 %v1929, %v1915
    %v1931 = vadd.f32 %v1930, %v1916
    %v1932 = vadd.f32 %v1931, %v1917
    %v1933 = vadd.f32 %v1932, %v1918
    %v1934 = vadd.f32 %v1933, %v1919
    %v1935 = vadd.f32 %v1934, %v1920
    %v1936 = vadd.f32 %v1935, %v1921
    %v1937 = vadd.f32 %v1936, %v1922
    %v1938 = vadd.f32 %v1937, %v1923
    %v1939 = vadd.f32 %v1938, %v1924
    %v1940 = vrot.slane %v1939, 4
    %v1941 = vadd.f32 %v1939, %v1940
    %v1942 = vrot.slane %v1941, 2
    %v1943 = vadd.f32 %v1941, %v1942
    %v1944 = vrot.slane %v1943, 1
    %v1945 = vadd.f32 %v1943, %v1944
    %v1946 = vmul.f32 %v1945, 0.0078125
    %v1947 = vmul.f32 %v1908, %v1908
    %v1948 = vsub.f32 %v1946, %v1947
    %v1949 = vadd.f32 %v1948, 1e-05
    %v1950 = vrsqrt.pop %v1949
    %v1951 = vmul.f32 %v1885, %v1950
    %v1952 = vmul.f32 %v1908, %v1951
    %v1953 = vsub.f32 %v1886, %v1952
    %v1954 = vlaneseq
    %v1955 = vshrl.u32 %v1954, 7
    %v1956 = vsub.s32 0, %v1955
    %v1957 = vrot.slane %v1951, %v1956
    %v1958 = vmul.f32 %v1823, %v1957
    %v1959 = vmul.f32 %v1826, %v1957
    %v1960 = vmul.f32 %v1831, %v1957
    %v1961 = vmul.f32 %v1834, %v1957
    %v1962 = vmul.f32 %v1839, %v1957
    %v1963 = vmul.f32 %v1842, %v1957
    %v1964 = vmul.f32 %v1847, %v1957
    %v1965 = vmul.f32 %v1850, %v1957
    %v1966 = vmul.f32 %v1855, %v1957
    %v1967 = vmul.f32 %v1858, %v1957
    %v1968 = vmul.f32 %v1863, %v1957
    %v1969 = vmul.f32 %v1866, %v1957
    %v1970 = vmul.f32 %v1871, %v1957
    %v1971 = vmul.f32 %v1874, %v1957
    %v1972 = vmul.f32 %v1879, %v1957
    %v1973 = vmul.f32 %v1882, %v1957
    %v1974 = vlaneseq
    %v1975 = vshrl.u32 %v1974, 7
    %v1976 = vsub.s32 0, %v1975
    %v1977 = vrot.slane %v1953, %v1976
    %v1978 = vadd.f32 %v1958, %v1977
    %v1979 = vadd.f32 %v1959, %v1977
    %v1980 = vadd.f32 %v1960, %v1977
    %v1981 = vadd.f32 %v1961, %v1977
    %v1982 = vadd.f32 %v1962, %v1977
    %v1983 = vadd.f32 %v1963, %v1977
    %v1984 = vadd.f32 %v1964, %v1977
    %v1985 = vadd.f32 %v1965, %v1977
    %v1986 = vadd.f32 %v1966, %v1977
    %v1987 = vadd.f32 %v1967, %v1977
    %v1988 = vadd.f32 %v1968, %v1977
    %v1989 = vadd.f32 %v1969, %v1977
    %v1990 = vadd.f32 %v1970, %v1977
    %v1991 = vadd.f32 %v1971, %v1977
    %v1992 = vadd.f32 %v1972, %v1977
    %v1993 = vadd.f32 %v1973, %v1977
    %v1994 = vmax.f32 %v1978, 0.0
    %v1995 = vmax.f32 %v1979, 0.0
    %v1996 = vmax.f32 %v1980, 0.0
    %v1997 = vmax.f32 %v1981, 0.0
    %v1998 = vmax.f32 %v1982, 0.0
    %v1999 = vmax.f32 %v1983, 0.0
    %v2000 = vmax.f32 %v1984, 0.0
    %v2001 = vmax.f32 %v1985, 0.0
    %v2002 = vmax.f32 %v1986, 0.0
    %v2003 = vmax.f32 %v1987, 0.0
    %v2004 = vmax.f32 %v1988, 0.0
    %v2005 = vmax.f32 %v1989, 0.0
    %v2006 = vmax.f32 %v1990, 0.0
    %v2007 = vmax.f32 %v1991, 0.0
    %v2008 = vmax.f32 %v1992, 0.0
    %v2009 = vmax.f32 %v1993, 0.0
    %v2010 = vpack.c.bf16 %v1995, %v1994
    %v2011 = vpack.c.bf16 %v1997, %v1996
    %v2012 = vpack.c.bf16 %v1999, %v1998
    %v2013 = vpack.c.bf16 %v2001, %v2000
    %v2014 = vpack.c.bf16 %v2003, %v2002
    %v2015 = vpack.c.bf16 %v2005, %v2004
    %v2016 = vpack.c.bf16 %v2007, %v2006
    %v2017 = vpack.c.bf16 %v2009, %v2008
    %v2018 = vld [vmem:[#allocation9] sm:$0xff]
    %v2019 = vld [vmem:[#allocation9 + $0x8] sm:$0xff]
    %v2020 = vld [vmem:[#allocation9 + $0x10] sm:$0xff]
    %v2021 = vld [vmem:[#allocation9 + $0x18] sm:$0xff]
    %v2022 = vld [vmem:[#allocation9 + $0x20] sm:$0xff]
    %v2023 = vld [vmem:[#allocation9 + $0x28] sm:$0xff]
    %v2024 = vld [vmem:[#allocation9 + $0x30] sm:$0xff]
    %v2025 = vld [vmem:[#allocation9 + $0x38] sm:$0xff]
    %v2026 = vld [vmem:[#allocation9 + $0x40] sm:$0xff]
    %v2027 = vld [vmem:[#allocation9 + $0x48] sm:$0xff]
    %v2028 = vld [vmem:[#allocation9 + $0x50] sm:$0xff]
    %v2029 = vld [vmem:[#allocation9 + $0x58] sm:$0xff]
    %v2030 = vld [vmem:[#allocation9 + $0x60] sm:$0xff]
    %v2031 = vld [vmem:[#allocation9 + $0x68] sm:$0xff]
    %v2032 = vld [vmem:[#allocation9 + $0x70] sm:$0xff]
    %v2033 = vld [vmem:[#allocation9 + $0x78] sm:$0xff]
    %v2050 = vunpack.c.l.b16 %v2018
    %v2051 = vunpack.c.h.b16 %v2018
    %v2052 = vunpack.c.l.b16 %v2019
    %v2053 = vunpack.c.h.b16 %v2019
    %v2054 = vunpack.c.l.b16 %v2020
    %v2055 = vunpack.c.h.b16 %v2020
    %v2056 = vunpack.c.l.b16 %v2021
    %v2057 = vunpack.c.h.b16 %v2021
    %v2058 = vunpack.c.l.b16 %v2022
    %v2059 = vunpack.c.h.b16 %v2022
    %v2060 = vunpack.c.l.b16 %v2023
    %v2061 = vunpack.c.h.b16 %v2023
    %v2062 = vunpack.c.l.b16 %v2024
    %v2063 = vunpack.c.h.b16 %v2024
    %v2064 = vunpack.c.l.b16 %v2025
    %v2065 = vunpack.c.h.b16 %v2025
    %v2066 = vunpack.c.l.b16 %v2026
    %v2067 = vunpack.c.h.b16 %v2026
    %v2068 = vunpack.c.l.b16 %v2027
    %v2069 = vunpack.c.h.b16 %v2027
    %v2070 = vunpack.c.l.b16 %v2028
    %v2071 = vunpack.c.h.b16 %v2028
    %v2072 = vunpack.c.l.b16 %v2029
    %v2073 = vunpack.c.h.b16 %v2029
    %v2074 = vunpack.c.l.b16 %v2030
    %v2075 = vunpack.c.h.b16 %v2030
    %v2076 = vunpack.c.l.b16 %v2031
    %v2077 = vunpack.c.h.b16 %v2031
    %v2078 = vunpack.c.l.b16 %v2032
    %v2079 = vunpack.c.h.b16 %v2032
    %v2080 = vunpack.c.l.b16 %v2033
    %v2081 = vunpack.c.h.b16 %v2033
    %v2082 = vpack.c.b16 %v2052, %v2050
    %v2083 = vpack.c.b16 %v2053, %v2051
    %v2084 = vpack.c.b16 %v2056, %v2054
    %v2085 = vpack.c.b16 %v2057, %v2055
    %v2086 = vpack.c.b16 %v2060, %v2058
    %v2087 = vpack.c.b16 %v2061, %v2059
    %v2088 = vpack.c.b16 %v2064, %v2062
    %v2089 = vpack.c.b16 %v2065, %v2063
    %v2090 = vpack.c.b16 %v2068, %v2066
    %v2091 = vpack.c.b16 %v2069, %v2067
    %v2092 = vpack.c.b16 %v2072, %v2070
    %v2093 = vpack.c.b16 %v2073, %v2071
    %v2094 = vpack.c.b16 %v2076, %v2074
    %v2095 = vpack.c.b16 %v2077, %v2075
    %v2096 = vpack.c.b16 %v2080, %v2078
    %v2097 = vpack.c.b16 %v2081, %v2079
    %2114 = vmatprep.subr.bf16.mxu0 %v2083
    %2115 = vmatpush1.bf16.msra.mxu0 %v2082
    %2116 = vmatprep.subr.bf16.mxu0 %v2085
    %2117 = vmatpush1.bf16.msra.mxu0 %v2084
    %2118 = vmatprep.subr.bf16.mxu0 %v2087
    %2119 = vmatpush1.bf16.msra.mxu0 %v2086
    %2120 = vmatprep.subr.bf16.mxu0 %v2089
    %2121 = vmatpush1.bf16.msra.mxu0 %v2088
    %2122 = vmatprep.subr.bf16.mxu0 %v2091
    %2123 = vmatpush1.bf16.msra.mxu0 %v2090
    %2124 = vmatprep.subr.bf16.mxu0 %v2093
    %2125 = vmatpush1.bf16.msra.mxu0 %v2092
    %2126 = vmatprep.subr.bf16.mxu0 %v2095
    %2127 = vmatpush1.bf16.msra.mxu0 %v2094
    %2128 = vmatprep.subr.bf16.mxu0 %v2097
    %2129 = vmatpush1.bf16.msra.mxu0 %v2096
    %2130 = vmatprep.subr.bf16.mxu0 0
    %2131 = vmatpush1.bf16.msra.mxu0 0
    %2132 = vmatprep.subr.bf16.mxu0 0
    %2133 = vmatpush1.bf16.msra.mxu0 0
    %2134 = vmatprep.subr.bf16.mxu0 0
    %2135 = vmatpush1.bf16.msra.mxu0 0
    %2136 = vmatprep.subr.bf16.mxu0 0
    %2137 = vmatpush1.bf16.msra.mxu0 0
    %2138 = vmatprep.subr.bf16.mxu0 0
    %2139 = vmatpush1.bf16.msra.mxu0 0
    %2140 = vmatprep.subr.bf16.mxu0 0
    %2141 = vmatpush1.bf16.msra.mxu0 0
    %2142 = vmatprep.subr.bf16.mxu0 0
    %2143 = vmatpush1.bf16.msra.mxu0 0
    %2144 = vmatprep.subr.bf16.mxu0 0
    %2145 = vmatpush1.bf16.msra.mxu0 0
    %2146 = vmatprep.mubr.bf16.mxu0 0
    %2147 = vmatmul.mubr.bf16.gmra.mrb[0].mxu0 %v2010
    %v2148 = vpop.f32.mrb[0].mxu0
    %v2149 = vadd.f32 0.0, %v2148
    %v2150 = vpop.f32.mrb[0].mxu0
    %v2151 = vadd.f32 0.0, %v2150
    %v2152 = vpop.f32.mrb[0].mxu0
    %v2153 = vadd.f32 0.0, %v2152
    %v2154 = vpop.f32.mrb[0].mxu0
    %v2155 = vadd.f32 0.0, %v2154
    %2156 = vmatprep.mubr.bf16.mxu0 0
    %2157 = vmatmul.mubr.bf16.gmra.mrb[0].mxu0 %v2011
    %v2158 = vpop.f32.mrb[0].mxu0
    %v2159 = vadd.f32 0.0, %v2158
    %v2160 = vpop.f32.mrb[0].mxu0
    %v2161 = vadd.f32 0.0, %v2160
    %v2162 = vpop.f32.mrb[0].mxu0
    %v2163 = vadd.f32 0.0, %v2162
    %v2164 = vpop.f32.mrb[0].mxu0
    %v2165 = vadd.f32 0.0, %v2164
    %2166 = vmatprep.mubr.bf16.mxu0 0
    %2167 = vmatmul.mubr.bf16.gmra.mrb[0].mxu0 %v2012
    %v2168 = vpop.f32.mrb[0].mxu0
    %v2169 = vadd.f32 0.0, %v2168
    %v2170 = vpop.f32.mrb[0].mxu0
    %v2171 = vadd.f32 0.0, %v2170
    %v2172 = vpop.f32.mrb[0].mxu0
    %v2173 = vadd.f32 0.0, %v2172
    %v2174 = vpop.f32.mrb[0].mxu0
    %v2175 = vadd.f32 0.0, %v2174
    %2176 = vmatprep.mubr.bf16.mxu0 0
    %2177 = vmatmul.mubr.bf16.gmra.mrb[0].mxu0 %v2013
    %v2178 = vpop.f32.mrb[0].mxu0
    %v2179 = vadd.f32 0.0, %v2178
    %v2180 = vpop.f32.mrb[0].mxu0
    %v2181 = vadd.f32 0.0, %v2180
    %v2182 = vpop.f32.mrb[0].mxu0
    %v2183 = vadd.f32 0.0, %v2182
    %v2184 = vpop.f32.mrb[0].mxu0
    %v2185 = vadd.f32 0.0, %v2184
    %2186 = vmatprep.mubr.bf16.mxu0 0
    %2187 = vmatmul.mubr.bf16.gmra.mrb[0].mxu0 %v2014
    %v2188 = vpop.f32.mrb[0].mxu0
    %v2189 = vadd.f32 0.0, %v2188
    %v2190 = vpop.f32.mrb[0].mxu0
    %v2191 = vadd.f32 0.0, %v2190
    %v2192 = vpop.f32.mrb[0].mxu0
    %v2193 = vadd.f32 0.0, %v2192
    %v2194 = vpop.f32.mrb[0].mxu0
    %v2195 = vadd.f32 0.0, %v2194
    %2196 = vmatprep.mubr.bf16.mxu0 0
    %2197 = vmatmul.mubr.bf16.gmra.mrb[0].mxu0 %v2015
    %v2198 = vpop.f32.mrb[0].mxu0
    %v2199 = vadd.f32 0.0, %v2198
    %v2200 = vpop.f32.mrb[0].mxu0
    %v2201 = vadd.f32 0.0, %v2200
    %v2202 = vpop.f32.mrb[0].mxu0
    %v2203 = vadd.f32 0.0, %v2202
    %v2204 = vpop.f32.mrb[0].mxu0
    %v2205 = vadd.f32 0.0, %v2204
    %2206 = vmatprep.mubr.bf16.mxu0 0
    %2207 = vmatmul.mubr.bf16.gmra.mrb[0].mxu0 %v2016
    %v2208 = vpop.f32.mrb[0].mxu0
    %v2209 = vadd.f32 0.0, %v2208
    %v2210 = vpop.f32.mrb[0].mxu0
    %v2211 = vadd.f32 0.0, %v2210
    %v2212 = vpop.f32.mrb[0].mxu0
    %v2213 = vadd.f32 0.0, %v2212
    %v2214 = vpop.f32.mrb[0].mxu0
    %v2215 = vadd.f32 0.0, %v2214
    %2216 = vmatprep.mubr.bf16.mxu0 0
    %2217 = vmatmul.mubr.bf16.gmra.mrb[0].mxu0 %v2017
    %v2218 = vpop.f32.mrb[0].mxu0
    %v2219 = vadd.f32 0.0, %v2218
    %v2220 = vpop.f32.mrb[0].mxu0
    %v2221 = vadd.f32 0.0, %v2220
    %v2222 = vpop.f32.mrb[0].mxu0
    %v2223 = vadd.f32 0.0, %v2222
    %v2224 = vpop.f32.mrb[0].mxu0
    %v2225 = vadd.f32 0.0, %v2224
    %2226 = vdwg.mxu0
    %s2227 = scalar_lea.vmem %s4, 4
    %v2228 = vld [vmem:[%s2227] ss:$2 sm:$0x3]
    %s2229 = scalar_lea.vmem %s4, 5
    %v2230 = vld [vmem:[%s2229] ss:$2 sm:$0x3]
    %v2231 = vadd.f32 %v2149, %v2153
    %v2232 = vadd.f32 %v2231, %v2159
    %v2233 = vadd.f32 %v2232, %v2163
    %v2234 = vadd.f32 %v2233, %v2169
    %v2235 = vadd.f32 %v2234, %v2173
    %v2236 = vadd.f32 %v2235, %v2179
    %v2237 = vadd.f32 %v2236, %v2183
    %v2238 = vadd.f32 %v2237, %v2189
    %v2239 = vadd.f32 %v2238, %v2193
    %v2240 = vadd.f32 %v2239, %v2199
    %v2241 = vadd.f32 %v2240, %v2203
    %v2242 = vadd.f32 %v2241, %v2209
    %v2243 = vadd.f32 %v2242, %v2213
    %v2244 = vadd.f32 %v2243, %v2219
    %v2245 = vadd.f32 %v2244, %v2223
    %v2246 = vrot.slane %v2245, 4
    %v2247 = vadd.f32 %v2245, %v2246
    %v2248 = vrot.slane %v2247, 2
    %v2249 = vadd.f32 %v2247, %v2248
    %v2250 = vrot.slane %v2249, 1
    %v2251 = vadd.f32 %v2249, %v2250
    %v2252 = vadd.f32 %v2151, %v2155
    %v2253 = vadd.f32 %v2252, %v2161
    %v2254 = vadd.f32 %v2253, %v2165
    %v2255 = vadd.f32 %v2254, %v2171
    %v2256 = vadd.f32 %v2255, %v2175
    %v2257 = vadd.f32 %v2256, %v2181
    %v2258 = vadd.f32 %v2257, %v2185
    %v2259 = vadd.f32 %v2258, %v2191
    %v2260 = vadd.f32 %v2259, %v2195
    %v2261 = vadd.f32 %v2260, %v2201
    %v2262 = vadd.f32 %v2261, %v2205
    %v2263 = vadd.f32 %v2262, %v2211
    %v2264 = vadd.f32 %v2263, %v2215
    %v2265 = vadd.f32 %v2264, %v2221
    %v2266 = vadd.f32 %v2265, %v2225
    %v2267 = vrot.slane %v2266, 4
    %v2268 = vadd.f32 %v2266, %v2267
    %v2269 = vrot.slane %v2268, 2
    %v2270 = vadd.f32 %v2268, %v2269
    %v2271 = vrot.slane %v2270, 1
    %v2272 = vadd.f32 %v2270, %v2271
    %v2273 = vmul.f32 %v2251, 0.0078125
    %v2274 = vmul.f32 %v2272, 0.0078125
    %v2275 = vmul.f32 %v2149, %v2149
    %v2276 = vmul.f32 %v2151, %v2151
    %v2277 = vmul.f32 %v2153, %v2153
    %v2278 = vmul.f32 %v2155, %v2155
    %v2279 = vmul.f32 %v2159, %v2159
    %v2280 = vmul.f32 %v2161, %v2161
    %v2281 = vmul.f32 %v2163, %v2163
    %v2282 = vmul.f32 %v2165, %v2165
    %v2283 = vmul.f32 %v2169, %v2169
    %v2284 = vmul.f32 %v2171, %v2171
    %v2285 = vmul.f32 %v2173, %v2173
    %v2286 = vmul.f32 %v2175, %v2175
    %v2287 = vmul.f32 %v2179, %v2179
    %v2288 = vmul.f32 %v2181, %v2181
    %v2289 = vmul.f32 %v2183, %v2183
    %v2290 = vmul.f32 %v2185, %v2185
    %v2291 = vmul.f32 %v2189, %v2189
    %v2292 = vmul.f32 %v2191, %v2191
    %v2293 = vmul.f32 %v2193, %v2193
    %v2294 = vmul.f32 %v2195, %v2195
    %v2295 = vmul.f32 %v2199, %v2199
    %v2296 = vmul.f32 %v2201, %v2201
    %v2297 = vmul.f32 %v2203, %v2203
    %v2298 = vmul.f32 %v2205, %v2205
    %v2299 = vmul.f32 %v2209, %v2209
    %v2300 = vmul.f32 %v2211, %v2211
    %v2301 = vmul.f32 %v2213, %v2213
    %v2302 = vmul.f32 %v2215, %v2215
    %v2303 = vmul.f32 %v2219, %v2219
    %v2304 = vmul.f32 %v2221, %v2221
    %v2305 = vmul.f32 %v2223, %v2223
    %v2306 = vmul.f32 %v2225, %v2225
    %v2307 = vadd.f32 %v2275, %v2277
    %v2308 = vadd.f32 %v2307, %v2279
    %v2309 = vadd.f32 %v2308, %v2281
    %v2310 = vadd.f32 %v2309, %v2283
    %v2311 = vadd.f32 %v2310, %v2285
    %v2312 = vadd.f32 %v2311, %v2287
    %v2313 = vadd.f32 %v2312, %v2289
    %v2314 = vadd.f32 %v2313, %v2291
    %v2315 = vadd.f32 %v2314, %v2293
    %v2316 = vadd.f32 %v2315, %v2295
    %v2317 = vadd.f32 %v2316, %v2297
    %v2318 = vadd.f32 %v2317, %v2299
    %v2319 = vadd.f32 %v2318, %v2301
    %v2320 = vadd.f32 %v2319, %v2303
    %v2321 = vadd.f32 %v2320, %v2305
    %v2322 = vrot.slane %v2321, 4
    %v2323 = vadd.f32 %v2321, %v2322
    %v2324 = vrot.slane %v2323, 2
    %v2325 = vadd.f32 %v2323, %v2324
    %v2326 = vrot.slane %v2325, 1
    %v2327 = vadd.f32 %v2325, %v2326
    %v2328 = vadd.f32 %v2276, %v2278
    %v2329 = vadd.f32 %v2328, %v2280
    %v2330 = vadd.f32 %v2329, %v2282
    %v2331 = vadd.f32 %v2330, %v2284
    %v2332 = vadd.f32 %v2331, %v2286
    %v2333 = vadd.f32 %v2332, %v2288
    %v2334 = vadd.f32 %v2333, %v2290
    %v2335 = vadd.f32 %v2334, %v2292
    %v2336 = vadd.f32 %v2335, %v2294
    %v2337 = vadd.f32 %v2336, %v2296
    %v2338 = vadd.f32 %v2337, %v2298
    %v2339 = vadd.f32 %v2338, %v2300
    %v2340 = vadd.f32 %v2339, %v2302
    %v2341 = vadd.f32 %v2340, %v2304
    %v2342 = vadd.f32 %v2341, %v2306
    %v2343 = vrot.slane %v2342, 4
    %v2344 = vadd.f32 %v2342, %v2343
    %v2345 = vrot.slane %v2344, 2
    %v2346 = vadd.f32 %v2344, %v2345
    %v2347 = vrot.slane %v2346, 1
    %v2348 = vadd.f32 %v2346, %v2347
    %v2349 = vmul.f32 %v2327, 0.0078125
    %v2350 = vmul.f32 %v2348, 0.0078125
    %v2351 = vmul.f32 %v2273, %v2273
    %v2352 = vmul.f32 %v2274, %v2274
    %v2353 = vsub.f32 %v2349, %v2351
    %v2354 = vsub.f32 %v2350, %v2352
    %v2355 = vadd.f32 %v2353, 1e-05
    %v2356 = vadd.f32 %v2354, 1e-05
    %v2357 = vrsqrt.pop %v2355
    %v2358 = vrsqrt.pop %v2356
    %v2361 = vcombine.low %v2357, %v2358
    %v2363 = vunpack.c.l.s4 1966171168
    %v2364 = vunpack.c.0.s8 %v2363
    %v2365 = vlaneseq
    %v2366 = vshrl.u32 %v2365, 7
    %v2367 = vsub.s32 %v2364, %v2366
    %v2368 = vrot.slane %v2361, %v2367
    %v2370 = vunpack.c.l.s4 1966171168
    %v2371 = vunpack.c.0.s8 %v2370
    %v2372 = vlaneseq
    %v2373 = vshrl.u32 %v2372, 7
    %v2374 = vsub.s32 %v2371, %v2373
    %v2375 = vrot.slane %v2368, %v2374
    %v2377 = vmul.f32 %v2228, %v2375
    %v2379 = vlaneseq
    %v2380 = vshrl.u32 %v2379, 7
    %v2381 = vsub.s32 0, %v2380
    %v2382 = vrot.slane %v2377, %v2381
    %v2383 = vlaneseq
    %v2384 = vshrl.u32 %v2383, 7
    %v2385 = vsub.s32 1, %v2384
    %v2386 = vrot.slane %v2377, %v2385
    %v2389 = vmul.f32 %v2273, %v2382
    %v2390 = vmul.f32 %v2274, %v2386
    %v2393 = vcombine.low %v2389, %v2390
    %v2395 = vunpack.c.l.s4 1966171168
    %v2396 = vunpack.c.0.s8 %v2395
    %v2397 = vlaneseq
    %v2398 = vshrl.u32 %v2397, 7
    %v2399 = vsub.s32 %v2396, %v2398
    %v2400 = vrot.slane %v2393, %v2399
    %v2402 = vunpack.c.l.s4 1966171168
    %v2403 = vunpack.c.0.s8 %v2402
    %v2404 = vlaneseq
    %v2405 = vshrl.u32 %v2404, 7
    %v2406 = vsub.s32 %v2403, %v2405
    %v2407 = vrot.slane %v2400, %v2406
    %v2409 = vsub.f32 %v2230, %v2407
    %v2410 = vmul.f32 %v2149, %v2382
    %v2411 = vmul.f32 %v2151, %v2386
    %v2412 = vmul.f32 %v2153, %v2382
    %v2413 = vmul.f32 %v2155, %v2386
    %v2414 = vmul.f32 %v2159, %v2382
    %v2415 = vmul.f32 %v2161, %v2386
    %v2416 = vmul.f32 %v2163, %v2382
    %v2417 = vmul.f32 %v2165, %v2386
    %v2418 = vmul.f32 %v2169, %v2382
    %v2419 = vmul.f32 %v2171, %v2386
    %v2420 = vmul.f32 %v2173, %v2382
    %v2421 = vmul.f32 %v2175, %v2386
    %v2422 = vmul.f32 %v2179, %v2382
    %v2423 = vmul.f32 %v2181, %v2386
    %v2424 = vmul.f32 %v2183, %v2382
    %v2425 = vmul.f32 %v2185, %v2386
    %v2426 = vmul.f32 %v2189, %v2382
    %v2427 = vmul.f32 %v2191, %v2386
    %v2428 = vmul.f32 %v2193, %v2382
    %v2429 = vmul.f32 %v2195, %v2386
    %v2430 = vmul.f32 %v2199, %v2382
    %v2431 = vmul.f32 %v2201, %v2386
    %v2432 = vmul.f32 %v2203, %v2382
    %v2433 = vmul.f32 %v2205, %v2386
    %v2434 = vmul.f32 %v2209, %v2382
    %v2435 = vmul.f32 %v2211, %v2386
    %v2436 = vmul.f32 %v2213, %v2382
    %v2437 = vmul.f32 %v2215, %v2386
    %v2438 = vmul.f32 %v2219, %v2382
    %v2439 = vmul.f32 %v2221, %v2386
    %v2440 = vmul.f32 %v2223, %v2382
    %v2441 = vmul.f32 %v2225, %v2386
    %v2443 = vlaneseq
    %v2444 = vshrl.u32 %v2443, 7
    %v2445 = vsub.s32 0, %v2444
    %v2446 = vrot.slane %v2409, %v2445
    %v2447 = vlaneseq
    %v2448 = vshrl.u32 %v2447, 7
    %v2449 = vsub.s32 1, %v2448
    %v2450 = vrot.slane %v2409, %v2449
    %v2453 = vadd.f32 %v2410, %v2446
    %v2454 = vadd.f32 %v2411, %v2450
    %v2455 = vadd.f32 %v2412, %v2446
    %v2456 = vadd.f32 %v2413, %v2450
    %v2457 = vadd.f32 %v2414, %v2446
    %v2458 = vadd.f32 %v2415, %v2450
    %v2459 = vadd.f32 %v2416, %v2446
    %v2460 = vadd.f32 %v2417, %v2450
    %v2461 = vadd.f32 %v2418, %v2446
    %v2462 = vadd.f32 %v2419, %v2450
    %v2463 = vadd.f32 %v2420, %v2446
    %v2464 = vadd.f32 %v2421, %v2450
    %v2465 = vadd.f32 %v2422, %v2446
    %v2466 = vadd.f32 %v2423, %v2450
    %v2467 = vadd.f32 %v2424, %v2446
    %v2468 = vadd.f32 %v2425, %v2450
    %v2469 = vadd.f32 %v2426, %v2446
    %v2470 = vadd.f32 %v2427, %v2450
    %v2471 = vadd.f32 %v2428, %v2446
    %v2472 = vadd.f32 %v2429, %v2450
    %v2473 = vadd.f32 %v2430, %v2446
    %v2474 = vadd.f32 %v2431, %v2450
    %v2475 = vadd.f32 %v2432, %v2446
    %v2476 = vadd.f32 %v2433, %v2450
    %v2477 = vadd.f32 %v2434, %v2446
    %v2478 = vadd.f32 %v2435, %v2450
    %v2479 = vadd.f32 %v2436, %v2446
    %v2480 = vadd.f32 %v2437, %v2450
    %v2481 = vadd.f32 %v2438, %v2446
    %v2482 = vadd.f32 %v2439, %v2450
    %v2483 = vadd.f32 %v2440, %v2446
    %v2484 = vadd.f32 %v2441, %v2450
    %s2485 = scalar_lea.vmem %s4, 8
    %v2486 = vld [vmem:[%s2485] ss:$2 sm:$0x3]
    %s2487 = scalar_lea.vmem %s4, 9
    %v2488 = vld [vmem:[%s2487] ss:$2 sm:$0x3]
    %v2489 = vadd.f32 %v243, %v247
    %v2490 = vadd.f32 %v2489, %v253
    %v2491 = vadd.f32 %v2490, %v257
    %v2492 = vadd.f32 %v2491, %v263
    %v2493 = vadd.f32 %v2492, %v267
    %v2494 = vadd.f32 %v2493, %v273
    %v2495 = vadd.f32 %v2494, %v277
    %v2496 = vadd.f32 %v2495, %v283
    %v2497 = vadd.f32 %v2496, %v287
    %v2498 = vadd.f32 %v2497, %v293
    %v2499 = vadd.f32 %v2498, %v297
    %v2500 = vadd.f32 %v2499, %v303
    %v2501 = vadd.f32 %v2500, %v307
    %v2502 = vadd.f32 %v2501, %v313
    %v2503 = vadd.f32 %v2502, %v317
    %v2504 = vrot.slane %v2503, 4
    %v2505 = vadd.f32 %v2503, %v2504
    %v2506 = vrot.slane %v2505, 2
    %v2507 = vadd.f32 %v2505, %v2506
    %v2508 = vrot.slane %v2507, 1
    %v2509 = vadd.f32 %v2507, %v2508
    %v2510 = vadd.f32 %v354, %v357
    %v2511 = vadd.f32 %v2510, %v362
    %v2512 = vadd.f32 %v2511, %v365
    %v2513 = vadd.f32 %v2512, %v370
    %v2514 = vadd.f32 %v2513, %v373
    %v2515 = vadd.f32 %v2514, %v378
    %v2516 = vadd.f32 %v2515, %v381
    %v2517 = vadd.f32 %v2516, %v386
    %v2518 = vadd.f32 %v2517, %v389
    %v2519 = vadd.f32 %v2518, %v394
    %v2520 = vadd.f32 %v2519, %v397
    %v2521 = vadd.f32 %v2520, %v402
    %v2522 = vadd.f32 %v2521, %v405
    %v2523 = vadd.f32 %v2522, %v410
    %v2524 = vadd.f32 %v2523, %v413
    %v2525 = vrot.slane %v2524, 4
    %v2526 = vadd.f32 %v2524, %v2525
    %v2527 = vrot.slane %v2526, 2
    %v2528 = vadd.f32 %v2526, %v2527
    %v2529 = vrot.slane %v2528, 1
    %v2530 = vadd.f32 %v2528, %v2529
    %v2531 = vmul.f32 %v2509, 0.0078125
    %v2532 = vmul.f32 %v2530, 0.0078125
    %v2533 = vmul.f32 %v243, %v243
    %v2534 = vmul.f32 %v354, %v354
    %v2535 = vmul.f32 %v247, %v247
    %v2536 = vmul.f32 %v357, %v357
    %v2537 = vmul.f32 %v253, %v253
    %v2538 = vmul.f32 %v362, %v362
    %v2539 = vmul.f32 %v257, %v257
    %v2540 = vmul.f32 %v365, %v365
    %v2541 = vmul.f32 %v263, %v263
    %v2542 = vmul.f32 %v370, %v370
    %v2543 = vmul.f32 %v267, %v267
    %v2544 = vmul.f32 %v373, %v373
    %v2545 = vmul.f32 %v273, %v273
    %v2546 = vmul.f32 %v378, %v378
    %v2547 = vmul.f32 %v277, %v277
    %v2548 = vmul.f32 %v381, %v381
    %v2549 = vmul.f32 %v283, %v283
    %v2550 = vmul.f32 %v386, %v386
    %v2551 = vmul.f32 %v287, %v287
    %v2552 = vmul.f32 %v389, %v389
    %v2553 = vmul.f32 %v293, %v293
    %v2554 = vmul.f32 %v394, %v394
    %v2555 = vmul.f32 %v297, %v297
    %v2556 = vmul.f32 %v397, %v397
    %v2557 = vmul.f32 %v303, %v303
    %v2558 = vmul.f32 %v402, %v402
    %v2559 = vmul.f32 %v307, %v307
    %v2560 = vmul.f32 %v405, %v405
    %v2561 = vmul.f32 %v313, %v313
    %v2562 = vmul.f32 %v410, %v410
    %v2563 = vmul.f32 %v317, %v317
    %v2564 = vmul.f32 %v413, %v413
    %v2565 = vadd.f32 %v2533, %v2535
    %v2566 = vadd.f32 %v2565, %v2537
    %v2567 = vadd.f32 %v2566, %v2539
    %v2568 = vadd.f32 %v2567, %v2541
    %v2569 = vadd.f32 %v2568, %v2543
    %v2570 = vadd.f32 %v2569, %v2545
    %v2571 = vadd.f32 %v2570, %v2547
    %v2572 = vadd.f32 %v2571, %v2549
    %v2573 = vadd.f32 %v2572, %v2551
    %v2574 = vadd.f32 %v2573, %v2553
    %v2575 = vadd.f32 %v2574, %v2555
    %v2576 = vadd.f32 %v2575, %v2557
    %v2577 = vadd.f32 %v2576, %v2559
    %v2578 = vadd.f32 %v2577, %v2561
    %v2579 = vadd.f32 %v2578, %v2563
    %v2580 = vrot.slane %v2579, 4
    %v2581 = vadd.f32 %v2579, %v2580
    %v2582 = vrot.slane %v2581, 2
    %v2583 = vadd.f32 %v2581, %v2582
    %v2584 = vrot.slane %v2583, 1
    %v2585 = vadd.f32 %v2583, %v2584
    %v2586 = vadd.f32 %v2534, %v2536
    %v2587 = vadd.f32 %v2586, %v2538
    %v2588 = vadd.f32 %v2587, %v2540
    %v2589 = vadd.f32 %v2588, %v2542
    %v2590 = vadd.f32 %v2589, %v2544
    %v2591 = vadd.f32 %v2590, %v2546
    %v2592 = vadd.f32 %v2591, %v2548
    %v2593 = vadd.f32 %v2592, %v2550
    %v2594 = vadd.f32 %v2593, %v2552
    %v2595 = vadd.f32 %v2594, %v2554
    %v2596 = vadd.f32 %v2595, %v2556
    %v2597 = vadd.f32 %v2596, %v2558
    %v2598 = vadd.f32 %v2597, %v2560
    %v2599 = vadd.f32 %v2598, %v2562
    %v2600 = vadd.f32 %v2599, %v2564
    %v2601 = vrot.slane %v2600, 4
    %v2602 = vadd.f32 %v2600, %v2601
    %v2603 = vrot.slane %v2602, 2
    %v2604 = vadd.f32 %v2602, %v2603
    %v2605 = vrot.slane %v2604, 1
    %v2606 = vadd.f32 %v2604, %v2605
    %v2607 = vmul.f32 %v2585, 0.0078125
    %v2608 = vmul.f32 %v2606, 0.0078125
    %v2609 = vmul.f32 %v2531, %v2531
    %v2610 = vmul.f32 %v2532, %v2532
    %v2611 = vsub.f32 %v2607, %v2609
    %v2612 = vsub.f32 %v2608, %v2610
    %v2613 = vadd.f32 %v2611, 1e-05
    %v2614 = vadd.f32 %v2612, 1e-05
    %v2615 = vrsqrt.pop %v2613
    %v2616 = vrsqrt.pop %v2614
    %v2619 = vcombine.low %v2615, %v2616
    %v2621 = vunpack.c.l.s4 1966171168
    %v2622 = vunpack.c.0.s8 %v2621
    %v2623 = vlaneseq
    %v2624 = vshrl.u32 %v2623, 7
    %v2625 = vsub.s32 %v2622, %v2624
    %v2626 = vrot.slane %v2619, %v2625
    %v2628 = vunpack.c.l.s4 1966171168
    %v2629 = vunpack.c.0.s8 %v2628
    %v2630 = vlaneseq
    %v2631 = vshrl.u32 %v2630, 7
    %v2632 = vsub.s32 %v2629, %v2631
    %v2633 = vrot.slane %v2626, %v2632
    %v2635 = vmul.f32 %v2486, %v2633
    %v2637 = vlaneseq
    %v2638 = vshrl.u32 %v2637, 7
    %v2639 = vsub.s32 0, %v2638
    %v2640 = vrot.slane %v2635, %v2639
    %v2641 = vlaneseq
    %v2642 = vshrl.u32 %v2641, 7
    %v2643 = vsub.s32 1, %v2642
    %v2644 = vrot.slane %v2635, %v2643
    %v2647 = vmul.f32 %v2531, %v2640
    %v2648 = vmul.f32 %v2532, %v2644
    %v2651 = vcombine.low %v2647, %v2648
    %v2653 = vunpack.c.l.s4 1966171168
    %v2654 = vunpack.c.0.s8 %v2653
    %v2655 = vlaneseq
    %v2656 = vshrl.u32 %v2655, 7
    %v2657 = vsub.s32 %v2654, %v2656
    %v2658 = vrot.slane %v2651, %v2657
    %v2660 = vunpack.c.l.s4 1966171168
    %v2661 = vunpack.c.0.s8 %v2660
    %v2662 = vlaneseq
    %v2663 = vshrl.u32 %v2662, 7
    %v2664 = vsub.s32 %v2661, %v2663
    %v2665 = vrot.slane %v2658, %v2664
    %v2667 = vsub.f32 %v2488, %v2665
    %v2668 = vmul.f32 %v243, %v2640
    %v2669 = vmul.f32 %v354, %v2644
    %v2670 = vmul.f32 %v247, %v2640
    %v2671 = vmul.f32 %v357, %v2644
    %v2672 = vmul.f32 %v253, %v2640
    %v2673 = vmul.f32 %v362, %v2644
    %v2674 = vmul.f32 %v257, %v2640
    %v2675 = vmul.f32 %v365, %v2644
    %v2676 = vmul.f32 %v263, %v2640
    %v2677 = vmul.f32 %v370, %v2644
    %v2678 = vmul.f32 %v267, %v2640
    %v2679 = vmul.f32 %v373, %v2644
    %v2680 = vmul.f32 %v273, %v2640
    %v2681 = vmul.f32 %v378, %v2644
    %v2682 = vmul.f32 %v277, %v2640
    %v2683 = vmul.f32 %v381, %v2644
    %v2684 = vmul.f32 %v283, %v2640
    %v2685 = vmul.f32 %v386, %v2644
    %v2686 = vmul.f32 %v287, %v2640
    %v2687 = vmul.f32 %v389, %v2644
    %v2688 = vmul.f32 %v293, %v2640
    %v2689 = vmul.f32 %v394, %v2644
    %v2690 = vmul.f32 %v297, %v2640
    %v2691 = vmul.f32 %v397, %v2644
    %v2692 = vmul.f32 %v303, %v2640
    %v2693 = vmul.f32 %v402, %v2644
    %v2694 = vmul.f32 %v307, %v2640
    %v2695 = vmul.f32 %v405, %v2644
    %v2696 = vmul.f32 %v313, %v2640
    %v2697 = vmul.f32 %v410, %v2644
    %v2698 = vmul.f32 %v317, %v2640
    %v2699 = vmul.f32 %v413, %v2644
    %v2701 = vlaneseq
    %v2702 = vshrl.u32 %v2701, 7
    %v2703 = vsub.s32 0, %v2702
    %v2704 = vrot.slane %v2667, %v2703
    %v2705 = vlaneseq
    %v2706 = vshrl.u32 %v2705, 7
    %v2707 = vsub.s32 1, %v2706
    %v2708 = vrot.slane %v2667, %v2707
    %v2711 = vadd.f32 %v2668, %v2704
    %v2712 = vadd.f32 %v2669, %v2708
    %v2713 = vadd.f32 %v2670, %v2704
    %v2714 = vadd.f32 %v2671, %v2708
    %v2715 = vadd.f32 %v2672, %v2704
    %v2716 = vadd.f32 %v2673, %v2708
    %v2717 = vadd.f32 %v2674, %v2704
    %v2718 = vadd.f32 %v2675, %v2708
    %v2719 = vadd.f32 %v2676, %v2704
    %v2720 = vadd.f32 %v2677, %v2708
    %v2721 = vadd.f32 %v2678, %v2704
    %v2722 = vadd.f32 %v2679, %v2708
    %v2723 = vadd.f32 %v2680, %v2704
    %v2724 = vadd.f32 %v2681, %v2708
    %v2725 = vadd.f32 %v2682, %v2704
    %v2726 = vadd.f32 %v2683, %v2708
    %v2727 = vadd.f32 %v2684, %v2704
    %v2728 = vadd.f32 %v2685, %v2708
    %v2729 = vadd.f32 %v2686, %v2704
    %v2730 = vadd.f32 %v2687, %v2708
    %v2731 = vadd.f32 %v2688, %v2704
    %v2732 = vadd.f32 %v2689, %v2708
    %v2733 = vadd.f32 %v2690, %v2704
    %v2734 = vadd.f32 %v2691, %v2708
    %v2735 = vadd.f32 %v2692, %v2704
    %v2736 = vadd.f32 %v2693, %v2708
    %v2737 = vadd.f32 %v2694, %v2704
    %v2738 = vadd.f32 %v2695, %v2708
    %v2739 = vadd.f32 %v2696, %v2704
    %v2740 = vadd.f32 %v2697, %v2708
    %v2741 = vadd.f32 %v2698, %v2704
    %v2742 = vadd.f32 %v2699, %v2708
    %v2743 = vadd.f32 %v2453, %v2711
    %v2744 = vadd.f32 %v2454, %v2712
    %v2745 = vadd.f32 %v2455, %v2713
    %v2746 = vadd.f32 %v2456, %v2714
    %v2747 = vadd.f32 %v2457, %v2715
    %v2748 = vadd.f32 %v2458, %v2716
    %v2749 = vadd.f32 %v2459, %v2717
    %v2750 = vadd.f32 %v2460, %v2718
    %v2751 = vadd.f32 %v2461, %v2719
    %v2752 = vadd.f32 %v2462, %v2720
    %v2753 = vadd.f32 %v2463, %v2721
    %v2754 = vadd.f32 %v2464, %v2722
    %v2755 = vadd.f32 %v2465, %v2723
    %v2756 = vadd.f32 %v2466, %v2724
    %v2757 = vadd.f32 %v2467, %v2725
    %v2758 = vadd.f32 %v2468, %v2726
    %v2759 = vadd.f32 %v2469, %v2727
    %v2760 = vadd.f32 %v2470, %v2728
    %v2761 = vadd.f32 %v2471, %v2729
    %v2762 = vadd.f32 %v2472, %v2730
    %v2763 = vadd.f32 %v2473, %v2731
    %v2764 = vadd.f32 %v2474, %v2732
    %v2765 = vadd.f32 %v2475, %v2733
    %v2766 = vadd.f32 %v2476, %v2734
    %v2767 = vadd.f32 %v2477, %v2735
    %v2768 = vadd.f32 %v2478, %v2736
    %v2769 = vadd.f32 %v2479, %v2737
    %v2770 = vadd.f32 %v2480, %v2738
    %v2771 = vadd.f32 %v2481, %v2739
    %v2772 = vadd.f32 %v2482, %v2740
    %v2773 = vadd.f32 %v2483, %v2741
    %v2774 = vadd.f32 %v2484, %v2742
    %v2775 = vmax.f32 %v2743, 0.0
    %v2776 = vmax.f32 %v2744, 0.0
    %v2777 = vmax.f32 %v2745, 0.0
    %v2778 = vmax.f32 %v2746, 0.0
    %v2779 = vmax.f32 %v2747, 0.0
    %v2780 = vmax.f32 %v2748, 0.0
    %v2781 = vmax.f32 %v2749, 0.0
    %v2782 = vmax.f32 %v2750, 0.0
    %v2783 = vmax.f32 %v2751, 0.0
    %v2784 = vmax.f32 %v2752, 0.0
    %v2785 = vmax.f32 %v2753, 0.0
    %v2786 = vmax.f32 %v2754, 0.0
    %v2787 = vmax.f32 %v2755, 0.0
    %v2788 = vmax.f32 %v2756, 0.0
    %v2789 = vmax.f32 %v2757, 0.0
    %v2790 = vmax.f32 %v2758, 0.0
    %v2791 = vmax.f32 %v2759, 0.0
    %v2792 = vmax.f32 %v2760, 0.0
    %v2793 = vmax.f32 %v2761, 0.0
    %v2794 = vmax.f32 %v2762, 0.0
    %v2795 = vmax.f32 %v2763, 0.0
    %v2796 = vmax.f32 %v2764, 0.0
    %v2797 = vmax.f32 %v2765, 0.0
    %v2798 = vmax.f32 %v2766, 0.0
    %v2799 = vmax.f32 %v2767, 0.0
    %v2800 = vmax.f32 %v2768, 0.0
    %v2801 = vmax.f32 %v2769, 0.0
    %v2802 = vmax.f32 %v2770, 0.0
    %v2803 = vmax.f32 %v2771, 0.0
    %v2804 = vmax.f32 %v2772, 0.0
    %v2805 = vmax.f32 %v2773, 0.0
    %v2806 = vmax.f32 %v2774, 0.0
    %2807 = vst [vmem:[#allocation11] sm:$0xff] %v2775
    %2808 = vst [vmem:[#allocation11 + $0x8] sm:$0xff] %v2776
    %2809 = vst [vmem:[#allocation11 + $0x10] sm:$0xff] %v2777
    %2810 = vst [vmem:[#allocation11 + $0x18] sm:$0xff] %v2778
    %2811 = vst [vmem:[#allocation11 + $0x20] sm:$0xff] %v2779
    %2812 = vst [vmem:[#allocation11 + $0x28] sm:$0xff] %v2780
    %2813 = vst [vmem:[#allocation11 + $0x30] sm:$0xff] %v2781
    %2814 = vst [vmem:[#allocation11 + $0x38] sm:$0xff] %v2782
    %2815 = vst [vmem:[#allocation11 + $0x40] sm:$0xff] %v2783
    %2816 = vst [vmem:[#allocation11 + $0x48] sm:$0xff] %v2784
    %2817 = vst [vmem:[#allocation11 + $0x50] sm:$0xff] %v2785
    %2818 = vst [vmem:[#allocation11 + $0x58] sm:$0xff] %v2786
    %2819 = vst [vmem:[#allocation11 + $0x60] sm:$0xff] %v2787
    %2820 = vst [vmem:[#allocation11 + $0x68] sm:$0xff] %v2788
    %2821 = vst [vmem:[#allocation11 + $0x70] sm:$0xff] %v2789
    %2822 = vst [vmem:[#allocation11 + $0x78] sm:$0xff] %v2790
    %2823 = vst [vmem:[#allocation11 + $0x80] sm:$0xff] %v2791
    %2824 = vst [vmem:[#allocation11 + $0x88] sm:$0xff] %v2792
    %2825 = vst [vmem:[#allocation11 + $0x90] sm:$0xff] %v2793
    %2826 = vst [vmem:[#allocation11 + $0x98] sm:$0xff] %v2794
    %2827 = vst [vmem:[#allocation11 + $0xa0] sm:$0xff] %v2795
    %2828 = vst [vmem:[#allocation11 + $0xa8] sm:$0xff] %v2796
    %2829 = vst [vmem:[#allocation11 + $0xb0] sm:$0xff] %v2797
    %2830 = vst [vmem:[#allocation11 + $0xb8] sm:$0xff] %v2798
    %2831 = vst [vmem:[#allocation11 + $0xc0] sm:$0xff] %v2799
    %2832 = vst [vmem:[#allocation11 + $0xc8] sm:$0xff] %v2800
    %2833 = vst [vmem:[#allocation11 + $0xd0] sm:$0xff] %v2801
    %2834 = vst [vmem:[#allocation11 + $0xd8] sm:$0xff] %v2802
    %2835 = vst [vmem:[#allocation11 + $0xe0] sm:$0xff] %v2803
    %2836 = vst [vmem:[#allocation11 + $0xe8] sm:$0xff] %v2804
    %2837 = vst [vmem:[#allocation11 + $0xf0] sm:$0xff] %v2805
    %2838 = vst [vmem:[#allocation11 + $0xf8] sm:$0xff] %v2806
    // Predicated region
    $region38: #{tpu_custom_call.1} parent=1 // pred_check
      _
    $region39: #{tpu_custom_call.1} parent=1 // pred_check_branch
      %2840 = sbr.rel (0) target = $region41
    $region40: #{tpu_custom_call.1} parent=1 // pred_region
      %s2842 = ssub.s32 4096, 4096
      %2843 = vsyncadd [#allocation5], %s2842
      %s2844 = sshll.u32 [#allocation11], 4
      %s2845 = int_to_ptr.vmem [resolvable:$true] %s2844
      %2850 = dma.vmem_to_hbm [thread:$0]  %s2845, 4096, %s5, [#allocation5], 256, 256, 16
    $region41: #{tpu_custom_call.1} parent=1 // pred_fallthru
      _
    // Predicated region
    $region42: #{tpu_custom_call.1} parent=1 // pred_check
      _
    $region43: #{tpu_custom_call.1} parent=1 // pred_check_branch
      %2852 = sbr.rel (0) target = $region45
    $region44: #{tpu_custom_call.1} parent=1 // pred_region
      %2853 = dma.done [#allocation5], 4096
    $region45: #{tpu_custom_call.1} parent=1 // pred_fallthru
      _
    %2854 = vsyncpa [#allocation4], 1
    %2855 = vsyncpa [#allocation7], 1
    %2856 = vsyncpa [#allocation10], 1
    %2857 = vsyncpa [#allocation5], 1

</llo_original>
